<compile_context>
chip_gen: v5e
topology: v5e:2x2
jax: 0.10.0
libtpu: 0.0.40
codegen_flags: <defaults>
</compile_context>

<pallas_src>
import functools

import jax
import jax.numpy as jnp
from jax import lax
from jax.experimental import pallas as pl
from jax.experimental.pallas import tpu as pltpu

LEAK = 0.1          # matches nn.LeakyReLU(0.1) in the PyTorch SpaBlock
KH = KW = 3         # 3x3 conv, stride 1, padding 1
LANE = 128
_SLACK = 8          # spare rows above/below the staging buffers so the +/-1
                    # row tap slices stay in bounds (only masked lanes read them)


def _leaky(v):
    return jnp.where(v >= 0, v, LEAK * v)


def spa_block_kernel(x_ref, xt_ref, xb_ref, ml_ref, mr_ref,
                     w1_ref, b1_ref, w2_ref, b2_ref, out_ref,
                     act1_ref, act2_ref):
    # x_ref   : (TH*W, Cp)    f32  main tile, channels on lanes (padded to 128)
    # xt_ref  : (2*W,  Cp)    f32  two input rows above the tile (garbage at t=0)
    # xb_ref  : (2*W,  Cp)    f32  two input rows below the tile (garbage at last)
    # ml_ref  : ((TH+2)*W, 1) f32  1.0 where w != 0    (left-tap column mask)
    # mr_ref  : ((TH+2)*W, 1) f32  1.0 where w != W-1  (right-tap column mask)
    # w*_ref  : (9, Cp, Cp)   bf16 conv weights, tap-major (3*kh + kw)
    # b*_ref  : (1, Cp)       f32
    # out_ref : (TH*W, Cp)    f32
    # act1_ref: ((TH+4)*W + 2*_SLACK, Cp) f32  x tile + 2-row halo staging
    # act2_ref: ((TH+2)*W + 2*_SLACK, Cp) f32  y1 (with 1-row halo) staging
    t = pl.program_id(1)
    n_t = pl.num_programs(1)

    thw, cp = out_ref.shape
    w2c = xt_ref.shape[0]            # 2 * W
    w = w2c // 2
    g = thw + w2c                    # (TH + 2) * W rows of y1 computed per tile
    tot1 = act1_ref.shape[0]
    tot2 = act2_ref.shape[0]
    r0 = _SLACK
    f32 = jnp.float32
    bf16 = jnp.bfloat16

    # ---- stage x (+ 2-row halo; zeros at the image boundary) into act1 ------
    zpad = jnp.zeros((r0, cp), f32)
    act1_ref[0:r0, :] = zpad                       # slack rows (keep them clean)
    act1_ref[tot1 - r0:tot1, :] = zpad
    act2_ref[0:r0, :] = zpad
    act2_ref[tot2 - r0:tot2, :] = zpad
    act1_ref[r0:r0 + w2c, :] = xt_ref[...] * (t > 0).astype(f32)
    act1_ref[r0 + w2c:r0 + w2c + thw, :] = x_ref[...]
    act1_ref[r0 + w2c + thw:r0 + 2 * w2c + thw, :] = (
        xb_ref[...] * (t < n_t - 1).astype(f32))

    ml1 = ml_ref[...]                              # (g, 1)
    mr1 = mr_ref[...]

    def conv3x3(src_ref, n, w_ref, b_ref, ml, mr):
        # One 3x3 conv (+bias, +LeakyReLU) over n output rows, channels on
        # lanes.  Taps are row-shifted slices of src_ref; the W-direction wrap
        # between image rows is killed by the {0,1} column masks.
        acc = jnp.zeros((n, cp), f32)
        for kh in range(KH):
            base = r0 + kh * w - 1
            left = src_ref[base:base + n, :] * ml
            ctr = src_ref[base + 1:base + 1 + n, :]
            rgt = src_ref[base + 2:base + 2 + n, :] * mr
            acc += jnp.dot(left.astype(bf16), w_ref[3 * kh + 0],
                           preferred_element_type=f32)
            acc += jnp.dot(ctr.astype(bf16), w_ref[3 * kh + 1],
                           preferred_element_type=f32)
            acc += jnp.dot(rgt.astype(bf16), w_ref[3 * kh + 2],
                           preferred_element_type=f32)
        return _leaky(acc + b_ref[...])

    # ---- conv1 on TH+2 rows (tile + 1-row y1 halo), write into act2 ---------
    y1 = conv3x3(act1_ref, g, w1_ref, b1_ref, ml1, mr1)
    act2_ref[r0:r0 + g, :] = y1

    # y1 "rows" outside the image must act as conv2's zero padding, not as
    # conv1-of-zeros (= LeakyReLU(bias)); overwrite them at the image edges.
    zrow = jnp.zeros((w, cp), f32)

    @pl.when(t == 0)
    def _():
        act2_ref[r0:r0 + w, :] = zrow

    @pl.when(t == n_t - 1)
    def _():
        act2_ref[r0 + g - w:r0 + g, :] = zrow

    # ---- conv2 on the TH tile rows, residual add, lane-dense store ----------
    y2 = conv3x3(act2_ref, thw, w2_ref, b2_ref, ml1[:thw], mr1[:thw])
    out_ref[...] = (x_ref[...] + y2).astype(out_ref.dtype)


def _round_up(n, m):
    return (n + m - 1) // m * m


def _vmem_capacity_bytes():
    try:
        return int(pltpu.get_tpu_info().vmem_capacity_bytes)
    except Exception:
        return 64 * 1024 * 1024        # conservative (v7x per-TC) fallback


def _tile_working_set_bytes(tile_h, width, cp):
    # f32 staging + intermediates + double-buffered I/O blocks + bf16 weights.
    g = (tile_h + 2) * width
    io = 2 * 2 * tile_h * width * cp * 4 + 2 * 2 * (2 * width) * cp * 4
    acts = ((tile_h + 4) * width + g + 4 * _SLACK) * cp * 4
    interm = 6 * g * cp * 4            # shifted taps / masked copies / acc / y1
    wts = 2 * 2 * KH * KW * cp * cp * 2
    return io + acts + interm + wts


def _pick_tile_h(H, width, cp):
    budget = int(0.30 * _vmem_capacity_bytes())
    best = 2
    for th in range(2, H + 1, 2):
        if H % th == 0 and _tile_working_set_bytes(th, width, cp) <= budget:
            best = th
    return best


def spa_block_nhwc(x_nhwc, w1, b1, w2, b2, tile_h=None):
    """x_nhwc: (B, H, W, C); w*: (3, 3, Cin, Cout) (HWIO); b*: (C,)."""
    B, H, W, C = x_nhwc.shape
    Cp = _round_up(C, LANE)
    if W % 8 != 0 or H % 2 != 0:
        raise ValueError("spa_block_nhwc expects W % 8 == 0 and even H "
                         "(pad spatially outside the kernel otherwise).")
    if tile_h is None:
        tile_h = _pick_tile_h(H, W, Cp)
    assert tile_h % 2 == 0 and H % tile_h == 0, "tile_h must be even and divide H"
    n_t = H // tile_h
    thw = tile_h * W
    g = (tile_h + 2) * W
    th2 = tile_h // 2
    f32 = jnp.float32

    # Channels-on-lanes, padded to a multiple of 128 (lane-dense, unmasked I/O).
    # TODO(synk): for very small C this inflates HBM traffic Cp/C-fold; fold W
    # into lanes (or stage-pad in-kernel) if that ever dominates end-to-end.
    x_p = x_nhwc.reshape(B, H * W, C).astype(f32)
    if Cp != C:
        x_p = jnp.pad(x_p, ((0, 0), (0, 0), (0, Cp - C)))

    def prep_w(wt):
        wt = wt.astype(f32)
        if Cp != C:
            wt = jnp.pad(wt, ((0, 0), (0, 0), (0, Cp - C), (0, Cp - C)))
        return wt.reshape(KH * KW, Cp, Cp).astype(jnp.bfloat16)

    def prep_b(bs):
        bs = bs.astype(f32).reshape(1, C)
        if Cp != C:
            bs = jnp.pad(bs, ((0, 0), (0, Cp - C)))
        return bs

    w1p, w2p = prep_w(w1), prep_w(w2)
    b1p, b2p = prep_b(b1), prep_b(b2)

    # {0,1} column masks that kill the W-direction wrap of the +/-1-row taps.
    col = jnp.arange(g, dtype=jnp.int32) % W
    ml = (col != 0).astype(f32).reshape(g, 1)
    mr = (col != W - 1).astype(f32).reshape(g, 1)

    grid_spec = pltpu.PrefetchScalarGridSpec(
        num_scalar_prefetch=0,
        grid=(B, n_t),
        in_specs=[
            pl.BlockSpec((None, thw, Cp), lambda b, t: (b, t, 0)),
            pl.BlockSpec((None, 2 * W, Cp),
                         lambda b, t: (b, jnp.maximum(t * th2 - 1, 0), 0)),
            pl.BlockSpec((None, 2 * W, Cp),
                         lambda b, t: (b, jnp.minimum((t + 1) * th2, H // 2 - 1), 0)),
            pl.BlockSpec((g, 1), lambda b, t: (0, 0)),
            pl.BlockSpec((g, 1), lambda b, t: (0, 0)),
            pl.BlockSpec((KH * KW, Cp, Cp), lambda b, t: (0, 0, 0)),
            pl.BlockSpec((1, Cp), lambda b, t: (0, 0)),
            pl.BlockSpec((KH * KW, Cp, Cp), lambda b, t: (0, 0, 0)),
            pl.BlockSpec((1, Cp), lambda b, t: (0, 0)),
        ],
        out_specs=pl.BlockSpec((None, thw, Cp), lambda b, t: (b, t, 0)),
        scratch_shapes=[
            pltpu.VMEM(((tile_h + 4) * W + 2 * _SLACK, Cp), f32),
            pltpu.VMEM(((tile_h + 2) * W + 2 * _SLACK, Cp), f32),
        ],
    )

    vmem_limit = int(min(max(2 * _tile_working_set_bytes(tile_h, W, Cp),
                             24 * 1024 * 1024),
                         int(0.75 * _vmem_capacity_bytes())))

    out_p = pl.pallas_call(
        spa_block_kernel,
        out_shape=jax.ShapeDtypeStruct((B, H * W, Cp), x_nhwc.dtype),
        grid_spec=grid_spec,
        compiler_params=pltpu.CompilerParams(
            dimension_semantics=("parallel", "parallel"),
            vmem_limit_bytes=vmem_limit,
        ),
    )(x_p, x_p, x_p, ml, mr, w1p, b1p, w2p, b2p)

    return out_p[:, :, :C].reshape(B, H, W, C).astype(x_nhwc.dtype)


@functools.partial(jax.jit, static_argnames=("tile_h",))
def spa_block_nchw(x_nchw, w1, b1, w2, b2, tile_h=None):
    """Matches PyTorch SpaBlock.forward on NCHW input (bf16 MXU tap operands,
    f32 accumulation; keep the surrounding model NHWC to avoid the transposes)."""
    x_nhwc = jnp.transpose(x_nchw, (0, 2, 3, 1))
    y_nhwc = spa_block_nhwc(x_nhwc, w1, b1, w2, b2, tile_h=tile_h)
    return jnp.transpose(y_nhwc, (0, 3, 1, 2))


def _reference_nchw(x_nchw, w1, b1, w2, b2, conv_dtype=jnp.float32):
    # Pure-JAX reference (lax conv, NCHW / OIHW).  conv_dtype=bfloat16 mirrors
    # the kernel's bf16 MXU operands (with f32 accumulation) exactly.
    def conv(x, w_hwio, b):
        w_oihw = jnp.transpose(w_hwio, (3, 2, 0, 1)).astype(conv_dtype)
        y = lax.conv_general_dilated(
            x.astype(conv_dtype), w_oihw, window_strides=(1, 1),
            padding=((1, 1), (1, 1)),
            dimension_numbers=("NCHW", "OIHW", "NCHW"),
            preferred_element_type=jnp.float32)
        return y + b[None, :, None, None]

    y1 = _leaky(conv(x_nchw, w1, b1))
    y2 = _leaky(conv(y1, w2, b2))
    return x_nchw + y2


if __name__ == "__main__":
    key = jax.random.PRNGKey(0)
    B, C, H, W = 2, 4, 16, 16
    k_x, k_w1, k_b1, k_w2, k_b2 = jax.random.split(key, 5)

    x = jax.random.normal(k_x, (B, C, H, W), dtype=jnp.float32)
    # deterministic synthetic conv params; stored as (kh, kw, Cin, Cout)
    scale = 1.0 / (C * KH * KW) ** 0.5
    w1 = jax.random.normal(k_w1, (KH, KW, C, C), dtype=jnp.float32) * scale
    b1 = jax.random.normal(k_b1, (C,), dtype=jnp.float32) * 0.1
    w2 = jax.random.normal(k_w2, (KH, KW, C, C), dtype=jnp.float32) * scale
    b2 = jax.random.normal(k_b2, (C,), dtype=jnp.float32) * 0.1

    # tile_h=8 -> two H-tiles per image: exercises the halo / edge-zeroing path.
    out = jax.block_until_ready(spa_block_nchw(x, w1, b1, w2, b2, tile_h=8))

    ref_bf16 = jax.block_until_ready(
        _reference_nchw(x, w1, b1, w2, b2, conv_dtype=jnp.bfloat16))
    ref_f32 = jax.block_until_ready(_reference_nchw(x, w1, b1, w2, b2))

    assert out.shape == (B, C, H, W)
    # Tight check against a reference using the same bf16 conv operands ...
    assert jnp.allclose(out, ref_bf16, atol=5e-3, rtol=5e-3), \
        "mismatch vs bf16-operand reference"
    # ... and a loose check against the pure-f32 PyTorch-equivalent forward
    # (the only deviation is the bf16 rounding of the MXU tap operands).
    assert jnp.allclose(out, ref_f32, atol=1e-1, rtol=1e-1), \
        "mismatch vs f32 reference"

    print("KERNEL_OK")
</pallas_src>

<mosaic_0001>
module attributes {stable_mosaic.version = 11 : i64} {
  func.func @spa_block_kernel(%arg0: i32, %arg1: i32, %arg2: memref<1x128x128xf32, #tpu.memory_space<vmem>>, %arg3: memref<1x32x128xf32, #tpu.memory_space<vmem>>, %arg4: memref<1x32x128xf32, #tpu.memory_space<vmem>>, %arg5: memref<160x1xf32, #tpu.memory_space<vmem>>, %arg6: memref<160x1xf32, #tpu.memory_space<vmem>>, %arg7: memref<9x128x128xbf16, #tpu.memory_space<vmem>>, %arg8: memref<1x128xf32, #tpu.memory_space<vmem>>, %arg9: memref<9x128x128xbf16, #tpu.memory_space<vmem>>, %arg10: memref<1x128xf32, #tpu.memory_space<vmem>>, %arg11: memref<1x128x128xf32, #tpu.memory_space<vmem>>, %arg12: memref<208x128xf32, #tpu.memory_space<vmem>>, %arg13: memref<176x128xf32, #tpu.memory_space<vmem>>) attributes {dimension_semantics = [#tpu.dimension_semantics<parallel>, #tpu.dimension_semantics<parallel>], iteration_bounds = array<i64: 2, 2>, scalar_prefetch = 0 : i64, scratch_operands = 2 : i64, tpu.core_type = #tpu.core_type<tc>, window_params = [{transform_indices = @transform_0, window_bounds = array<i64: 1, 128, 128>}, {transform_indices = @transform_1, window_bounds = array<i64: 1, 32, 128>}, {transform_indices = @transform_2, window_bounds = array<i64: 1, 32, 128>}, {pipeline_mode = #tpu.pipeline_mode<synchronous>, transform_indices = @transform_3, window_bounds = array<i64: 160, 1>}, {pipeline_mode = #tpu.pipeline_mode<synchronous>, transform_indices = @transform_4, window_bounds = array<i64: 160, 1>}, {pipeline_mode = #tpu.pipeline_mode<synchronous>, transform_indices = @transform_5, window_bounds = array<i64: 9, 128, 128>}, {pipeline_mode = #tpu.pipeline_mode<synchronous>, transform_indices = @transform_6, window_bounds = array<i64: 1, 128>}, {pipeline_mode = #tpu.pipeline_mode<synchronous>, transform_indices = @transform_7, window_bounds = array<i64: 9, 128, 128>}, {pipeline_mode = #tpu.pipeline_mode<synchronous>, transform_indices = @transform_8, window_bounds = array<i64: 1, 128>}, {transform_indices = @transform_9, window_bounds = array<i64: 1, 128, 128>}]} {
    %cst = arith.constant 0.000000e+00 : f32
    %0 = vector.broadcast %cst : f32 to vector<8x128xf32>
    %c0 = arith.constant 0 : index
    %c0_0 = arith.constant 0 : index
    %1 = vector.load %arg12[%c0, %c0_0] : memref<208x128xf32, #tpu.memory_space<vmem>>, vector<8x128xf32>
    tpu.vector_store %arg12[%c0, %c0_0], %0 {strides = array<i32>} : memref<208x128xf32, #tpu.memory_space<vmem>>, vector<8x128xf32>,
    %c200 = arith.constant 200 : index
    %c0_1 = arith.constant 0 : index
    %2 = vector.load %arg12[%c200, %c0_1] : memref<208x128xf32, #tpu.memory_space<vmem>>, vector<8x128xf32>
    tpu.vector_store %arg12[%c200, %c0_1], %0 {strides = array<i32>} : memref<208x128xf32, #tpu.memory_space<vmem>>, vector<8x128xf32>,
    %c0_2 = arith.constant 0 : index
    %c0_3 = arith.constant 0 : index
    %3 = vector.load %arg13[%c0_2, %c0_3] : memref<176x128xf32, #tpu.memory_space<vmem>>, vector<8x128xf32>
    tpu.vector_store %arg13[%c0_2, %c0_3], %0 {strides = array<i32>} : memref<176x128xf32, #tpu.memory_space<vmem>>, vector<8x128xf32>,
    %c168 = arith.constant 168 : index
    %c0_4 = arith.constant 0 : index
    %4 = vector.load %arg13[%c168, %c0_4] : memref<176x128xf32, #tpu.memory_space<vmem>>, vector<8x128xf32>
    tpu.vector_store %arg13[%c168, %c0_4], %0 {strides = array<i32>} : memref<176x128xf32, #tpu.memory_space<vmem>>, vector<8x128xf32>,
    %c0_5 = arith.constant 0 : index
    %c0_6 = arith.constant 0 : index
    %c0_7 = arith.constant 0 : index
    %5 = vector.load %arg3[%c0_5, %c0_6, %c0_7] : memref<1x32x128xf32, #tpu.memory_space<vmem>>, vector<1x32x128xf32>
    %6 = vector.shape_cast %5 : vector<1x32x128xf32> to vector<32x128xf32>
    %c0_i32 = arith.constant 0 : i32
    %7 = arith.cmpi sgt, %arg1, %c0_i32 : i32
    %8 = arith.extui %7 : i1 to i32
    %9 = arith.sitofp %8 : i32 to f32
    %10 = vector.broadcast %9 : f32 to vector<32x128xf32>
    %11 = arith.mulf %6, %10 : vector<32x128xf32>
    %c8 = arith.constant 8 : index
    %c0_8 = arith.constant 0 : index
    %12 = vector.load %arg12[%c8, %c0_8] : memref<208x128xf32, #tpu.memory_space<vmem>>, vector<32x128xf32>
    tpu.vector_store %arg12[%c8, %c0_8], %11 {strides = array<i32>} : memref<208x128xf32, #tpu.memory_space<vmem>>, vector<32x128xf32>,
    %c0_9 = arith.constant 0 : index
    %c0_10 = arith.constant 0 : index
    %c0_11 = arith.constant 0 : index
    %13 = vector.load %arg2[%c0_9, %c0_10, %c0_11] : memref<1x128x128xf32, #tpu.memory_space<vmem>>, vector<1x128x128xf32>
    %14 = vector.shape_cast %13 : vector<1x128x128xf32> to vector<128x128xf32>
    %c40 = arith.constant 40 : index
    %c0_12 = arith.constant 0 : index
    %15 = vector.load %arg12[%c40, %c0_12] : memref<208x128xf32, #tpu.memory_space<vmem>>, vector<128x128xf32>
    tpu.vector_store %arg12[%c40, %c0_12], %14 {strides = array<i32>} : memref<208x128xf32, #tpu.memory_space<vmem>>, vector<128x128xf32>,
    %c0_13 = arith.constant 0 : index
    %c0_14 = arith.constant 0 : index
    %c0_15 = arith.constant 0 : index
    %16 = vector.load %arg4[%c0_13, %c0_14, %c0_15] : memref<1x32x128xf32, #tpu.memory_space<vmem>>, vector<1x32x128xf32>
    %17 = vector.shape_cast %16 : vector<1x32x128xf32> to vector<32x128xf32>
    %c1_i32 = arith.constant 1 : i32
    %18 = arith.cmpi slt, %arg1, %c1_i32 : i32
    %19 = arith.extui %18 : i1 to i32
    %20 = arith.sitofp %19 : i32 to f32
    %21 = vector.broadcast %20 : f32 to vector<32x128xf32>
    %22 = arith.mulf %17, %21 : vector<32x128xf32>
    %c168_16 = arith.constant 168 : index
    %c0_17 = arith.constant 0 : index
    %23 = vector.load %arg12[%c168_16, %c0_17] : memref<208x128xf32, #tpu.memory_space<vmem>>, vector<32x128xf32>
    tpu.vector_store %arg12[%c168_16, %c0_17], %22 {strides = array<i32>} : memref<208x128xf32, #tpu.memory_space<vmem>>, vector<32x128xf32>,
    %c0_18 = arith.constant 0 : index
    %c0_19 = arith.constant 0 : index
    %24 = vector.load %arg5[%c0_18, %c0_19] : memref<160x1xf32, #tpu.memory_space<vmem>>, vector<160x1xf32>
    %c0_20 = arith.constant 0 : index
    %c0_21 = arith.constant 0 : index
    %25 = vector.load %arg6[%c0_20, %c0_21] : memref<160x1xf32, #tpu.memory_space<vmem>>, vector<160x1xf32>
    %cst_22 = arith.constant 0.000000e+00 : f32
    %26 = vector.broadcast %cst_22 : f32 to vector<160x128xf32>
    %c7 = arith.constant 7 : index
    %c0_23 = arith.constant 0 : index
    %27 = vector.load %arg12[%c7, %c0_23] : memref<208x128xf32, #tpu.memory_space<vmem>>, vector<160x128xf32>
    %28 = vector.broadcast %24 : vector<160x1xf32> to vector<160x128xf32>
    %29 = arith.mulf %27, %28 : vector<160x128xf32>
    %c8_24 = arith.constant 8 : index
    %c0_25 = arith.constant 0 : index
    %30 = vector.load %arg12[%c8_24, %c0_25] : memref<208x128xf32, #tpu.memory_space<vmem>>, vector<160x128xf32>
    %c9 = arith.constant 9 : index
    %c0_26 = arith.constant 0 : index
    %31 = vector.load %arg12[%c9, %c0_26] : memref<208x128xf32, #tpu.memory_space<vmem>>, vector<160x128xf32>
    %32 = vector.broadcast %25 : vector<160x1xf32> to vector<160x128xf32>
    %33 = arith.mulf %31, %32 : vector<160x128xf32>
    %34 = arith.truncf %29 : vector<160x128xf32> to vector<160x128xbf16>
    %c0_27 = arith.constant 0 : index
    %c0_28 = arith.constant 0 : index
    %c0_29 = arith.constant 0 : index
    %35 = vector.load %arg7[%c0_27, %c0_28, %c0_29] : memref<9x128x128xbf16, #tpu.memory_space<vmem>>, vector<1x128x128xbf16>
    %36 = vector.shape_cast %35 : vector<1x128x128xbf16> to vector<128x128xbf16>
    %cst_30 = arith.constant dense<0.000000e+00> : vector<160x128xf32>
    %37 = tpu.matmul %34, %36, %cst_30 {dimension_numbers = #tpu.dot_dimension_numbers<[1], [0], [0], [1], [0, 0, 1, 1], [], []>} : vector<160x128xbf16>, vector<128x128xbf16>, vector<160x128xf32> -> vector<160x128xf32>
    %38 = arith.addf %26, %37 : vector<160x128xf32>
    %39 = arith.truncf %30 : vector<160x128xf32> to vector<160x128xbf16>
    %c1 = arith.constant 1 : index
    %c0_31 = arith.constant 0 : index
    %c0_32 = arith.constant 0 : index
    %40 = vector.load %arg7[%c1, %c0_31, %c0_32] : memref<9x128x128xbf16, #tpu.memory_space<vmem>>, vector<1x128x128xbf16>
    %41 = vector.shape_cast %40 : vector<1x128x128xbf16> to vector<128x128xbf16>
    %cst_33 = arith.constant dense<0.000000e+00> : vector<160x128xf32>
    %42 = tpu.matmul %39, %41, %cst_33 {dimension_numbers = #tpu.dot_dimension_numbers<[1], [0], [0], [1], [0, 0, 1, 1], [], []>} : vector<160x128xbf16>, vector<128x128xbf16>, vector<160x128xf32> -> vector<160x128xf32>
    %43 = arith.addf %38, %42 : vector<160x128xf32>
    %44 = arith.truncf %33 : vector<160x128xf32> to vector<160x128xbf16>
    %c2 = arith.constant 2 : index
    %c0_34 = arith.constant 0 : index
    %c0_35 = arith.constant 0 : index
    %45 = vector.load %arg7[%c2, %c0_34, %c0_35] : memref<9x128x128xbf16, #tpu.memory_space<vmem>>, vector<1x128x128xbf16>
    %46 = vector.shape_cast %45 : vector<1x128x128xbf16> to vector<128x128xbf16>
    %cst_36 = arith.constant dense<0.000000e+00> : vector<160x128xf32>
    %47 = tpu.matmul %44, %46, %cst_36 {dimension_numbers = #tpu.dot_dimension_numbers<[1], [0], [0], [1], [0, 0, 1, 1], [], []>} : vector<160x128xbf16>, vector<128x128xbf16>, vector<160x128xf32> -> vector<160x128xf32>
    %48 = arith.addf %43, %47 : vector<160x128xf32>
    %c23 = arith.constant 23 : index
    %c0_37 = arith.constant 0 : index
    %49 = vector.load %arg12[%c23, %c0_37] : memref<208x128xf32, #tpu.memory_space<vmem>>, vector<160x128xf32>
    %50 = vector.broadcast %24 : vector<160x1xf32> to vector<160x128xf32>
    %51 = arith.mulf %49, %50 : vector<160x128xf32>
    %c24 = arith.constant 24 : index
    %c0_38 = arith.constant 0 : index
    %52 = vector.load %arg12[%c24, %c0_38] : memref<208x128xf32, #tpu.memory_space<vmem>>, vector<160x128xf32>
    %c25 = arith.constant 25 : index
    %c0_39 = arith.constant 0 : index
    %53 = vector.load %arg12[%c25, %c0_39] : memref<208x128xf32, #tpu.memory_space<vmem>>, vector<160x128xf32>
    %54 = vector.broadcast %25 : vector<160x1xf32> to vector<160x128xf32>
    %55 = arith.mulf %53, %54 : vector<160x128xf32>
    %56 = arith.truncf %51 : vector<160x128xf32> to vector<160x128xbf16>
    %c3 = arith.constant 3 : index
    %c0_40 = arith.constant 0 : index
    %c0_41 = arith.constant 0 : index
    %57 = vector.load %arg7[%c3, %c0_40, %c0_41] : memref<9x128x128xbf16, #tpu.memory_space<vmem>>, vector<1x128x128xbf16>
    %58 = vector.shape_cast %57 : vector<1x128x128xbf16> to vector<128x128xbf16>
    %cst_42 = arith.constant dense<0.000000e+00> : vector<160x128xf32>
    %59 = tpu.matmul %56, %58, %cst_42 {dimension_numbers = #tpu.dot_dimension_numbers<[1], [0], [0], [1], [0, 0, 1, 1], [], []>} : vector<160x128xbf16>, vector<128x128xbf16>, vector<160x128xf32> -> vector<160x128xf32>
    %60 = arith.addf %48, %59 : vector<160x128xf32>
    %61 = arith.truncf %52 : vector<160x128xf32> to vector<160x128xbf16>
    %c4 = arith.constant 4 : index
    %c0_43 = arith.constant 0 : index
    %c0_44 = arith.constant 0 : index
    %62 = vector.load %arg7[%c4, %c0_43, %c0_44] : memref<9x128x128xbf16, #tpu.memory_space<vmem>>, vector<1x128x128xbf16>
    %63 = vector.shape_cast %62 : vector<1x128x128xbf16> to vector<128x128xbf16>
    %cst_45 = arith.constant dense<0.000000e+00> : vector<160x128xf32>
    %64 = tpu.matmul %61, %63, %cst_45 {dimension_numbers = #tpu.dot_dimension_numbers<[1], [0], [0], [1], [0, 0, 1, 1], [], []>} : vector<160x128xbf16>, vector<128x128xbf16>, vector<160x128xf32> -> vector<160x128xf32>
    %65 = arith.addf %60, %64 : vector<160x128xf32>
    %66 = arith.truncf %55 : vector<160x128xf32> to vector<160x128xbf16>
    %c5 = arith.constant 5 : index
    %c0_46 = arith.constant 0 : index
    %c0_47 = arith.constant 0 : index
    %67 = vector.load %arg7[%c5, %c0_46, %c0_47] : memref<9x128x128xbf16, #tpu.memory_space<vmem>>, vector<1x128x128xbf16>
    %68 = vector.shape_cast %67 : vector<1x128x128xbf16> to vector<128x128xbf16>
    %cst_48 = arith.constant dense<0.000000e+00> : vector<160x128xf32>
    %69 = tpu.matmul %66, %68, %cst_48 {dimension_numbers = #tpu.dot_dimension_numbers<[1], [0], [0], [1], [0, 0, 1, 1], [], []>} : vector<160x128xbf16>, vector<128x128xbf16>, vector<160x128xf32> -> vector<160x128xf32>
    %70 = arith.addf %65, %69 : vector<160x128xf32>
    %c39 = arith.constant 39 : index
    %c0_49 = arith.constant 0 : index
    %71 = vector.load %arg12[%c39, %c0_49] : memref<208x128xf32, #tpu.memory_space<vmem>>, vector<160x128xf32>
    %72 = vector.broadcast %24 : vector<160x1xf32> to vector<160x128xf32>
    %73 = arith.mulf %71, %72 : vector<160x128xf32>
    %c40_50 = arith.constant 40 : index
    %c0_51 = arith.constant 0 : index
    %74 = vector.load %arg12[%c40_50, %c0_51] : memref<208x128xf32, #tpu.memory_space<vmem>>, vector<160x128xf32>
    %c41 = arith.constant 41 : index
    %c0_52 = arith.constant 0 : index
    %75 = vector.load %arg12[%c41, %c0_52] : memref<208x128xf32, #tpu.memory_space<vmem>>, vector<160x128xf32>
    %76 = vector.broadcast %25 : vector<160x1xf32> to vector<160x128xf32>
    %77 = arith.mulf %75, %76 : vector<160x128xf32>
    %78 = arith.truncf %73 : vector<160x128xf32> to vector<160x128xbf16>
    %c6 = arith.constant 6 : index
    %c0_53 = arith.constant 0 : index
    %c0_54 = arith.constant 0 : index
    %79 = vector.load %arg7[%c6, %c0_53, %c0_54] : memref<9x128x128xbf16, #tpu.memory_space<vmem>>, vector<1x128x128xbf16>
    %80 = vector.shape_cast %79 : vector<1x128x128xbf16> to vector<128x128xbf16>
    %cst_55 = arith.constant dense<0.000000e+00> : vector<160x128xf32>
    %81 = tpu.matmul %78, %80, %cst_55 {dimension_numbers = #tpu.dot_dimension_numbers<[1], [0], [0], [1], [0, 0, 1, 1], [], []>} : vector<160x128xbf16>, vector<128x128xbf16>, vector<160x128xf32> -> vector<160x128xf32>
    %82 = arith.addf %70, %81 : vector<160x128xf32>
    %83 = arith.truncf %74 : vector<160x128xf32> to vector<160x128xbf16>
    %c7_56 = arith.constant 7 : index
    %c0_57 = arith.constant 0 : index
    %c0_58 = arith.constant 0 : index
    %84 = vector.load %arg7[%c7_56, %c0_57, %c0_58] : memref<9x128x128xbf16, #tpu.memory_space<vmem>>, vector<1x128x128xbf16>
    %85 = vector.shape_cast %84 : vector<1x128x128xbf16> to vector<128x128xbf16>
    %cst_59 = arith.constant dense<0.000000e+00> : vector<160x128xf32>
    %86 = tpu.matmul %83, %85, %cst_59 {dimension_numbers = #tpu.dot_dimension_numbers<[1], [0], [0], [1], [0, 0, 1, 1], [], []>} : vector<160x128xbf16>, vector<128x128xbf16>, vector<160x128xf32> -> vector<160x128xf32>
    %87 = arith.addf %82, %86 : vector<160x128xf32>
    %88 = arith.truncf %77 : vector<160x128xf32> to vector<160x128xbf16>
    %c8_60 = arith.constant 8 : index
    %c0_61 = arith.constant 0 : index
    %c0_62 = arith.constant 0 : index
    %89 = vector.load %arg7[%c8_60, %c0_61, %c0_62] : memref<9x128x128xbf16, #tpu.memory_space<vmem>>, vector<1x128x128xbf16>
    %90 = vector.shape_cast %89 : vector<1x128x128xbf16> to vector<128x128xbf16>
    %cst_63 = arith.constant dense<0.000000e+00> : vector<160x128xf32>
    %91 = tpu.matmul %88, %90, %cst_63 {dimension_numbers = #tpu.dot_dimension_numbers<[1], [0], [0], [1], [0, 0, 1, 1], [], []>} : vector<160x128xbf16>, vector<128x128xbf16>, vector<160x128xf32> -> vector<160x128xf32>
    %92 = arith.addf %87, %91 : vector<160x128xf32>
    %c0_64 = arith.constant 0 : index
    %c0_65 = arith.constant 0 : index
    %93 = vector.load %arg8[%c0_64, %c0_65] : memref<1x128xf32, #tpu.memory_space<vmem>>, vector<1x128xf32>
    %94 = vector.broadcast %93 : vector<1x128xf32> to vector<160x128xf32>
    %95 = arith.addf %92, %94 : vector<160x128xf32>
    %cst_66 = arith.constant 0.000000e+00 : f32
    %96 = vector.broadcast %cst_66 : f32 to vector<160x128xf32>
    %97 = arith.cmpf oge, %95, %96 : vector<160x128xf32>
    %cst_67 = arith.constant 1.000000e-01 : f32
    %98 = vector.broadcast %cst_67 : f32 to vector<160x128xf32>
    %99 = arith.mulf %98, %95 : vector<160x128xf32>
    %100 = arith.select %97, %95, %99 : vector<160x128xi1>, vector<160x128xf32>
    %c8_68 = arith.constant 8 : index
    %c0_69 = arith.constant 0 : index
    %101 = vector.load %arg13[%c8_68, %c0_69] : memref<176x128xf32, #tpu.memory_space<vmem>>, vector<160x128xf32>
    tpu.vector_store %arg13[%c8_68, %c0_69], %100 {strides = array<i32>} : memref<176x128xf32, #tpu.memory_space<vmem>>, vector<160x128xf32>,
    %cst_70 = arith.constant 0.000000e+00 : f32
    %102 = vector.broadcast %cst_70 : f32 to vector<16x128xf32>
    %c0_i32_71 = arith.constant 0 : i32
    %103 = arith.cmpi eq, %arg1, %c0_i32_71 : i32
    %104 = arith.extui %103 : i1 to i32
    %c0_i32_72 = arith.constant 0 : i32
    %105 = arith.cmpi ne, %104, %c0_i32_72 : i32
    scf.if %105 {
      %c8_140 = arith.constant 8 : index
      %c0_141 = arith.constant 0 : index
      %192 = vector.load %arg13[%c8_140, %c0_141] : memref<176x128xf32, #tpu.memory_space<vmem>>, vector<16x128xf32>
      tpu.vector_store %arg13[%c8_140, %c0_141], %102 {strides = array<i32>} : memref<176x128xf32, #tpu.memory_space<vmem>>, vector<16x128xf32>,
    } else {
    }
    %c1_i32_73 = arith.constant 1 : i32
    %106 = arith.cmpi eq, %arg1, %c1_i32_73 : i32
    %107 = arith.extui %106 : i1 to i32
    %c0_i32_74 = arith.constant 0 : i32
    %108 = arith.cmpi ne, %107, %c0_i32_74 : i32
    scf.if %108 {
      %c152 = arith.constant 152 : index
      %c0_140 = arith.constant 0 : index
      %192 = vector.load %arg13[%c152, %c0_140] : memref<176x128xf32, #tpu.memory_space<vmem>>, vector<16x128xf32>
      tpu.vector_store %arg13[%c152, %c0_140], %102 {strides = array<i32>} : memref<176x128xf32, #tpu.memory_space<vmem>>, vector<16x128xf32>,
    } else {
    }
    %109 = vector.extract_strided_slice %24 {offsets = [0, 0], sizes = [128, 1], strides = [1, 1]} : vector<160x1xf32> to vector<128x1xf32>
    %110 = vector.extract_strided_slice %25 {offsets = [0, 0], sizes = [128, 1], strides = [1, 1]} : vector<160x1xf32> to vector<128x1xf32>
    %cst_75 = arith.constant 0.000000e+00 : f32
    %111 = vector.broadcast %cst_75 : f32 to vector<128x128xf32>
    %c7_76 = arith.constant 7 : index
    %c0_77 = arith.constant 0 : index
    %112 = vector.load %arg13[%c7_76, %c0_77] : memref<176x128xf32, #tpu.memory_space<vmem>>, vector<128x128xf32>
    %113 = vector.broadcast %109 : vector<128x1xf32> to vector<128x128xf32>
    %114 = arith.mulf %112, %113 : vector<128x128xf32>
    %c8_78 = arith.constant 8 : index
    %c0_79 = arith.constant 0 : index
    %115 = vector.load %arg13[%c8_78, %c0_79] : memref<176x128xf32, #tpu.memory_space<vmem>>, vector<128x128xf32>
    %c9_80 = arith.constant 9 : index
    %c0_81 = arith.constant 0 : index
    %116 = vector.load %arg13[%c9_80, %c0_81] : memref<176x128xf32, #tpu.memory_space<vmem>>, vector<128x128xf32>
    %117 = vector.broadcast %110 : vector<128x1xf32> to vector<128x128xf32>
    %118 = arith.mulf %116, %117 : vector<128x128xf32>
    %119 = arith.truncf %114 : vector<128x128xf32> to vector<128x128xbf16>
    %c0_82 = arith.constant 0 : index
    %c0_83 = arith.constant 0 : index
    %c0_84 = arith.constant 0 : index
    %120 = vector.load %arg9[%c0_82, %c0_83, %c0_84] : memref<9x128x128xbf16, #tpu.memory_space<vmem>>, vector<1x128x128xbf16>
    %121 = vector.shape_cast %120 : vector<1x128x128xbf16> to vector<128x128xbf16>
    %cst_85 = arith.constant dense<0.000000e+00> : vector<128x128xf32>
    %122 = tpu.matmul %119, %121, %cst_85 {dimension_numbers = #tpu.dot_dimension_numbers<[1], [0], [0], [1], [0, 0, 1, 1], [], []>} : vector<128x128xbf16>, vector<128x128xbf16>, vector<128x128xf32> -> vector<128x128xf32>
    %123 = arith.addf %111, %122 : vector<128x128xf32>
    %124 = arith.truncf %115 : vector<128x128xf32> to vector<128x128xbf16>
    %c1_86 = arith.constant 1 : index
    %c0_87 = arith.constant 0 : index
    %c0_88 = arith.constant 0 : index
    %125 = vector.load %arg9[%c1_86, %c0_87, %c0_88] : memref<9x128x128xbf16, #tpu.memory_space<vmem>>, vector<1x128x128xbf16>
    %126 = vector.shape_cast %125 : vector<1x128x128xbf16> to vector<128x128xbf16>
    %cst_89 = arith.constant dense<0.000000e+00> : vector<128x128xf32>
    %127 = tpu.matmul %124, %126, %cst_89 {dimension_numbers = #tpu.dot_dimension_numbers<[1], [0], [0], [1], [0, 0, 1, 1], [], []>} : vector<128x128xbf16>, vector<128x128xbf16>, vector<128x128xf32> -> vector<128x128xf32>
    %128 = arith.addf %123, %127 : vector<128x128xf32>
    %129 = arith.truncf %118 : vector<128x128xf32> to vector<128x128xbf16>
    %c2_90 = arith.constant 2 : index
    %c0_91 = arith.constant 0 : index
    %c0_92 = arith.constant 0 : index
    %130 = vector.load %arg9[%c2_90, %c0_91, %c0_92] : memref<9x128x128xbf16, #tpu.memory_space<vmem>>, vector<1x128x128xbf16>
    %131 = vector.shape_cast %130 : vector<1x128x128xbf16> to vector<128x128xbf16>
    %cst_93 = arith.constant dense<0.000000e+00> : vector<128x128xf32>
    %132 = tpu.matmul %129, %131, %cst_93 {dimension_numbers = #tpu.dot_dimension_numbers<[1], [0], [0], [1], [0, 0, 1, 1], [], []>} : vector<128x128xbf16>, vector<128x128xbf16>, vector<128x128xf32> -> vector<128x128xf32>
    %133 = arith.addf %128, %132 : vector<128x128xf32>
    %c23_94 = arith.constant 23 : index
    %c0_95 = arith.constant 0 : index
    %134 = vector.load %arg13[%c23_94, %c0_95] : memref<176x128xf32, #tpu.memory_space<vmem>>, vector<128x128xf32>
    %135 = vector.broadcast %109 : vector<128x1xf32> to vector<128x128xf32>
    %136 = arith.mulf %134, %135 : vector<128x128xf32>
    %c24_96 = arith.constant 24 : index
    %c0_97 = arith.constant 0 : index
    %137 = vector.load %arg13[%c24_96, %c0_97] : memref<176x128xf32, #tpu.memory_space<vmem>>, vector<128x128xf32>
    %c25_98 = arith.constant 25 : index
    %c0_99 = arith.constant 0 : index
    %138 = vector.load %arg13[%c25_98, %c0_99] : memref<176x128xf32, #tpu.memory_space<vmem>>, vector<128x128xf32>
    %139 = vector.broadcast %110 : vector<128x1xf32> to vector<128x128xf32>
    %140 = arith.mulf %138, %139 : vector<128x128xf32>
    %141 = arith.truncf %136 : vector<128x128xf32> to vector<128x128xbf16>
    %c3_100 = arith.constant 3 : index
    %c0_101 = arith.constant 0 : index
    %c0_102 = arith.constant 0 : index
    %142 = vector.load %arg9[%c3_100, %c0_101, %c0_102] : memref<9x128x128xbf16, #tpu.memory_space<vmem>>, vector<1x128x128xbf16>
    %143 = vector.shape_cast %142 : vector<1x128x128xbf16> to vector<128x128xbf16>
    %cst_103 = arith.constant dense<0.000000e+00> : vector<128x128xf32>
    %144 = tpu.matmul %141, %143, %cst_103 {dimension_numbers = #tpu.dot_dimension_numbers<[1], [0], [0], [1], [0, 0, 1, 1], [], []>} : vector<128x128xbf16>, vector<128x128xbf16>, vector<128x128xf32> -> vector<128x128xf32>
    %145 = arith.addf %133, %144 : vector<128x128xf32>
    %146 = arith.truncf %137 : vector<128x128xf32> to vector<128x128xbf16>
    %c4_104 = arith.constant 4 : index
    %c0_105 = arith.constant 0 : index
    %c0_106 = arith.constant 0 : index
    %147 = vector.load %arg9[%c4_104, %c0_105, %c0_106] : memref<9x128x128xbf16, #tpu.memory_space<vmem>>, vector<1x128x128xbf16>
    %148 = vector.shape_cast %147 : vector<1x128x128xbf16> to vector<128x128xbf16>
    %cst_107 = arith.constant dense<0.000000e+00> : vector<128x128xf32>
    %149 = tpu.matmul %146, %148, %cst_107 {dimension_numbers = #tpu.dot_dimension_numbers<[1], [0], [0], [1], [0, 0, 1, 1], [], []>} : vector<128x128xbf16>, vector<128x128xbf16>, vector<128x128xf32> -> vector<128x128xf32>
    %150 = arith.addf %145, %149 : vector<128x128xf32>
    %151 = arith.truncf %140 : vector<128x128xf32> to vector<128x128xbf16>
    %c5_108 = arith.constant 5 : index
    %c0_109 = arith.constant 0 : index
    %c0_110 = arith.constant 0 : index
    %152 = vector.load %arg9[%c5_108, %c0_109, %c0_110] : memref<9x128x128xbf16, #tpu.memory_space<vmem>>, vector<1x128x128xbf16>
    %153 = vector.shape_cast %152 : vector<1x128x128xbf16> to vector<128x128xbf16>
    %cst_111 = arith.constant dense<0.000000e+00> : vector<128x128xf32>
    %154 = tpu.matmul %151, %153, %cst_111 {dimension_numbers = #tpu.dot_dimension_numbers<[1], [0], [0], [1], [0, 0, 1, 1], [], []>} : vector<128x128xbf16>, vector<128x128xbf16>, vector<128x128xf32> -> vector<128x128xf32>
    %155 = arith.addf %150, %154 : vector<128x128xf32>
    %c39_112 = arith.constant 39 : index
    %c0_113 = arith.constant 0 : index
    %156 = vector.load %arg13[%c39_112, %c0_113] : memref<176x128xf32, #tpu.memory_space<vmem>>, vector<128x128xf32>
    %157 = vector.broadcast %109 : vector<128x1xf32> to vector<128x128xf32>
    %158 = arith.mulf %156, %157 : vector<128x128xf32>
    %c40_114 = arith.constant 40 : index
    %c0_115 = arith.constant 0 : index
    %159 = vector.load %arg13[%c40_114, %c0_115] : memref<176x128xf32, #tpu.memory_space<vmem>>, vector<128x128xf32>
    %c41_116 = arith.constant 41 : index
    %c0_117 = arith.constant 0 : index
    %160 = vector.load %arg13[%c41_116, %c0_117] : memref<176x128xf32, #tpu.memory_space<vmem>>, vector<128x128xf32>
    %161 = vector.broadcast %110 : vector<128x1xf32> to vector<128x128xf32>
    %162 = arith.mulf %160, %161 : vector<128x128xf32>
    %163 = arith.truncf %158 : vector<128x128xf32> to vector<128x128xbf16>
    %c6_118 = arith.constant 6 : index
    %c0_119 = arith.constant 0 : index
    %c0_120 = arith.constant 0 : index
    %164 = vector.load %arg9[%c6_118, %c0_119, %c0_120] : memref<9x128x128xbf16, #tpu.memory_space<vmem>>, vector<1x128x128xbf16>
    %165 = vector.shape_cast %164 : vector<1x128x128xbf16> to vector<128x128xbf16>
    %cst_121 = arith.constant dense<0.000000e+00> : vector<128x128xf32>
    %166 = tpu.matmul %163, %165, %cst_121 {dimension_numbers = #tpu.dot_dimension_numbers<[1], [0], [0], [1], [0, 0, 1, 1], [], []>} : vector<128x128xbf16>, vector<128x128xbf16>, vector<128x128xf32> -> vector<128x128xf32>
    %167 = arith.addf %155, %166 : vector<128x128xf32>
    %168 = arith.truncf %159 : vector<128x128xf32> to vector<128x128xbf16>
    %c7_122 = arith.constant 7 : index
    %c0_123 = arith.constant 0 : index
    %c0_124 = arith.constant 0 : index
    %169 = vector.load %arg9[%c7_122, %c0_123, %c0_124] : memref<9x128x128xbf16, #tpu.memory_space<vmem>>, vector<1x128x128xbf16>
    %170 = vector.shape_cast %169 : vector<1x128x128xbf16> to vector<128x128xbf16>
    %cst_125 = arith.constant dense<0.000000e+00> : vector<128x128xf32>
    %171 = tpu.matmul %168, %170, %cst_125 {dimension_numbers = #tpu.dot_dimension_numbers<[1], [0], [0], [1], [0, 0, 1, 1], [], []>} : vector<128x128xbf16>, vector<128x128xbf16>, vector<128x128xf32> -> vector<128x128xf32>
    %172 = arith.addf %167, %171 : vector<128x128xf32>
    %173 = arith.truncf %162 : vector<128x128xf32> to vector<128x128xbf16>
    %c8_126 = arith.constant 8 : index
    %c0_127 = arith.constant 0 : index
    %c0_128 = arith.constant 0 : index
    %174 = vector.load %arg9[%c8_126, %c0_127, %c0_128] : memref<9x128x128xbf16, #tpu.memory_space<vmem>>, vector<1x128x128xbf16>
    %175 = vector.shape_cast %174 : vector<1x128x128xbf16> to vector<128x128xbf16>
    %cst_129 = arith.constant dense<0.000000e+00> : vector<128x128xf32>
    %176 = tpu.matmul %173, %175, %cst_129 {dimension_numbers = #tpu.dot_dimension_numbers<[1], [0], [0], [1], [0, 0, 1, 1], [], []>} : vector<128x128xbf16>, vector<128x128xbf16>, vector<128x128xf32> -> vector<128x128xf32>
    %177 = arith.addf %172, %176 : vector<128x128xf32>
    %c0_130 = arith.constant 0 : index
    %c0_131 = arith.constant 0 : index
    %178 = vector.load %arg10[%c0_130, %c0_131] : memref<1x128xf32, #tpu.memory_space<vmem>>, vector<1x128xf32>
    %179 = vector.broadcast %178 : vector<1x128xf32> to vector<128x128xf32>
    %180 = arith.addf %177, %179 : vector<128x128xf32>
    %cst_132 = arith.constant 0.000000e+00 : f32
    %181 = vector.broadcast %cst_132 : f32 to vector<128x128xf32>
    %182 = arith.cmpf oge, %180, %181 : vector<128x128xf32>
    %cst_133 = arith.constant 1.000000e-01 : f32
    %183 = vector.broadcast %cst_133 : f32 to vector<128x128xf32>
    %184 = arith.mulf %183, %180 : vector<128x128xf32>
    %185 = arith.select %182, %180, %184 : vector<128x128xi1>, vector<128x128xf32>
    %c0_134 = arith.constant 0 : index
    %c0_135 = arith.constant 0 : index
    %c0_136 = arith.constant 0 : index
    %186 = vector.load %arg2[%c0_134, %c0_135, %c0_136] : memref<1x128x128xf32, #tpu.memory_space<vmem>>, vector<1x128x128xf32>
    %187 = vector.shape_cast %186 : vector<1x128x128xf32> to vector<128x128xf32>
    %188 = arith.addf %187, %185 : vector<128x128xf32>
    %c0_137 = arith.constant 0 : index
    %c0_138 = arith.constant 0 : index
    %c0_139 = arith.constant 0 : index
    %189 = vector.load %arg11[%c0_137, %c0_138, %c0_139] : memref<1x128x128xf32, #tpu.memory_space<vmem>>, vector<1x128x128xf32>
    %190 = vector.shape_cast %189 : vector<1x128x128xf32> to vector<128x128xf32>
    %191 = vector.shape_cast %188 : vector<128x128xf32> to vector<1x128x128xf32>
    tpu.vector_store %arg11[%c0_137, %c0_138, %c0_139], %191 {strides = array<i32>} : memref<1x128x128xf32, #tpu.memory_space<vmem>>, vector<1x128x128xf32>,
    return
  }
  func.func @transform_0(%arg0: i32, %arg1: i32) -> (i32, i32, i32) {
    %c0_i32 = arith.constant 0 : i32
    %c0_i32_0 = arith.constant 0 : i32
    return %arg0, %arg1, %c0_i32 : i32, i32, i32
  }
  func.func @transform_1(%arg0: i32, %arg1: i32) -> (i32, i32, i32) {
    %c4_i32 = arith.constant 4 : i32
    %0 = arith.muli %arg1, %c4_i32 : i32
    %c1_i32 = arith.constant 1 : i32
    %1 = arith.subi %0, %c1_i32 : i32
    %c0_i32 = arith.constant 0 : i32
    %2 = arith.maxsi %1, %c0_i32 : i32
    %c0_i32_0 = arith.constant 0 : i32
    %c0_i32_1 = arith.constant 0 : i32
    return %arg0, %2, %c0_i32_0 : i32, i32, i32
  }
  func.func @transform_2(%arg0: i32, %arg1: i32) -> (i32, i32, i32) {
    %c1_i32 = arith.constant 1 : i32
    %0 = arith.addi %arg1, %c1_i32 : i32
    %c4_i32 = arith.constant 4 : i32
    %1 = arith.muli %0, %c4_i32 : i32
    %c7_i32 = arith.constant 7 : i32
    %2 = arith.minsi %1, %c7_i32 : i32
    %c0_i32 = arith.constant 0 : i32
    %c0_i32_0 = arith.constant 0 : i32
    return %arg0, %2, %c0_i32 : i32, i32, i32
  }
  func.func @transform_3(%arg0: i32, %arg1: i32) -> (i32, i32) {
    %c0_i32 = arith.constant 0 : i32
    %c0_i32_0 = arith.constant 0 : i32
    %c0_i32_1 = arith.constant 0 : i32
    return %c0_i32, %c0_i32_0 : i32, i32
  }
  func.func @transform_4(%arg0: i32, %arg1: i32) -> (i32, i32) {
    %c0_i32 = arith.constant 0 : i32
    %c0_i32_0 = arith.constant 0 : i32
    %c0_i32_1 = arith.constant 0 : i32
    return %c0_i32, %c0_i32_0 : i32, i32
  }
  func.func @transform_5(%arg0: i32, %arg1: i32) -> (i32, i32, i32) {
    %c0_i32 = arith.constant 0 : i32
    %c0_i32_0 = arith.constant 0 : i32
    %c0_i32_1 = arith.constant 0 : i32
    %c0_i32_2 = arith.constant 0 : i32
    return %c0_i32, %c0_i32_0, %c0_i32_1 : i32, i32, i32
  }
  func.func @transform_6(%arg0: i32, %arg1: i32) -> (i32, i32) {
    %c0_i32 = arith.constant 0 : i32
    %c0_i32_0 = arith.constant 0 : i32
    %c0_i32_1 = arith.constant 0 : i32
    return %c0_i32, %c0_i32_0 : i32, i32
  }
  func.func @transform_7(%arg0: i32, %arg1: i32) -> (i32, i32, i32) {
    %c0_i32 = arith.constant 0 : i32
    %c0_i32_0 = arith.constant 0 : i32
    %c0_i32_1 = arith.constant 0 : i32
    %c0_i32_2 = arith.constant 0 : i32
    return %c0_i32, %c0_i32_0, %c0_i32_1 : i32, i32, i32
  }
  func.func @transform_8(%arg0: i32, %arg1: i32) -> (i32, i32) {
    %c0_i32 = arith.constant 0 : i32
    %c0_i32_0 = arith.constant 0 : i32
    %c0_i32_1 = arith.constant 0 : i32
    return %c0_i32, %c0_i32_0 : i32, i32
  }
  func.func @transform_9(%arg0: i32, %arg1: i32) -> (i32, i32, i32) {
    %c0_i32 = arith.constant 0 : i32
    %c0_i32_0 = arith.constant 0 : i32
    return %arg0, %arg1, %c0_i32 : i32, i32, i32
  }
}

</mosaic_0001>

<llo_original>
// kernel: spa_block_nchw.1
$region0: #{spa_block_nchw.1}
  #allocation0 [shape = 'u32[]', space=smem, size = 0x4, offset = 0x4, fixed_abs, tag = 'smem constant byte address 0x4 - core index']
  #allocation1 [shape = 'u32[72,128]{1,0:T(1,128)}', space=vmem, size = 0x9000, scoped, tag = 'internal scratch']
  #allocation2 [shape = 'f32[208,128]{1,0:T(8,128)}', space=vmem, size = 0x1a000, scoped, tag = 'scratch operand']
  #allocation3 [shape = 'f32[176,128]{1,0:T(8,128)}', space=vmem, size = 0x16000, scoped, tag = 'scratch operand']
  %s0 = inlined_call_operand.vmem [shape: f32[2,256,128], index: 0, kind: input, shape index: {}, may-alias: {0,1,2}]
  %s1 = inlined_call_operand.vmem [shape: f32[2,256,128], index: 1, kind: input, shape index: {}, may-alias: {0,1,2}]
  %s2 = inlined_call_operand.vmem [shape: f32[2,256,128], index: 2, kind: input, shape index: {}, may-alias: {0,1,2}]
  %s3 = inlined_call_operand.vmem [shape: f32[160,1], index: 3, kind: input, shape index: {}]
  %s4 = inlined_call_operand.vmem [shape: f32[160,1], index: 4, kind: input, shape index: {}]
  %s5 = inlined_call_operand.vmem [shape: bf16[9,128,128], index: 5, kind: input, shape index: {}]
  %s6 = inlined_call_operand.vmem [shape: f32[1,128], index: 6, kind: input, shape index: {}]
  %s7 = inlined_call_operand.vmem [shape: bf16[9,128,128], index: 7, kind: input, shape index: {}]
  %s8 = inlined_call_operand.vmem [shape: f32[1,128], index: 8, kind: input, shape index: {}]
  %s9 = inlined_call_operand.vmem [shape: f32[2,256,128], index: 9, kind: output, shape index: {}]
  %s10 = sld [smem:[#allocation0]]
  $region77: #{spa_block_nchw.1} parent=0
    _
  %s12 = ssub.s32 1, %s10
  %s13 = scalar_select 0, %s12, %s10
  loop: start=0, step=1, limit=6
  $region2: #{spa_block_nchw.1} parent=0 // loop_pre_header
    _
  $region3: #{spa_block_nchw.1} parent=0 // loop_header
    %s15 = sphi 0, %s19
    %p16 = scmp.ge.s32.totalorder %s15, 6
    %s22 = sphi 0, %s34
    %s23 = sphi 0, %s30
    %s24 = sphi 0, %s22
    %s25 = sphi 0, %s23
    %s26 = sphi 0, %s24
    %s27 = sphi 0, %s25
    %s39 = sphi 0, %s41
    %s42 = sphi 0, %s39
    %s43 = sphi 0, %s42
    %s59 = sphi 0, %s43
    %s75 = sphi 0, %s77
    %s78 = sphi 0, %s75
    %s79 = sphi 0, %s78
    %s95 = sphi 0, %s79
    %s111 = sphi 0, %s113
    %s114 = sphi 0, %s111
    %s115 = sphi 0, %s114
    %s131 = sphi 0, %s115
    %s135 = sphi 0, %s135
    %s137 = sphi 0, %s135
    %s138 = sphi 0, %s137
    %s152 = sphi 0, %s138
    %s156 = sphi 0, %s156
    %s158 = sphi 0, %s156
    %s159 = sphi 0, %s158
    %s173 = sphi 0, %s159
    %s177 = sphi 0, %s177
    %s179 = sphi 0, %s177
    %s180 = sphi 0, %s179
    %s194 = sphi 0, %s180
    %s198 = sphi 0, %s198
    %s200 = sphi 0, %s198
    %s201 = sphi 0, %s200
    %s215 = sphi 0, %s201
    %s219 = sphi 0, %s219
    %s221 = sphi 0, %s219
    %s222 = sphi 0, %s221
    %s236 = sphi 0, %s222
    %s240 = sphi 0, %s240
    %s242 = sphi 0, %s240
    %s243 = sphi 0, %s242
    %s257 = sphi 0, %s243
    %s265 = sphi 0, %s267
    %s268 = sphi 0, %s265
    %s269 = sphi 0, %s268
    %s285 = sphi 0, %s269
  $region4: #{spa_block_nchw.1} parent=0 // loop_header_branch
    %18 = sbr.rel (%p16) target = $region8
  $region5: #{spa_block_nchw.1} parent=0 // loop_body
    %s20 = ssub.s32 %s15, 1
    %s21 = ssub.s32 %s15, 2
    %s28 = sadd.s32 1, %s23
    %p29 = scmp.ge.s32.totalorder %s28, 2
    %s30 = scalar_select %p29, 0, %s28
    %s31 = sadd.s32 1, %s22
    %s32 = scalar_select %p29, %s31, %s22
    %p33 = scmp.ge.s32.totalorder %s32, 2
    %s34 = scalar_select %p33, 0, %s32
    %s35 = ssub.s32 %s22, %s34
    %s36 = ssub.s32 %s23, %s30
    %s37 = sor.u32 %s35, %s36
    %p38 = scmp.eq.s32.totalorder %s37, 0
    %s40 = sadd.s32 %s39, 1
    %s41 = scalar_select %p38, %s39, %s40
    %p44 = pneg %p38
    %p45 = scmp.eq.s32.totalorder %s15, 3
    %p46 = por %p44, %p45
    %p47 = scmp.ne.s32.totalorder %s39, %s42
    %p48 = scmp.eq.s32.totalorder %s15, 0
    %p49 = por %p47, %p48
    %p50 = scmp.ne.s32.totalorder %s39, %s42
    %p51 = scmp.eq.s32.totalorder %s20, 3
    %p52 = por %p50, %p51
    %p53 = scmp.ne.s32.totalorder %s42, %s43
    %p54 = scmp.eq.s32.totalorder %s20, 0
    %p55 = por %p53, %p54
    %p56 = scmp.ne.s32.totalorder %s42, %s43
    %p57 = scmp.eq.s32.totalorder %s21, 3
    %p58 = por %p56, %p57
    %p60 = scmp.ne.s32.totalorder %s43, %s59
    %p61 = scmp.eq.s32.totalorder %s21, 0
    %p62 = por %p60, %p61
    %s63 = smul.u32 %s23, 4
    %s64 = ssub.s32 %s63, 1
    %p65 = scmp.gt.s32.totalorder %s64, 0
    %s66 = scalar_select %p65, %s64, 0
    %s67 = smul.u32 %s30, 4
    %s68 = ssub.s32 %s67, 1
    %p69 = scmp.gt.s32.totalorder %s68, 0
    %s70 = scalar_select %p69, %s68, 0
    %s71 = ssub.s32 %s22, %s34
    %s72 = ssub.s32 %s66, %s70
    %s73 = sor.u32 %s71, %s72
    %p74 = scmp.eq.s32.totalorder %s73, 0
    %s76 = sadd.s32 %s75, 1
    %s77 = scalar_select %p74, %s75, %s76
    %p80 = pneg %p74
    %p81 = scmp.eq.s32.totalorder %s15, 3
    %p82 = por %p80, %p81
    %p83 = scmp.ne.s32.totalorder %s75, %s78
    %p84 = scmp.eq.s32.totalorder %s15, 0
    %p85 = por %p83, %p84
    %p86 = scmp.ne.s32.totalorder %s75, %s78
    %p87 = scmp.eq.s32.totalorder %s20, 3
    %p88 = por %p86, %p87
    %p89 = scmp.ne.s32.totalorder %s78, %s79
    %p90 = scmp.eq.s32.totalorder %s20, 0
    %p91 = por %p89, %p90
    %p92 = scmp.ne.s32.totalorder %s78, %s79
    %p93 = scmp.eq.s32.totalorder %s21, 3
    %p94 = por %p92, %p93
    %p96 = scmp.ne.s32.totalorder %s79, %s95
    %p97 = scmp.eq.s32.totalorder %s21, 0
    %p98 = por %p96, %p97
    %s99 = sadd.s32 %s23, 1
    %s100 = smul.u32 %s99, 4
    %p101 = scmp.lt.s32.totalorder %s100, 7
    %s102 = scalar_select %p101, %s100, 7
    %s103 = sadd.s32 %s30, 1
    %s104 = smul.u32 %s103, 4
    %p105 = scmp.lt.s32.totalorder %s104, 7
    %s106 = scalar_select %p105, %s104, 7
    %s107 = ssub.s32 %s22, %s34
    %s108 = ssub.s32 %s102, %s106
    %s109 = sor.u32 %s107, %s108
    %p110 = scmp.eq.s32.totalorder %s109, 0
    %s112 = sadd.s32 %s111, 1
    %s113 = scalar_select %p110, %s111, %s112
    %p116 = pneg %p110
    %p117 = scmp.eq.s32.totalorder %s15, 3
    %p118 = por %p116, %p117
    %p119 = scmp.ne.s32.totalorder %s111, %s114
    %p120 = scmp.eq.s32.totalorder %s15, 0
    %p121 = por %p119, %p120
    %p122 = scmp.ne.s32.totalorder %s111, %s114
    %p123 = scmp.eq.s32.totalorder %s20, 3
    %p124 = por %p122, %p123
    %p125 = scmp.ne.s32.totalorder %s114, %s115
    %p126 = scmp.eq.s32.totalorder %s20, 0
    %p127 = por %p125, %p126
    %p128 = scmp.ne.s32.totalorder %s114, %s115
    %p129 = scmp.eq.s32.totalorder %s21, 3
    %p130 = por %p128, %p129
    %p132 = scmp.ne.s32.totalorder %s115, %s131
    %p133 = scmp.eq.s32.totalorder %s21, 0
    %p134 = por %p132, %p133
    %s136 = sadd.s32 %s135, 1
    %p139 = scmp.eq.s32.totalorder %s15, 3
    %p140 = scmp.ne.s32.totalorder %s135, %s137
    %p141 = scmp.eq.s32.totalorder %s15, 0
    %p142 = por %p140, %p141
    %p143 = scmp.ne.s32.totalorder %s135, %s137
    %p144 = scmp.eq.s32.totalorder %s20, 3
    %p145 = por %p143, %p144
    %p146 = scmp.ne.s32.totalorder %s137, %s138
    %p147 = scmp.eq.s32.totalorder %s20, 0
    %p148 = por %p146, %p147
    %p149 = scmp.ne.s32.totalorder %s137, %s138
    %p150 = scmp.eq.s32.totalorder %s21, 3
    %p151 = por %p149, %p150
    %p153 = scmp.ne.s32.totalorder %s138, %s152
    %p154 = scmp.eq.s32.totalorder %s21, 0
    %p155 = por %p153, %p154
    %s157 = sadd.s32 %s156, 1
    %p160 = scmp.eq.s32.totalorder %s15, 3
    %p161 = scmp.ne.s32.totalorder %s156, %s158
    %p162 = scmp.eq.s32.totalorder %s15, 0
    %p163 = por %p161, %p162
    %p164 = scmp.ne.s32.totalorder %s156, %s158
    %p165 = scmp.eq.s32.totalorder %s20, 3
    %p166 = por %p164, %p165
    %p167 = scmp.ne.s32.totalorder %s158, %s159
    %p168 = scmp.eq.s32.totalorder %s20, 0
    %p169 = por %p167, %p168
    %p170 = scmp.ne.s32.totalorder %s158, %s159
    %p171 = scmp.eq.s32.totalorder %s21, 3
    %p172 = por %p170, %p171
    %p174 = scmp.ne.s32.totalorder %s159, %s173
    %p175 = scmp.eq.s32.totalorder %s21, 0
    %p176 = por %p174, %p175
    %s178 = sadd.s32 %s177, 1
    %p181 = scmp.eq.s32.totalorder %s15, 3
    %p182 = scmp.ne.s32.totalorder %s177, %s179
    %p183 = scmp.eq.s32.totalorder %s15, 0
    %p184 = por %p182, %p183
    %p185 = scmp.ne.s32.totalorder %s177, %s179
    %p186 = scmp.eq.s32.totalorder %s20, 3
    %p187 = por %p185, %p186
    %p188 = scmp.ne.s32.totalorder %s179, %s180
    %p189 = scmp.eq.s32.totalorder %s20, 0
    %p190 = por %p188, %p189
    %p191 = scmp.ne.s32.totalorder %s179, %s180
    %p192 = scmp.eq.s32.totalorder %s21, 3
    %p193 = por %p191, %p192
    %p195 = scmp.ne.s32.totalorder %s180, %s194
    %p196 = scmp.eq.s32.totalorder %s21, 0
    %p197 = por %p195, %p196
    %s199 = sadd.s32 %s198, 1
    %p202 = scmp.eq.s32.totalorder %s15, 3
    %p203 = scmp.ne.s32.totalorder %s198, %s200
    %p204 = scmp.eq.s32.totalorder %s15, 0
    %p205 = por %p203, %p204
    %p206 = scmp.ne.s32.totalorder %s198, %s200
    %p207 = scmp.eq.s32.totalorder %s20, 3
    %p208 = por %p206, %p207
    %p209 = scmp.ne.s32.totalorder %s200, %s201
    %p210 = scmp.eq.s32.totalorder %s20, 0
    %p211 = por %p209, %p210
    %p212 = scmp.ne.s32.totalorder %s200, %s201
    %p213 = scmp.eq.s32.totalorder %s21, 3
    %p214 = por %p212, %p213
    %p216 = scmp.ne.s32.totalorder %s201, %s215
    %p217 = scmp.eq.s32.totalorder %s21, 0
    %p218 = por %p216, %p217
    %s220 = sadd.s32 %s219, 1
    %p223 = scmp.eq.s32.totalorder %s15, 3
    %p224 = scmp.ne.s32.totalorder %s219, %s221
    %p225 = scmp.eq.s32.totalorder %s15, 0
    %p226 = por %p224, %p225
    %p227 = scmp.ne.s32.totalorder %s219, %s221
    %p228 = scmp.eq.s32.totalorder %s20, 3
    %p229 = por %p227, %p228
    %p230 = scmp.ne.s32.totalorder %s221, %s222
    %p231 = scmp.eq.s32.totalorder %s20, 0
    %p232 = por %p230, %p231
    %p233 = scmp.ne.s32.totalorder %s221, %s222
    %p234 = scmp.eq.s32.totalorder %s21, 3
    %p235 = por %p233, %p234
    %p237 = scmp.ne.s32.totalorder %s222, %s236
    %p238 = scmp.eq.s32.totalorder %s21, 0
    %p239 = por %p237, %p238
    %s241 = sadd.s32 %s240, 1
    %p244 = scmp.eq.s32.totalorder %s15, 3
    %p245 = scmp.ne.s32.totalorder %s240, %s242
    %p246 = scmp.eq.s32.totalorder %s15, 0
    %p247 = por %p245, %p246
    %p248 = scmp.ne.s32.totalorder %s240, %s242
    %p249 = scmp.eq.s32.totalorder %s20, 3
    %p250 = por %p248, %p249
    %p251 = scmp.ne.s32.totalorder %s242, %s243
    %p252 = scmp.eq.s32.totalorder %s20, 0
    %p253 = por %p251, %p252
    %p254 = scmp.ne.s32.totalorder %s242, %s243
    %p255 = scmp.eq.s32.totalorder %s21, 3
    %p256 = por %p254, %p255
    %p258 = scmp.ne.s32.totalorder %s243, %s257
    %p259 = scmp.eq.s32.totalorder %s21, 0
    %p260 = por %p258, %p259
    %s261 = ssub.s32 %s22, %s34
    %s262 = ssub.s32 %s23, %s30
    %s263 = sor.u32 %s261, %s262
    %p264 = scmp.eq.s32.totalorder %s263, 0
    %s266 = sadd.s32 %s265, 1
    %s267 = scalar_select %p264, %s265, %s266
    %p270 = pneg %p264
    %p271 = scmp.eq.s32.totalorder %s15, 3
    %p272 = por %p270, %p271
    %p273 = scmp.ne.s32.totalorder %s265, %s268
    %p274 = scmp.eq.s32.totalorder %s15, 0
    %p275 = por %p273, %p274
    %p276 = scmp.ne.s32.totalorder %s265, %s268
    %p277 = scmp.eq.s32.totalorder %s20, 3
    %p278 = por %p276, %p277
    %p279 = scmp.ne.s32.totalorder %s268, %s269
    %p280 = scmp.eq.s32.totalorder %s20, 0
    %p281 = por %p279, %p280
    %p282 = scmp.ne.s32.totalorder %s268, %s269
    %p283 = scmp.eq.s32.totalorder %s21, 3
    %p284 = por %p282, %p283
    %p286 = scmp.ne.s32.totalorder %s269, %s285
    %p287 = scmp.eq.s32.totalorder %s21, 0
    %p288 = por %p286, %p287
    %p289 = scmp.le.s32.totalorder 1, %s15
    %p290 = scmp.lt.s32.totalorder %s15, 5
    %p291 = pnand %p289, %p290
    %p292 = pneg %p291
    // Predicated region
    $region9: #{spa_block_nchw.1} parent=5 // pred_check
      _
    $region10: #{spa_block_nchw.1} parent=5 // pred_check_branch
      %294 = sbr.rel (%p291) target = $region12
    $region11: #{spa_block_nchw.1} parent=5 // pred_region
      %s295 = ssub.s32 %s15, 1
      // Predicated region
      $region13: #{spa_block_nchw.1} parent=11 // pred_check
        %p296 = pneg %p148
      $region14: #{spa_block_nchw.1} parent=11 // pred_check_branch
        %298 = sbr.rel (%p296) target = $region16
      $region15: #{spa_block_nchw.1} parent=11 // pred_region
        _
      $region16: #{spa_block_nchw.1} parent=11 // pred_fallthru
        _
      // Predicated region
      $region17: #{spa_block_nchw.1} parent=11 // pred_check
        %p299 = pneg %p169
      $region18: #{spa_block_nchw.1} parent=11 // pred_check_branch
        %301 = sbr.rel (%p299) target = $region20
      $region19: #{spa_block_nchw.1} parent=11 // pred_region
        _
      $region20: #{spa_block_nchw.1} parent=11 // pred_fallthru
        _
      // Predicated region
      $region21: #{spa_block_nchw.1} parent=11 // pred_check
        %p302 = pneg %p190
      $region22: #{spa_block_nchw.1} parent=11 // pred_check_branch
        %304 = sbr.rel (%p302) target = $region24
      $region23: #{spa_block_nchw.1} parent=11 // pred_region
        _
      $region24: #{spa_block_nchw.1} parent=11 // pred_fallthru
        _
      // Predicated region
      $region25: #{spa_block_nchw.1} parent=11 // pred_check
        %p305 = pneg %p211
      $region26: #{spa_block_nchw.1} parent=11 // pred_check_branch
        %307 = sbr.rel (%p305) target = $region28
      $region27: #{spa_block_nchw.1} parent=11 // pred_region
        _
      $region28: #{spa_block_nchw.1} parent=11 // pred_fallthru
        _
      // Predicated region
      $region29: #{spa_block_nchw.1} parent=11 // pred_check
        %p308 = pneg %p232
      $region30: #{spa_block_nchw.1} parent=11 // pred_check_branch
        %310 = sbr.rel (%p308) target = $region32
      $region31: #{spa_block_nchw.1} parent=11 // pred_region
        _
      $region32: #{spa_block_nchw.1} parent=11 // pred_fallthru
        _
      // Predicated region
      $region33: #{spa_block_nchw.1} parent=11 // pred_check
        %p311 = pneg %p253
      $region34: #{spa_block_nchw.1} parent=11 // pred_check_branch
        %313 = sbr.rel (%p311) target = $region36
      $region35: #{spa_block_nchw.1} parent=11 // pred_region
        _
      $region36: #{spa_block_nchw.1} parent=11 // pred_fallthru
        _
    $region12: #{spa_block_nchw.1} parent=5 // pred_fallthru
      _
    %p314 = scmp.lt.s32.totalorder %s15, 4
    // Predicated region
    $region37: #{spa_block_nchw.1} parent=5 // pred_check
      %p315 = pneg %p314
    $region38: #{spa_block_nchw.1} parent=5 // pred_check_branch
      %317 = sbr.rel (%p315) target = $region40
    $region39: #{spa_block_nchw.1} parent=5 // pred_region
      // Predicated region
      $region41: #{spa_block_nchw.1} parent=39 // pred_check
        %p318 = pneg %p49
      $region42: #{spa_block_nchw.1} parent=39 // pred_check_branch
        %320 = sbr.rel (%p318) target = $region44
      $region43: #{spa_block_nchw.1} parent=39 // pred_region
        %s321 = smul.u32 16, %s23
        %p322 = scmp.lt.s32.totalorder %s22, 1
        %s323 = scalar_select %p322, %s22, 1
        %p324 = scmp.lt.s32.totalorder %s321, 31
        %s325 = scalar_select %p324, %s321, 31
        %s326 = smul.addr %s323, 32
        %s327 = sadd.s32 %s325, %s326
        %s328 = smul.addr %s327, 8
        %s329 = scalar_lea.vmem %s0, %s328
        %s330 = smul.u32 16, %s23
      $region44: #{spa_block_nchw.1} parent=39 // pred_fallthru
        _
      // Predicated region
      $region45: #{spa_block_nchw.1} parent=39 // pred_check
        %p331 = pneg %p85
      $region46: #{spa_block_nchw.1} parent=39 // pred_check_branch
        %333 = sbr.rel (%p331) target = $region48
      $region47: #{spa_block_nchw.1} parent=39 // pred_region
        %s334 = smul.u32 %s23, 4
        %s335 = ssub.s32 %s334, 1
        %p336 = scmp.gt.s32.totalorder %s335, 0
        %s337 = scalar_select %p336, %s335, 0
        %s338 = smul.u32 4, %s337
        %p339 = scmp.lt.s32.totalorder %s22, 1
        %s340 = scalar_select %p339, %s22, 1
        %p341 = scmp.lt.s32.totalorder %s338, 31
        %s342 = scalar_select %p341, %s338, 31
        %s343 = smul.addr %s340, 32
        %s344 = sadd.s32 %s342, %s343
        %s345 = smul.addr %s344, 8
        %s346 = scalar_lea.vmem %s1, %s345
        %s347 = smul.u32 %s23, 4
        %s348 = ssub.s32 %s347, 1
        %p349 = scmp.gt.s32.totalorder %s348, 0
        %s350 = scalar_select %p349, %s348, 0
        %s351 = smul.u32 4, %s350
      $region48: #{spa_block_nchw.1} parent=39 // pred_fallthru
        _
      // Predicated region
      $region49: #{spa_block_nchw.1} parent=39 // pred_check
        %p352 = pneg %p121
      $region50: #{spa_block_nchw.1} parent=39 // pred_check_branch
        %354 = sbr.rel (%p352) target = $region52
      $region51: #{spa_block_nchw.1} parent=39 // pred_region
        %s355 = sadd.s32 %s23, 1
        %s356 = smul.u32 %s355, 4
        %p357 = scmp.lt.s32.totalorder %s356, 7
        %s358 = scalar_select %p357, %s356, 7
        %s359 = smul.u32 4, %s358
        %p360 = scmp.lt.s32.totalorder %s22, 1
        %s361 = scalar_select %p360, %s22, 1
        %p362 = scmp.lt.s32.totalorder %s359, 31
        %s363 = scalar_select %p362, %s359, 31
        %s364 = smul.addr %s361, 32
        %s365 = sadd.s32 %s363, %s364
        %s366 = smul.addr %s365, 8
        %s367 = scalar_lea.vmem %s2, %s366
        %s368 = sadd.s32 %s23, 1
        %s369 = smul.u32 %s368, 4
        %p370 = scmp.lt.s32.totalorder %s369, 7
        %s371 = scalar_select %p370, %s369, 7
        %s372 = smul.u32 4, %s371
      $region52: #{spa_block_nchw.1} parent=39 // pred_fallthru
        _
    $region40: #{spa_block_nchw.1} parent=5 // pred_fallthru
      _
    %p373 = scmp.le.s32.totalorder 1, %s15
    %p374 = scmp.lt.s32.totalorder %s15, 5
    %p375 = pnand %p373, %p374
    %p376 = pneg %p375
    // Predicated region
    $region53: #{spa_block_nchw.1} parent=5 // pred_check
      _
    $region54: #{spa_block_nchw.1} parent=5 // pred_check_branch
      %378 = sbr.rel (%p375) target = $region56
    $region55: #{spa_block_nchw.1} parent=5 // pred_region
      %s379 = ssub.s32 %s15, 1
      %s380 = smul.u32 16, %s25
      %p381 = scmp.lt.s32.totalorder %s24, 1
      %s382 = scalar_select %p381, %s24, 1
      %p383 = scmp.lt.s32.totalorder %s380, 31
      %s384 = scalar_select %p383, %s380, 31
      %s385 = smul.addr %s382, 32
      %s386 = sadd.s32 %s384, %s385
      %s387 = smul.addr %s386, 8
      %s388 = scalar_lea.vmem %s0, %s387
      %p389 = pneg %p55
      %p390 = pneg %p52
      %s391 = smul.u32 %s25, 4
      %s392 = ssub.s32 %s391, 1
      %p393 = scmp.gt.s32.totalorder %s392, 0
      %s394 = scalar_select %p393, %s392, 0
      %s395 = smul.u32 4, %s394
      %p396 = scmp.lt.s32.totalorder %s24, 1
      %s397 = scalar_select %p396, %s24, 1
      %p398 = scmp.lt.s32.totalorder %s395, 31
      %s399 = scalar_select %p398, %s395, 31
      %s400 = smul.addr %s397, 32
      %s401 = sadd.s32 %s399, %s400
      %s402 = smul.addr %s401, 8
      %s403 = scalar_lea.vmem %s1, %s402
      %p404 = pneg %p91
      %p405 = pneg %p88
      %s406 = sadd.s32 %s25, 1
      %s407 = smul.u32 %s406, 4
      %p408 = scmp.lt.s32.totalorder %s407, 7
      %s409 = scalar_select %p408, %s407, 7
      %s410 = smul.u32 4, %s409
      %p411 = scmp.lt.s32.totalorder %s24, 1
      %s412 = scalar_select %p411, %s24, 1
      %p413 = scmp.lt.s32.totalorder %s410, 31
      %s414 = scalar_select %p413, %s410, 31
      %s415 = smul.addr %s412, 32
      %s416 = sadd.s32 %s414, %s415
      %s417 = smul.addr %s416, 8
      %s418 = scalar_lea.vmem %s2, %s417
      %p419 = pneg %p127
      %p420 = pneg %p124
      %p421 = pneg %p148
      %p422 = pneg %p145
      %p423 = pneg %p169
      %p424 = pneg %p166
      %p425 = pneg %p190
      %p426 = pneg %p187
      %p427 = pneg %p211
      %p428 = pneg %p208
      %p429 = pneg %p232
      %p430 = pneg %p229
      %p431 = pneg %p253
      %p432 = pneg %p250
      %p433 = pneg %p281
      %p434 = pneg %p278
      %s435 = smul.u32 16, %s25
      %p436 = scmp.lt.s32.totalorder %s24, 1
      %s437 = scalar_select %p436, %s24, 1
      %p438 = scmp.lt.s32.totalorder %s435, 31
      %s439 = scalar_select %p438, %s435, 31
      %s440 = smul.addr %s437, 32
      %s441 = sadd.s32 %s439, %s440
      %s442 = smul.addr %s441, 8
      %s443 = scalar_lea.vmem %s9, %s442
      %s444 = smul.u32 16, %s25
      %p445 = scmp.lt.s32.totalorder %s24, 1
      %s446 = scalar_select %p445, %s24, 1
      %p447 = scmp.lt.s32.totalorder %s444, 31
      %s448 = scalar_select %p447, %s444, 31
      %s449 = smul.addr %s446, 32
      %s450 = sadd.s32 %s448, %s449
      %s451 = smul.addr %s450, 8
      %s452 = scalar_lea.vmem %s0, %s451
      %s453 = smul.u32 16, %s25
      %s454 = smul.u32 %s25, 4
      %s455 = ssub.s32 %s454, 1
      %p456 = scmp.gt.s32.totalorder %s455, 0
      %s457 = scalar_select %p456, %s455, 0
      %s458 = smul.u32 4, %s457
      %p459 = scmp.lt.s32.totalorder %s24, 1
      %s460 = scalar_select %p459, %s24, 1
      %p461 = scmp.lt.s32.totalorder %s458, 31
      %s462 = scalar_select %p461, %s458, 31
      %s463 = smul.addr %s460, 32
      %s464 = sadd.s32 %s462, %s463
      %s465 = smul.addr %s464, 8
      %s466 = scalar_lea.vmem %s1, %s465
      %s467 = smul.u32 %s25, 4
      %s468 = ssub.s32 %s467, 1
      %p469 = scmp.gt.s32.totalorder %s468, 0
      %s470 = scalar_select %p469, %s468, 0
      %s471 = smul.u32 4, %s470
      %s472 = sadd.s32 %s25, 1
      %s473 = smul.u32 %s472, 4
      %p474 = scmp.lt.s32.totalorder %s473, 7
      %s475 = scalar_select %p474, %s473, 7
      %s476 = smul.u32 4, %s475
      %p477 = scmp.lt.s32.totalorder %s24, 1
      %s478 = scalar_select %p477, %s24, 1
      %p479 = scmp.lt.s32.totalorder %s476, 31
      %s480 = scalar_select %p479, %s476, 31
      %s481 = smul.addr %s478, 32
      %s482 = sadd.s32 %s480, %s481
      %s483 = smul.addr %s482, 8
      %s484 = scalar_lea.vmem %s2, %s483
      %s485 = sadd.s32 %s25, 1
      %s486 = smul.u32 %s485, 4
      %p487 = scmp.lt.s32.totalorder %s486, 7
      %s488 = scalar_select %p487, %s486, 7
      %s489 = smul.u32 4, %s488
      %s490 = smul.u32 16, %s25
      %p491 = scmp.lt.s32.totalorder %s24, 1
      %s492 = scalar_select %p491, %s24, 1
      %p493 = scmp.lt.s32.totalorder %s490, 31
      %s494 = scalar_select %p493, %s490, 31
      %s495 = smul.addr %s492, 32
      %s496 = sadd.s32 %s494, %s495
      %s497 = smul.addr %s496, 8
      %s498 = scalar_lea.vmem %s9, %s497
      %s499 = smul.u32 16, %s25
      %500 = vst [vmem:[#allocation2] sm:$0xff] 0.0
      %501 = vst [vmem:[#allocation2 + $0xc8] sm:$0xff] 0.0
      %502 = vst [vmem:[#allocation3] sm:$0xff] 0.0
      %503 = vst [vmem:[#allocation3 + $0xa8] sm:$0xff] 0.0
      %v504 = vld [vmem:[%s466] sm:$0xff]
      %v505 = vld [vmem:[%s466 + $0x8] sm:$0xff]
      %v506 = vld [vmem:[%s466 + $0x10] sm:$0xff]
      %v507 = vld [vmem:[%s466 + $0x18] sm:$0xff]
      %p508 = scmp.gt.s32.totalorder %s25, 0
      %s509 = scalar_select %p508, 1, 0
      %s510 = scvt.s32.f32 %s509
      %v511 = vstv %s510
      %v512 = vmul.f32 %v504, %v511
      %v513 = vmul.f32 %v505, %v511
      %v514 = vmul.f32 %v506, %v511
      %v515 = vmul.f32 %v507, %v511
      %516 = vst [vmem:[#allocation2 + $0x8] sm:$0xff] %v512
      %517 = vst [vmem:[#allocation2 + $0x10] sm:$0xff] %v513
      %518 = vst [vmem:[#allocation2 + $0x18] sm:$0xff] %v514
      %519 = vst [vmem:[#allocation2 + $0x20] sm:$0xff] %v515
      %v520 = vld [vmem:[%s452] sm:$0xff]
      %v521 = vld [vmem:[%s452 + $0x8] sm:$0xff]
      %v522 = vld [vmem:[%s452 + $0x10] sm:$0xff]
      %v523 = vld [vmem:[%s452 + $0x18] sm:$0xff]
      %v524 = vld [vmem:[%s452 + $0x20] sm:$0xff]
      %v525 = vld [vmem:[%s452 + $0x28] sm:$0xff]
      %v526 = vld [vmem:[%s452 + $0x30] sm:$0xff]
      %v527 = vld [vmem:[%s452 + $0x38] sm:$0xff]
      %v528 = vld [vmem:[%s452 + $0x40] sm:$0xff]
      %v529 = vld [vmem:[%s452 + $0x48] sm:$0xff]
      %v530 = vld [vmem:[%s452 + $0x50] sm:$0xff]
      %v531 = vld [vmem:[%s452 + $0x58] sm:$0xff]
      %v532 = vld [vmem:[%s452 + $0x60] sm:$0xff]
      %v533 = vld [vmem:[%s452 + $0x68] sm:$0xff]
      %v534 = vld [vmem:[%s452 + $0x70] sm:$0xff]
      %v535 = vld [vmem:[%s452 + $0x78] sm:$0xff]
      %536 = vst [vmem:[#allocation2 + $0x28] sm:$0xff] %v520
      %537 = vst [vmem:[#allocation2 + $0x30] sm:$0xff] %v521
      %538 = vst [vmem:[#allocation2 + $0x38] sm:$0xff] %v522
      %539 = vst [vmem:[#allocation2 + $0x40] sm:$0xff] %v523
      %540 = vst [vmem:[#allocation2 + $0x48] sm:$0xff] %v524
      %541 = vst [vmem:[#allocation2 + $0x50] sm:$0xff] %v525
      %542 = vst [vmem:[#allocation2 + $0x58] sm:$0xff] %v526
      %543 = vst [vmem:[#allocation2 + $0x60] sm:$0xff] %v527
      %544 = vst [vmem:[#allocation2 + $0x68] sm:$0xff] %v528
      %545 = vst [vmem:[#allocation2 + $0x70] sm:$0xff] %v529
      %546 = vst [vmem:[#allocation2 + $0x78] sm:$0xff] %v530
      %547 = vst [vmem:[#allocation2 + $0x80] sm:$0xff] %v531
      %548 = vst [vmem:[#allocation2 + $0x88] sm:$0xff] %v532
      %549 = vst [vmem:[#allocation2 + $0x90] sm:$0xff] %v533
      %550 = vst [vmem:[#allocation2 + $0x98] sm:$0xff] %v534
      %551 = vst [vmem:[#allocation2 + $0xa0] sm:$0xff] %v535
      %v552 = vld [vmem:[%s484] sm:$0xff]
      %v553 = vld [vmem:[%s484 + $0x8] sm:$0xff]
      %v554 = vld [vmem:[%s484 + $0x10] sm:$0xff]
      %v555 = vld [vmem:[%s484 + $0x18] sm:$0xff]
      %p556 = scmp.lt.s32.totalorder %s25, 1
      %s557 = scalar_select %p556, 1, 0
      %s558 = scvt.s32.f32 %s557
      %v559 = vstv %s558
      %v560 = vmul.f32 %v552, %v559
      %v561 = vmul.f32 %v553, %v559
      %v562 = vmul.f32 %v554, %v559
      %v563 = vmul.f32 %v555, %v559
      %564 = vst [vmem:[#allocation2 + $0xa8] sm:$0xff] %v560
      %565 = vst [vmem:[#allocation2 + $0xb0] sm:$0xff] %v561
      %566 = vst [vmem:[#allocation2 + $0xb8] sm:$0xff] %v562
      %567 = vst [vmem:[#allocation2 + $0xc0] sm:$0xff] %v563
      %v568 = vld [vmem:[%s3] sm:$0xff]
      %v569 = vld [vmem:[%s3 + $0x8] sm:$0xff]
      %v570 = vld [vmem:[%s3 + $0x10] sm:$0xff]
      %v571 = vld [vmem:[%s3 + $0x18] sm:$0xff]
      %v572 = vld [vmem:[%s3 + $0x20] sm:$0xff]
      %v573 = vld [vmem:[%s3 + $0x28] sm:$0xff]
      %v574 = vld [vmem:[%s3 + $0x30] sm:$0xff]
      %v575 = vld [vmem:[%s3 + $0x38] sm:$0xff]
      %v576 = vld [vmem:[%s3 + $0x40] sm:$0xff]
      %v577 = vld [vmem:[%s3 + $0x48] sm:$0xff]
      %v578 = vld [vmem:[%s3 + $0x50] sm:$0xff]
      %v579 = vld [vmem:[%s3 + $0x58] sm:$0xff]
      %v580 = vld [vmem:[%s3 + $0x60] sm:$0xff]
      %v581 = vld [vmem:[%s3 + $0x68] sm:$0xff]
      %v582 = vld [vmem:[%s3 + $0x70] sm:$0xff]
      %v583 = vld [vmem:[%s3 + $0x78] sm:$0xff]
      %v584 = vld [vmem:[%s3 + $0x80] sm:$0xff]
      %v585 = vld [vmem:[%s3 + $0x88] sm:$0xff]
      %v586 = vld [vmem:[%s3 + $0x90] sm:$0xff]
      %v587 = vld [vmem:[%s3 + $0x98] sm:$0xff]
      %v588 = vld [vmem:[%s4] sm:$0xff]
      %v589 = vld [vmem:[%s4 + $0x8] sm:$0xff]
      %v590 = vld [vmem:[%s4 + $0x10] sm:$0xff]
      %v591 = vld [vmem:[%s4 + $0x18] sm:$0xff]
      %v592 = vld [vmem:[%s4 + $0x20] sm:$0xff]
      %v593 = vld [vmem:[%s4 + $0x28] sm:$0xff]
      %v594 = vld [vmem:[%s4 + $0x30] sm:$0xff]
      %v595 = vld [vmem:[%s4 + $0x38] sm:$0xff]
      %v596 = vld [vmem:[%s4 + $0x40] sm:$0xff]
      %v597 = vld [vmem:[%s4 + $0x48] sm:$0xff]
      %v598 = vld [vmem:[%s4 + $0x50] sm:$0xff]
      %v599 = vld [vmem:[%s4 + $0x58] sm:$0xff]
      %v600 = vld [vmem:[%s4 + $0x60] sm:$0xff]
      %v601 = vld [vmem:[%s4 + $0x68] sm:$0xff]
      %v602 = vld [vmem:[%s4 + $0x70] sm:$0xff]
      %v603 = vld [vmem:[%s4 + $0x78] sm:$0xff]
      %v604 = vld [vmem:[%s4 + $0x80] sm:$0xff]
      %v605 = vld [vmem:[%s4 + $0x88] sm:$0xff]
      %v606 = vld [vmem:[%s4 + $0x90] sm:$0xff]
      %v607 = vld [vmem:[%s4 + $0x98] sm:$0xff]
      %v608 = vld [vmem:[#allocation2 + $0x7] sm:$0xff]
      %v609 = vld [vmem:[#allocation2 + $0xf] sm:$0xff]
      %v610 = vld [vmem:[#allocation2 + $0x17] sm:$0xff]
      %v611 = vld [vmem:[#allocation2 + $0x1f] sm:$0xff]
      %v612 = vld [vmem:[#allocation2 + $0x27] sm:$0xff]
      %v613 = vld [vmem:[#allocation2 + $0x2f] sm:$0xff]
      %v614 = vld [vmem:[#allocation2 + $0x37] sm:$0xff]
      %v615 = vld [vmem:[#allocation2 + $0x3f] sm:$0xff]
      %v616 = vld [vmem:[#allocation2 + $0x47] sm:$0xff]
      %v617 = vld [vmem:[#allocation2 + $0x4f] sm:$0xff]
      %v618 = vld [vmem:[#allocation2 + $0x57] sm:$0xff]
      %v619 = vld [vmem:[#allocation2 + $0x5f] sm:$0xff]
      %v620 = vld [vmem:[#allocation2 + $0x67] sm:$0xff]
      %v621 = vld [vmem:[#allocation2 + $0x6f] sm:$0xff]
      %v622 = vld [vmem:[#allocation2 + $0x77] sm:$0xff]
      %v623 = vld [vmem:[#allocation2 + $0x7f] sm:$0xff]
      %v624 = vld [vmem:[#allocation2 + $0x87] sm:$0xff]
      %v625 = vld [vmem:[#allocation2 + $0x8f] sm:$0xff]
      %v626 = vld [vmem:[#allocation2 + $0x97] sm:$0xff]
      %v627 = vld [vmem:[#allocation2 + $0x9f] sm:$0xff]
      %629 = vset.pattern.permute.xlu0 0
      %630 = vperm.xlu0 %629, %v568
      %v631 = vpop.permute.xlu0 %630
      %634 = vset.pattern.permute.xlu0 0
      %635 = vperm.xlu0 %634, %v569
      %v636 = vpop.permute.xlu0 %635
      %639 = vset.pattern.permute.xlu0 0
      %640 = vperm.xlu0 %639, %v570
      %v641 = vpop.permute.xlu0 %640
      %644 = vset.pattern.permute.xlu0 0
      %645 = vperm.xlu0 %644, %v571
      %v646 = vpop.permute.xlu0 %645
      %649 = vset.pattern.permute.xlu0 0
      %650 = vperm.xlu0 %649, %v572
      %v651 = vpop.permute.xlu0 %650
      %654 = vset.pattern.permute.xlu0 0
      %655 = vperm.xlu0 %654, %v573
      %v656 = vpop.permute.xlu0 %655
      %659 = vset.pattern.permute.xlu0 0
      %660 = vperm.xlu0 %659, %v574
      %v661 = vpop.permute.xlu0 %660
      %664 = vset.pattern.permute.xlu0 0
      %665 = vperm.xlu0 %664, %v575
      %v666 = vpop.permute.xlu0 %665
      %669 = vset.pattern.permute.xlu0 0
      %670 = vperm.xlu0 %669, %v576
      %v671 = vpop.permute.xlu0 %670
      %674 = vset.pattern.permute.xlu0 0
      %675 = vperm.xlu0 %674, %v577
      %v676 = vpop.permute.xlu0 %675
      %679 = vset.pattern.permute.xlu0 0
      %680 = vperm.xlu0 %679, %v578
      %v681 = vpop.permute.xlu0 %680
      %684 = vset.pattern.permute.xlu0 0
      %685 = vperm.xlu0 %684, %v579
      %v686 = vpop.permute.xlu0 %685
      %689 = vset.pattern.permute.xlu0 0
      %690 = vperm.xlu0 %689, %v580
      %v691 = vpop.permute.xlu0 %690
      %694 = vset.pattern.permute.xlu0 0
      %695 = vperm.xlu0 %694, %v581
      %v696 = vpop.permute.xlu0 %695
      %699 = vset.pattern.permute.xlu0 0
      %700 = vperm.xlu0 %699, %v582
      %v701 = vpop.permute.xlu0 %700
      %704 = vset.pattern.permute.xlu0 0
      %705 = vperm.xlu0 %704, %v583
      %v706 = vpop.permute.xlu0 %705
      %709 = vset.pattern.permute.xlu0 0
      %710 = vperm.xlu0 %709, %v584
      %v711 = vpop.permute.xlu0 %710
      %714 = vset.pattern.permute.xlu0 0
      %715 = vperm.xlu0 %714, %v585
      %v716 = vpop.permute.xlu0 %715
      %719 = vset.pattern.permute.xlu0 0
      %720 = vperm.xlu0 %719, %v586
      %v721 = vpop.permute.xlu0 %720
      %724 = vset.pattern.permute.xlu0 0
      %725 = vperm.xlu0 %724, %v587
      %v726 = vpop.permute.xlu0 %725
      %v728 = vmul.f32 %v608, %v631
      %v729 = vmul.f32 %v609, %v636
      %v730 = vmul.f32 %v610, %v641
      %v731 = vmul.f32 %v611, %v646
      %v732 = vmul.f32 %v612, %v651
      %v733 = vmul.f32 %v613, %v656
      %v734 = vmul.f32 %v614, %v661
      %v735 = vmul.f32 %v615, %v666
      %v736 = vmul.f32 %v616, %v671
      %v737 = vmul.f32 %v617, %v676
      %v738 = vmul.f32 %v618, %v681
      %v739 = vmul.f32 %v619, %v686
      %v740 = vmul.f32 %v620, %v691
      %v741 = vmul.f32 %v621, %v696
      %v742 = vmul.f32 %v622, %v701
      %v743 = vmul.f32 %v623, %v706
      %v744 = vmul.f32 %v624, %v711
      %v745 = vmul.f32 %v625, %v716
      %v746 = vmul.f32 %v626, %v721
      %v747 = vmul.f32 %v627, %v726
      %v748 = vld [vmem:[#allocation2 + $0x8] sm:$0xff]
      %v749 = vld [vmem:[#allocation2 + $0x10] sm:$0xff]
      %v750 = vld [vmem:[#allocation2 + $0x18] sm:$0xff]
      %v751 = vld [vmem:[#allocation2 + $0x20] sm:$0xff]
      %v752 = vld [vmem:[#allocation2 + $0x28] sm:$0xff]
      %v753 = vld [vmem:[#allocation2 + $0x30] sm:$0xff]
      %v754 = vld [vmem:[#allocation2 + $0x38] sm:$0xff]
      %v755 = vld [vmem:[#allocation2 + $0x40] sm:$0xff]
      %v756 = vld [vmem:[#allocation2 + $0x48] sm:$0xff]
      %v757 = vld [vmem:[#allocation2 + $0x50] sm:$0xff]
      %v758 = vld [vmem:[#allocation2 + $0x58] sm:$0xff]
      %v759 = vld [vmem:[#allocation2 + $0x60] sm:$0xff]
      %v760 = vld [vmem:[#allocation2 + $0x68] sm:$0xff]
      %v761 = vld [vmem:[#allocation2 + $0x70] sm:$0xff]
      %v762 = vld [vmem:[#allocation2 + $0x78] sm:$0xff]
      %v763 = vld [vmem:[#allocation2 + $0x80] sm:$0xff]
      %v764 = vld [vmem:[#allocation2 + $0x88] sm:$0xff]
      %v765 = vld [vmem:[#allocation2 + $0x90] sm:$0xff]
      %v766 = vld [vmem:[#allocation2 + $0x98] sm:$0xff]
      %v767 = vld [vmem:[#allocation2 + $0xa0] sm:$0xff]
      %v768 = vld [vmem:[#allocation2 + $0x9] sm:$0xff]
      %v769 = vld [vmem:[#allocation2 + $0x11] sm:$0xff]
      %v770 = vld [vmem:[#allocation2 + $0x19] sm:$0xff]
      %v771 = vld [vmem:[#allocation2 + $0x21] sm:$0xff]
      %v772 = vld [vmem:[#allocation2 + $0x29] sm:$0xff]
      %v773 = vld [vmem:[#allocation2 + $0x31] sm:$0xff]
      %v774 = vld [vmem:[#allocation2 + $0x39] sm:$0xff]
      %v775 = vld [vmem:[#allocation2 + $0x41] sm:$0xff]
      %v776 = vld [vmem:[#allocation2 + $0x49] sm:$0xff]
      %v777 = vld [vmem:[#allocation2 + $0x51] sm:$0xff]
      %v778 = vld [vmem:[#allocation2 + $0x59] sm:$0xff]
      %v779 = vld [vmem:[#allocation2 + $0x61] sm:$0xff]
      %v780 = vld [vmem:[#allocation2 + $0x69] sm:$0xff]
      %v781 = vld [vmem:[#allocation2 + $0x71] sm:$0xff]
      %v782 = vld [vmem:[#allocation2 + $0x79] sm:$0xff]
      %v783 = vld [vmem:[#allocation2 + $0x81] sm:$0xff]
      %v784 = vld [vmem:[#allocation2 + $0x89] sm:$0xff]
      %v785 = vld [vmem:[#allocation2 + $0x91] sm:$0xff]
      %v786 = vld [vmem:[#allocation2 + $0x99] sm:$0xff]
      %v787 = vld [vmem:[#allocation2 + $0xa1] sm:$0xff]
      %789 = vset.pattern.permute.xlu0 0
      %790 = vperm.xlu0 %789, %v588
      %v791 = vpop.permute.xlu0 %790
      %794 = vset.pattern.permute.xlu0 0
      %795 = vperm.xlu0 %794, %v589
      %v796 = vpop.permute.xlu0 %795
      %799 = vset.pattern.permute.xlu0 0
      %800 = vperm.xlu0 %799, %v590
      %v801 = vpop.permute.xlu0 %800
      %804 = vset.pattern.permute.xlu0 0
      %805 = vperm.xlu0 %804, %v591
      %v806 = vpop.permute.xlu0 %805
      %809 = vset.pattern.permute.xlu0 0
      %810 = vperm.xlu0 %809, %v592
      %v811 = vpop.permute.xlu0 %810
      %814 = vset.pattern.permute.xlu0 0
      %815 = vperm.xlu0 %814, %v593
      %v816 = vpop.permute.xlu0 %815
      %819 = vset.pattern.permute.xlu0 0
      %820 = vperm.xlu0 %819, %v594
      %v821 = vpop.permute.xlu0 %820
      %824 = vset.pattern.permute.xlu0 0
      %825 = vperm.xlu0 %824, %v595
      %v826 = vpop.permute.xlu0 %825
      %829 = vset.pattern.permute.xlu0 0
      %830 = vperm.xlu0 %829, %v596
      %v831 = vpop.permute.xlu0 %830
      %834 = vset.pattern.permute.xlu0 0
      %835 = vperm.xlu0 %834, %v597
      %v836 = vpop.permute.xlu0 %835
      %839 = vset.pattern.permute.xlu0 0
      %840 = vperm.xlu0 %839, %v598
      %v841 = vpop.permute.xlu0 %840
      %844 = vset.pattern.permute.xlu0 0
      %845 = vperm.xlu0 %844, %v599
      %v846 = vpop.permute.xlu0 %845
      %849 = vset.pattern.permute.xlu0 0
      %850 = vperm.xlu0 %849, %v600
      %v851 = vpop.permute.xlu0 %850
      %854 = vset.pattern.permute.xlu0 0
      %855 = vperm.xlu0 %854, %v601
      %v856 = vpop.permute.xlu0 %855
      %859 = vset.pattern.permute.xlu0 0
      %860 = vperm.xlu0 %859, %v602
      %v861 = vpop.permute.xlu0 %860
      %864 = vset.pattern.permute.xlu0 0
      %865 = vperm.xlu0 %864, %v603
      %v866 = vpop.permute.xlu0 %865
      %869 = vset.pattern.permute.xlu0 0
      %870 = vperm.xlu0 %869, %v604
      %v871 = vpop.permute.xlu0 %870
      %874 = vset.pattern.permute.xlu0 0
      %875 = vperm.xlu0 %874, %v605
      %v876 = vpop.permute.xlu0 %875
      %879 = vset.pattern.permute.xlu0 0
      %880 = vperm.xlu0 %879, %v606
      %v881 = vpop.permute.xlu0 %880
      %884 = vset.pattern.permute.xlu0 0
      %885 = vperm.xlu0 %884, %v607
      %v886 = vpop.permute.xlu0 %885
      %v888 = vmul.f32 %v768, %v791
      %v889 = vmul.f32 %v769, %v796
      %v890 = vmul.f32 %v770, %v801
      %v891 = vmul.f32 %v771, %v806
      %v892 = vmul.f32 %v772, %v811
      %v893 = vmul.f32 %v773, %v816
      %v894 = vmul.f32 %v774, %v821
      %v895 = vmul.f32 %v775, %v826
      %v896 = vmul.f32 %v776, %v831
      %v897 = vmul.f32 %v777, %v836
      %v898 = vmul.f32 %v778, %v841
      %v899 = vmul.f32 %v779, %v846
      %v900 = vmul.f32 %v780, %v851
      %v901 = vmul.f32 %v781, %v856
      %v902 = vmul.f32 %v782, %v861
      %v903 = vmul.f32 %v783, %v866
      %v904 = vmul.f32 %v784, %v871
      %v905 = vmul.f32 %v785, %v876
      %v906 = vmul.f32 %v786, %v881
      %v907 = vmul.f32 %v787, %v886
      %v908 = vpack.c.bf16 %v729, %v728
      %v909 = vpack.c.bf16 %v731, %v730
      %v910 = vpack.c.bf16 %v733, %v732
      %v911 = vpack.c.bf16 %v735, %v734
      %v912 = vpack.c.bf16 %v737, %v736
      %v913 = vpack.c.bf16 %v739, %v738
      %v914 = vpack.c.bf16 %v741, %v740
      %v915 = vpack.c.bf16 %v743, %v742
      %v916 = vpack.c.bf16 %v745, %v744
      %v917 = vpack.c.bf16 %v747, %v746
      %v918 = vld [vmem:[%s5] sm:$0xf]
      %v919 = vld [vmem:[%s5 + $0x4] sm:$0xf]
      %v920 = vld [vmem:[%s5 + $0x8] sm:$0xf]
      %v921 = vld [vmem:[%s5 + $0xc] sm:$0xf]
      %v922 = vld [vmem:[%s5 + $0x10] sm:$0xf]
      %v923 = vld [vmem:[%s5 + $0x14] sm:$0xf]
      %v924 = vld [vmem:[%s5 + $0x18] sm:$0xf]
      %v925 = vld [vmem:[%s5 + $0x1c] sm:$0xf]
      %v926 = vld [vmem:[%s5 + $0x20] sm:$0xf]
      %v927 = vld [vmem:[%s5 + $0x24] sm:$0xf]
      %v928 = vld [vmem:[%s5 + $0x28] sm:$0xf]
      %v929 = vld [vmem:[%s5 + $0x2c] sm:$0xf]
      %v930 = vld [vmem:[%s5 + $0x30] sm:$0xf]
      %v931 = vld [vmem:[%s5 + $0x34] sm:$0xf]
      %v932 = vld [vmem:[%s5 + $0x38] sm:$0xf]
      %v933 = vld [vmem:[%s5 + $0x3c] sm:$0xf]
      %v934 = vpack.c.bf16 %v749, %v748
      %v935 = vpack.c.bf16 %v751, %v750
      %v936 = vpack.c.bf16 %v753, %v752
      %v937 = vpack.c.bf16 %v755, %v754
      %v938 = vpack.c.bf16 %v757, %v756
      %v939 = vpack.c.bf16 %v759, %v758
      %v940 = vpack.c.bf16 %v761, %v760
      %v941 = vpack.c.bf16 %v763, %v762
      %v942 = vpack.c.bf16 %v765, %v764
      %v943 = vpack.c.bf16 %v767, %v766
      %s944 = scalar_lea.vmem %s5, 64
      %v945 = vld [vmem:[%s944] sm:$0xf]
      %v946 = vld [vmem:[%s944 + $0x4] sm:$0xf]
      %v947 = vld [vmem:[%s944 + $0x8] sm:$0xf]
      %v948 = vld [vmem:[%s944 + $0xc] sm:$0xf]
      %v949 = vld [vmem:[%s944 + $0x10] sm:$0xf]
      %v950 = vld [vmem:[%s944 + $0x14] sm:$0xf]
      %v951 = vld [vmem:[%s944 + $0x18] sm:$0xf]
      %v952 = vld [vmem:[%s944 + $0x1c] sm:$0xf]
      %v953 = vld [vmem:[%s944 + $0x20] sm:$0xf]
      %v954 = vld [vmem:[%s944 + $0x24] sm:$0xf]
      %v955 = vld [vmem:[%s944 + $0x28] sm:$0xf]
      %v956 = vld [vmem:[%s944 + $0x2c] sm:$0xf]
      %v957 = vld [vmem:[%s944 + $0x30] sm:$0xf]
      %v958 = vld [vmem:[%s944 + $0x34] sm:$0xf]
      %v959 = vld [vmem:[%s944 + $0x38] sm:$0xf]
      %v960 = vld [vmem:[%s944 + $0x3c] sm:$0xf]
      %v977 = vunpack.c.l.b16 %v945
      %v978 = vunpack.c.l.b16 %v946
      %v979 = vunpack.c.l.b16 %v947
      %v980 = vunpack.c.l.b16 %v948
      %v981 = vunpack.c.l.b16 %v949
      %v982 = vunpack.c.l.b16 %v950
      %v983 = vunpack.c.l.b16 %v951
      %v984 = vunpack.c.l.b16 %v952
      %v985 = vunpack.c.l.b16 %v953
      %v986 = vunpack.c.l.b16 %v954
      %v987 = vunpack.c.l.b16 %v955
      %v988 = vunpack.c.l.b16 %v956
      %v989 = vunpack.c.l.b16 %v957
      %v990 = vunpack.c.l.b16 %v958
      %v991 = vunpack.c.l.b16 %v959
      %v992 = vunpack.c.l.b16 %v960
      %v993 = vpack.c.b16 %v978, %v977
      %v994 = vpack.c.b16 %v980, %v979
      %v995 = vpack.c.b16 %v982, %v981
      %v996 = vpack.c.b16 %v984, %v983
      %v997 = vpack.c.b16 %v986, %v985
      %v998 = vpack.c.b16 %v988, %v987
      %v999 = vpack.c.b16 %v990, %v989
      %v1000 = vpack.c.b16 %v992, %v991
      %1009 = vmatpush.bf16.msra.mxu0 %v1000
      %1010 = vmatpush.bf16.msra.mxu0 %v999
      %1011 = vmatpush.bf16.msra.mxu0 %v998
      %1012 = vmatpush.bf16.msra.mxu0 %v997
      %1013 = vmatpush.bf16.msra.mxu0 %v996
      %1014 = vmatpush.bf16.msra.mxu0 %v995
      %1015 = vmatpush.bf16.msra.mxu0 %v994
      %1016 = vmatpush.bf16.msra.mxu0 %v993
      %1017 = vmatmul.bf16.gmra.mxu0 %v934
      %v1018 = vpop.f32.mrf.mxu0
      %v1019 = vadd.f32 0.0, %v1018
      %v1020 = vpop.f32.mrf.mxu0
      %v1021 = vadd.f32 0.0, %v1020
      %1022 = vmatmul.bf16.gmra.mxu0 %v935
      %v1023 = vpop.f32.mrf.mxu0
      %v1024 = vadd.f32 0.0, %v1023
      %v1025 = vpop.f32.mrf.mxu0
      %v1026 = vadd.f32 0.0, %v1025
      %1027 = vmatmul.bf16.gmra.mxu0 %v936
      %v1028 = vpop.f32.mrf.mxu0
      %v1029 = vadd.f32 0.0, %v1028
      %v1030 = vpop.f32.mrf.mxu0
      %v1031 = vadd.f32 0.0, %v1030
      %1032 = vmatmul.bf16.gmra.mxu0 %v937
      %v1033 = vpop.f32.mrf.mxu0
      %v1034 = vadd.f32 0.0, %v1033
      %v1035 = vpop.f32.mrf.mxu0
      %v1036 = vadd.f32 0.0, %v1035
      %1037 = vmatmul.bf16.gmra.mxu0 %v938
      %v1038 = vpop.f32.mrf.mxu0
      %v1039 = vadd.f32 0.0, %v1038
      %v1040 = vpop.f32.mrf.mxu0
      %v1041 = vadd.f32 0.0, %v1040
      %1042 = vmatmul.bf16.gmra.mxu0 %v939
      %v1043 = vpop.f32.mrf.mxu0
      %v1044 = vadd.f32 0.0, %v1043
      %v1045 = vpop.f32.mrf.mxu0
      %v1046 = vadd.f32 0.0, %v1045
      %1047 = vmatmul.bf16.gmra.mxu0 %v940
      %v1048 = vpop.f32.mrf.mxu0
      %v1049 = vadd.f32 0.0, %v1048
      %v1050 = vpop.f32.mrf.mxu0
      %v1051 = vadd.f32 0.0, %v1050
      %1052 = vmatmul.bf16.gmra.mxu0 %v941
      %v1053 = vpop.f32.mrf.mxu0
      %v1054 = vadd.f32 0.0, %v1053
      %v1055 = vpop.f32.mrf.mxu0
      %v1056 = vadd.f32 0.0, %v1055
      %1057 = vmatmul.bf16.gmra.mxu0 %v942
      %v1058 = vpop.f32.mrf.mxu0
      %v1059 = vadd.f32 0.0, %v1058
      %v1060 = vpop.f32.mrf.mxu0
      %v1061 = vadd.f32 0.0, %v1060
      %1062 = vmatmul.bf16.gmra.mxu0 %v943
      %v1063 = vpop.f32.mrf.mxu0
      %v1064 = vadd.f32 0.0, %v1063
      %v1065 = vpop.f32.mrf.mxu0
      %v1066 = vadd.f32 0.0, %v1065
      %1067 = vdwg.mxu0
      %v1084 = vunpack.c.l.b16 %v918
      %v1085 = vunpack.c.l.b16 %v919
      %v1086 = vunpack.c.l.b16 %v920
      %v1087 = vunpack.c.l.b16 %v921
      %v1088 = vunpack.c.l.b16 %v922
      %v1089 = vunpack.c.l.b16 %v923
      %v1090 = vunpack.c.l.b16 %v924
      %v1091 = vunpack.c.l.b16 %v925
      %v1092 = vunpack.c.l.b16 %v926
      %v1093 = vunpack.c.l.b16 %v927
      %v1094 = vunpack.c.l.b16 %v928
      %v1095 = vunpack.c.l.b16 %v929
      %v1096 = vunpack.c.l.b16 %v930
      %v1097 = vunpack.c.l.b16 %v931
      %v1098 = vunpack.c.l.b16 %v932
      %v1099 = vunpack.c.l.b16 %v933
      %v1100 = vpack.c.b16 %v1085, %v1084
      %v1101 = vpack.c.b16 %v1087, %v1086
      %v1102 = vpack.c.b16 %v1089, %v1088
      %v1103 = vpack.c.b16 %v1091, %v1090
      %v1104 = vpack.c.b16 %v1093, %v1092
      %v1105 = vpack.c.b16 %v1095, %v1094
      %v1106 = vpack.c.b16 %v1097, %v1096
      %v1107 = vpack.c.b16 %v1099, %v1098
      %1116 = vmatpush.bf16.msra.mxu0 %v1107
      %1117 = vmatpush.bf16.msra.mxu0 %v1106
      %1118 = vmatpush.bf16.msra.mxu0 %v1105
      %1119 = vmatpush.bf16.msra.mxu0 %v1104
      %1120 = vmatpush.bf16.msra.mxu0 %v1103
      %1121 = vmatpush.bf16.msra.mxu0 %v1102
      %1122 = vmatpush.bf16.msra.mxu0 %v1101
      %1123 = vmatpush.bf16.msra.mxu0 %v1100
      %1124 = vmatmul.bf16.gmra.mxu0 %v908
      %v1125 = vpop.f32.mrf.mxu0
      %v1126 = vadd.f32 %v1019, %v1125
      %v1127 = vpop.f32.mrf.mxu0
      %v1128 = vadd.f32 %v1021, %v1127
      %1129 = vmatmul.bf16.gmra.mxu0 %v909
      %v1130 = vpop.f32.mrf.mxu0
      %v1131 = vadd.f32 %v1024, %v1130
      %v1132 = vpop.f32.mrf.mxu0
      %v1133 = vadd.f32 %v1026, %v1132
      %1134 = vmatmul.bf16.gmra.mxu0 %v910
      %v1135 = vpop.f32.mrf.mxu0
      %v1136 = vadd.f32 %v1029, %v1135
      %v1137 = vpop.f32.mrf.mxu0
      %v1138 = vadd.f32 %v1031, %v1137
      %1139 = vmatmul.bf16.gmra.mxu0 %v911
      %v1140 = vpop.f32.mrf.mxu0
      %v1141 = vadd.f32 %v1034, %v1140
      %v1142 = vpop.f32.mrf.mxu0
      %v1143 = vadd.f32 %v1036, %v1142
      %1144 = vmatmul.bf16.gmra.mxu0 %v912
      %v1145 = vpop.f32.mrf.mxu0
      %v1146 = vadd.f32 %v1039, %v1145
      %v1147 = vpop.f32.mrf.mxu0
      %v1148 = vadd.f32 %v1041, %v1147
      %1149 = vmatmul.bf16.gmra.mxu0 %v913
      %v1150 = vpop.f32.mrf.mxu0
      %v1151 = vadd.f32 %v1044, %v1150
      %v1152 = vpop.f32.mrf.mxu0
      %v1153 = vadd.f32 %v1046, %v1152
      %1154 = vmatmul.bf16.gmra.mxu0 %v914
      %v1155 = vpop.f32.mrf.mxu0
      %v1156 = vadd.f32 %v1049, %v1155
      %v1157 = vpop.f32.mrf.mxu0
      %v1158 = vadd.f32 %v1051, %v1157
      %1159 = vmatmul.bf16.gmra.mxu0 %v915
      %v1160 = vpop.f32.mrf.mxu0
      %v1161 = vadd.f32 %v1054, %v1160
      %v1162 = vpop.f32.mrf.mxu0
      %v1163 = vadd.f32 %v1056, %v1162
      %1164 = vmatmul.bf16.gmra.mxu0 %v916
      %v1165 = vpop.f32.mrf.mxu0
      %v1166 = vadd.f32 %v1059, %v1165
      %v1167 = vpop.f32.mrf.mxu0
      %v1168 = vadd.f32 %v1061, %v1167
      %1169 = vmatmul.bf16.gmra.mxu0 %v917
      %v1170 = vpop.f32.mrf.mxu0
      %v1171 = vadd.f32 %v1064, %v1170
      %v1172 = vpop.f32.mrf.mxu0
      %v1173 = vadd.f32 %v1066, %v1172
      %1174 = vdwg.mxu0
      %v1175 = vpack.c.bf16 %v889, %v888
      %v1176 = vpack.c.bf16 %v891, %v890
      %v1177 = vpack.c.bf16 %v893, %v892
      %v1178 = vpack.c.bf16 %v895, %v894
      %v1179 = vpack.c.bf16 %v897, %v896
      %v1180 = vpack.c.bf16 %v899, %v898
      %v1181 = vpack.c.bf16 %v901, %v900
      %v1182 = vpack.c.bf16 %v903, %v902
      %v1183 = vpack.c.bf16 %v905, %v904
      %v1184 = vpack.c.bf16 %v907, %v906
      %s1185 = scalar_lea.vmem %s5, 128
      %v1186 = vld [vmem:[%s1185] sm:$0xf]
      %v1187 = vld [vmem:[%s1185 + $0x4] sm:$0xf]
      %v1188 = vld [vmem:[%s1185 + $0x8] sm:$0xf]
      %v1189 = vld [vmem:[%s1185 + $0xc] sm:$0xf]
      %v1190 = vld [vmem:[%s1185 + $0x10] sm:$0xf]
      %v1191 = vld [vmem:[%s1185 + $0x14] sm:$0xf]
      %v1192 = vld [vmem:[%s1185 + $0x18] sm:$0xf]
      %v1193 = vld [vmem:[%s1185 + $0x1c] sm:$0xf]
      %v1194 = vld [vmem:[%s1185 + $0x20] sm:$0xf]
      %v1195 = vld [vmem:[%s1185 + $0x24] sm:$0xf]
      %v1196 = vld [vmem:[%s1185 + $0x28] sm:$0xf]
      %v1197 = vld [vmem:[%s1185 + $0x2c] sm:$0xf]
      %v1198 = vld [vmem:[%s1185 + $0x30] sm:$0xf]
      %v1199 = vld [vmem:[%s1185 + $0x34] sm:$0xf]
      %v1200 = vld [vmem:[%s1185 + $0x38] sm:$0xf]
      %v1201 = vld [vmem:[%s1185 + $0x3c] sm:$0xf]
      %v1218 = vunpack.c.l.b16 %v1186
      %v1219 = vunpack.c.l.b16 %v1187
      %v1220 = vunpack.c.l.b16 %v1188
      %v1221 = vunpack.c.l.b16 %v1189
      %v1222 = vunpack.c.l.b16 %v1190
      %v1223 = vunpack.c.l.b16 %v1191
      %v1224 = vunpack.c.l.b16 %v1192
      %v1225 = vunpack.c.l.b16 %v1193
      %v1226 = vunpack.c.l.b16 %v1194
      %v1227 = vunpack.c.l.b16 %v1195
      %v1228 = vunpack.c.l.b16 %v1196
      %v1229 = vunpack.c.l.b16 %v1197
      %v1230 = vunpack.c.l.b16 %v1198
      %v1231 = vunpack.c.l.b16 %v1199
      %v1232 = vunpack.c.l.b16 %v1200
      %v1233 = vunpack.c.l.b16 %v1201
      %v1234 = vpack.c.b16 %v1219, %v1218
      %v1235 = vpack.c.b16 %v1221, %v1220
      %v1236 = vpack.c.b16 %v1223, %v1222
      %v1237 = vpack.c.b16 %v1225, %v1224
      %v1238 = vpack.c.b16 %v1227, %v1226
      %v1239 = vpack.c.b16 %v1229, %v1228
      %v1240 = vpack.c.b16 %v1231, %v1230
      %v1241 = vpack.c.b16 %v1233, %v1232
      %1250 = vmatpush.bf16.msra.mxu0 %v1241
      %1251 = vmatpush.bf16.msra.mxu0 %v1240
      %1252 = vmatpush.bf16.msra.mxu0 %v1239
      %1253 = vmatpush.bf16.msra.mxu0 %v1238
      %1254 = vmatpush.bf16.msra.mxu0 %v1237
      %1255 = vmatpush.bf16.msra.mxu0 %v1236
      %1256 = vmatpush.bf16.msra.mxu0 %v1235
      %1257 = vmatpush.bf16.msra.mxu0 %v1234
      %1258 = vmatmul.bf16.gmra.mxu0 %v1175
      %v1259 = vpop.f32.mrf.mxu0
      %v1260 = vadd.f32 0.0, %v1259
      %v1261 = vpop.f32.mrf.mxu0
      %v1262 = vadd.f32 0.0, %v1261
      %1263 = vmatmul.bf16.gmra.mxu0 %v1176
      %v1264 = vpop.f32.mrf.mxu0
      %v1265 = vadd.f32 0.0, %v1264
      %v1266 = vpop.f32.mrf.mxu0
      %v1267 = vadd.f32 0.0, %v1266
      %1268 = vmatmul.bf16.gmra.mxu0 %v1177
      %v1269 = vpop.f32.mrf.mxu0
      %v1270 = vadd.f32 0.0, %v1269
      %v1271 = vpop.f32.mrf.mxu0
      %v1272 = vadd.f32 0.0, %v1271
      %1273 = vmatmul.bf16.gmra.mxu0 %v1178
      %v1274 = vpop.f32.mrf.mxu0
      %v1275 = vadd.f32 0.0, %v1274
      %v1276 = vpop.f32.mrf.mxu0
      %v1277 = vadd.f32 0.0, %v1276
      %1278 = vmatmul.bf16.gmra.mxu0 %v1179
      %v1279 = vpop.f32.mrf.mxu0
      %v1280 = vadd.f32 0.0, %v1279
      %v1281 = vpop.f32.mrf.mxu0
      %v1282 = vadd.f32 0.0, %v1281
      %1283 = vmatmul.bf16.gmra.mxu0 %v1180
      %v1284 = vpop.f32.mrf.mxu0
      %v1285 = vadd.f32 0.0, %v1284
      %v1286 = vpop.f32.mrf.mxu0
      %v1287 = vadd.f32 0.0, %v1286
      %1288 = vmatmul.bf16.gmra.mxu0 %v1181
      %v1289 = vpop.f32.mrf.mxu0
      %v1290 = vadd.f32 0.0, %v1289
      %v1291 = vpop.f32.mrf.mxu0
      %v1292 = vadd.f32 0.0, %v1291
      %1293 = vmatmul.bf16.gmra.mxu0 %v1182
      %v1294 = vpop.f32.mrf.mxu0
      %v1295 = vadd.f32 0.0, %v1294
      %v1296 = vpop.f32.mrf.mxu0
      %v1297 = vadd.f32 0.0, %v1296
      %1298 = vmatmul.bf16.gmra.mxu0 %v1183
      %v1299 = vpop.f32.mrf.mxu0
      %v1300 = vadd.f32 0.0, %v1299
      %v1301 = vpop.f32.mrf.mxu0
      %v1302 = vadd.f32 0.0, %v1301
      %1303 = vmatmul.bf16.gmra.mxu0 %v1184
      %v1304 = vpop.f32.mrf.mxu0
      %v1305 = vadd.f32 0.0, %v1304
      %v1306 = vpop.f32.mrf.mxu0
      %v1307 = vadd.f32 0.0, %v1306
      %1308 = vdwg.mxu0
      %v1309 = vadd.f32 %v1126, %v1260
      %v1310 = vadd.f32 %v1128, %v1262
      %v1311 = vadd.f32 %v1131, %v1265
      %v1312 = vadd.f32 %v1133, %v1267
      %v1313 = vadd.f32 %v1136, %v1270
      %v1314 = vadd.f32 %v1138, %v1272
      %v1315 = vadd.f32 %v1141, %v1275
      %v1316 = vadd.f32 %v1143, %v1277
      %v1317 = vadd.f32 %v1146, %v1280
      %v1318 = vadd.f32 %v1148, %v1282
      %v1319 = vadd.f32 %v1151, %v1285
      %v1320 = vadd.f32 %v1153, %v1287
      %v1321 = vadd.f32 %v1156, %v1290
      %v1322 = vadd.f32 %v1158, %v1292
      %v1323 = vadd.f32 %v1161, %v1295
      %v1324 = vadd.f32 %v1163, %v1297
      %v1325 = vadd.f32 %v1166, %v1300
      %v1326 = vadd.f32 %v1168, %v1302
      %v1327 = vadd.f32 %v1171, %v1305
      %v1328 = vadd.f32 %v1173, %v1307
      %v1329 = vld [vmem:[#allocation2 + $0x17] sm:$0xff]
      %v1330 = vld [vmem:[#allocation2 + $0x1f] sm:$0xff]
      %v1331 = vld [vmem:[#allocation2 + $0x27] sm:$0xff]
      %v1332 = vld [vmem:[#allocation2 + $0x2f] sm:$0xff]
      %v1333 = vld [vmem:[#allocation2 + $0x37] sm:$0xff]
      %v1334 = vld [vmem:[#allocation2 + $0x3f] sm:$0xff]
      %v1335 = vld [vmem:[#allocation2 + $0x47] sm:$0xff]
      %v1336 = vld [vmem:[#allocation2 + $0x4f] sm:$0xff]
      %v1337 = vld [vmem:[#allocation2 + $0x57] sm:$0xff]
      %v1338 = vld [vmem:[#allocation2 + $0x5f] sm:$0xff]
      %v1339 = vld [vmem:[#allocation2 + $0x67] sm:$0xff]
      %v1340 = vld [vmem:[#allocation2 + $0x6f] sm:$0xff]
      %v1341 = vld [vmem:[#allocation2 + $0x77] sm:$0xff]
      %v1342 = vld [vmem:[#allocation2 + $0x7f] sm:$0xff]
      %v1343 = vld [vmem:[#allocation2 + $0x87] sm:$0xff]
      %v1344 = vld [vmem:[#allocation2 + $0x8f] sm:$0xff]
      %v1345 = vld [vmem:[#allocation2 + $0x97] sm:$0xff]
      %v1346 = vld [vmem:[#allocation2 + $0x9f] sm:$0xff]
      %v1347 = vld [vmem:[#allocation2 + $0xa7] sm:$0xff]
      %v1348 = vld [vmem:[#allocation2 + $0xaf] sm:$0xff]
      %v1349 = vmul.f32 %v1329, %v631
      %v1350 = vmul.f32 %v1330, %v636
      %v1351 = vmul.f32 %v1331, %v641
      %v1352 = vmul.f32 %v1332, %v646
      %v1353 = vmul.f32 %v1333, %v651
      %v1354 = vmul.f32 %v1334, %v656
      %v1355 = vmul.f32 %v1335, %v661
      %v1356 = vmul.f32 %v1336, %v666
      %v1357 = vmul.f32 %v1337, %v671
      %v1358 = vmul.f32 %v1338, %v676
      %v1359 = vmul.f32 %v1339, %v681
      %v1360 = vmul.f32 %v1340, %v686
      %v1361 = vmul.f32 %v1341, %v691
      %v1362 = vmul.f32 %v1342, %v696
      %v1363 = vmul.f32 %v1343, %v701
      %v1364 = vmul.f32 %v1344, %v706
      %v1365 = vmul.f32 %v1345, %v711
      %v1366 = vmul.f32 %v1346, %v716
      %v1367 = vmul.f32 %v1347, %v721
      %v1368 = vmul.f32 %v1348, %v726
      %v1369 = vld [vmem:[#allocation2 + $0x18] sm:$0xff]
      %v1370 = vld [vmem:[#allocation2 + $0x20] sm:$0xff]
      %v1371 = vld [vmem:[#allocation2 + $0x28] sm:$0xff]
      %v1372 = vld [vmem:[#allocation2 + $0x30] sm:$0xff]
      %v1373 = vld [vmem:[#allocation2 + $0x38] sm:$0xff]
      %v1374 = vld [vmem:[#allocation2 + $0x40] sm:$0xff]
      %v1375 = vld [vmem:[#allocation2 + $0x48] sm:$0xff]
      %v1376 = vld [vmem:[#allocation2 + $0x50] sm:$0xff]
      %v1377 = vld [vmem:[#allocation2 + $0x58] sm:$0xff]
      %v1378 = vld [vmem:[#allocation2 + $0x60] sm:$0xff]
      %v1379 = vld [vmem:[#allocation2 + $0x68] sm:$0xff]
      %v1380 = vld [vmem:[#allocation2 + $0x70] sm:$0xff]
      %v1381 = vld [vmem:[#allocation2 + $0x78] sm:$0xff]
      %v1382 = vld [vmem:[#allocation2 + $0x80] sm:$0xff]
      %v1383 = vld [vmem:[#allocation2 + $0x88] sm:$0xff]
      %v1384 = vld [vmem:[#allocation2 + $0x90] sm:$0xff]
      %v1385 = vld [vmem:[#allocation2 + $0x98] sm:$0xff]
      %v1386 = vld [vmem:[#allocation2 + $0xa0] sm:$0xff]
      %v1387 = vld [vmem:[#allocation2 + $0xa8] sm:$0xff]
      %v1388 = vld [vmem:[#allocation2 + $0xb0] sm:$0xff]
      %v1389 = vld [vmem:[#allocation2 + $0x19] sm:$0xff]
      %v1390 = vld [vmem:[#allocation2 + $0x21] sm:$0xff]
      %v1391 = vld [vmem:[#allocation2 + $0x29] sm:$0xff]
      %v1392 = vld [vmem:[#allocation2 + $0x31] sm:$0xff]
      %v1393 = vld [vmem:[#allocation2 + $0x39] sm:$0xff]
      %v1394 = vld [vmem:[#allocation2 + $0x41] sm:$0xff]
      %v1395 = vld [vmem:[#allocation2 + $0x49] sm:$0xff]
      %v1396 = vld [vmem:[#allocation2 + $0x51] sm:$0xff]
      %v1397 = vld [vmem:[#allocation2 + $0x59] sm:$0xff]
      %v1398 = vld [vmem:[#allocation2 + $0x61] sm:$0xff]
      %v1399 = vld [vmem:[#allocation2 + $0x69] sm:$0xff]
      %v1400 = vld [vmem:[#allocation2 + $0x71] sm:$0xff]
      %v1401 = vld [vmem:[#allocation2 + $0x79] sm:$0xff]
      %v1402 = vld [vmem:[#allocation2 + $0x81] sm:$0xff]
      %v1403 = vld [vmem:[#allocation2 + $0x89] sm:$0xff]
      %v1404 = vld [vmem:[#allocation2 + $0x91] sm:$0xff]
      %v1405 = vld [vmem:[#allocation2 + $0x99] sm:$0xff]
      %v1406 = vld [vmem:[#allocation2 + $0xa1] sm:$0xff]
      %v1407 = vld [vmem:[#allocation2 + $0xa9] sm:$0xff]
      %v1408 = vld [vmem:[#allocation2 + $0xb1] sm:$0xff]
      %v1409 = vmul.f32 %v1389, %v791
      %v1410 = vmul.f32 %v1390, %v796
      %v1411 = vmul.f32 %v1391, %v801
      %v1412 = vmul.f32 %v1392, %v806
      %v1413 = vmul.f32 %v1393, %v811
      %v1414 = vmul.f32 %v1394, %v816
      %v1415 = vmul.f32 %v1395, %v821
      %v1416 = vmul.f32 %v1396, %v826
      %v1417 = vmul.f32 %v1397, %v831
      %v1418 = vmul.f32 %v1398, %v836
      %v1419 = vmul.f32 %v1399, %v841
      %v1420 = vmul.f32 %v1400, %v846
      %v1421 = vmul.f32 %v1401, %v851
      %v1422 = vmul.f32 %v1402, %v856
      %v1423 = vmul.f32 %v1403, %v861
      %v1424 = vmul.f32 %v1404, %v866
      %v1425 = vmul.f32 %v1405, %v871
      %v1426 = vmul.f32 %v1406, %v876
      %v1427 = vmul.f32 %v1407, %v881
      %v1428 = vmul.f32 %v1408, %v886
      %v1429 = vpack.c.bf16 %v1350, %v1349
      %v1430 = vpack.c.bf16 %v1352, %v1351
      %v1431 = vpack.c.bf16 %v1354, %v1353
      %v1432 = vpack.c.bf16 %v1356, %v1355
      %v1433 = vpack.c.bf16 %v1358, %v1357
      %v1434 = vpack.c.bf16 %v1360, %v1359
      %v1435 = vpack.c.bf16 %v1362, %v1361
      %v1436 = vpack.c.bf16 %v1364, %v1363
      %v1437 = vpack.c.bf16 %v1366, %v1365
      %v1438 = vpack.c.bf16 %v1368, %v1367
      %s1439 = scalar_lea.vmem %s5, 192
      %v1440 = vld [vmem:[%s1439] sm:$0xf]
      %v1441 = vld [vmem:[%s1439 + $0x4] sm:$0xf]
      %v1442 = vld [vmem:[%s1439 + $0x8] sm:$0xf]
      %v1443 = vld [vmem:[%s1439 + $0xc] sm:$0xf]
      %v1444 = vld [vmem:[%s1439 + $0x10] sm:$0xf]
      %v1445 = vld [vmem:[%s1439 + $0x14] sm:$0xf]
      %v1446 = vld [vmem:[%s1439 + $0x18] sm:$0xf]
      %v1447 = vld [vmem:[%s1439 + $0x1c] sm:$0xf]
      %v1448 = vld [vmem:[%s1439 + $0x20] sm:$0xf]
      %v1449 = vld [vmem:[%s1439 + $0x24] sm:$0xf]
      %v1450 = vld [vmem:[%s1439 + $0x28] sm:$0xf]
      %v1451 = vld [vmem:[%s1439 + $0x2c] sm:$0xf]
      %v1452 = vld [vmem:[%s1439 + $0x30] sm:$0xf]
      %v1453 = vld [vmem:[%s1439 + $0x34] sm:$0xf]
      %v1454 = vld [vmem:[%s1439 + $0x38] sm:$0xf]
      %v1455 = vld [vmem:[%s1439 + $0x3c] sm:$0xf]
      %v1472 = vunpack.c.l.b16 %v1440
      %v1473 = vunpack.c.l.b16 %v1441
      %v1474 = vunpack.c.l.b16 %v1442
      %v1475 = vunpack.c.l.b16 %v1443
      %v1476 = vunpack.c.l.b16 %v1444
      %v1477 = vunpack.c.l.b16 %v1445
      %v1478 = vunpack.c.l.b16 %v1446
      %v1479 = vunpack.c.l.b16 %v1447
      %v1480 = vunpack.c.l.b16 %v1448
      %v1481 = vunpack.c.l.b16 %v1449
      %v1482 = vunpack.c.l.b16 %v1450
      %v1483 = vunpack.c.l.b16 %v1451
      %v1484 = vunpack.c.l.b16 %v1452
      %v1485 = vunpack.c.l.b16 %v1453
      %v1486 = vunpack.c.l.b16 %v1454
      %v1487 = vunpack.c.l.b16 %v1455
      %v1488 = vpack.c.b16 %v1473, %v1472
      %v1489 = vpack.c.b16 %v1475, %v1474
      %v1490 = vpack.c.b16 %v1477, %v1476
      %v1491 = vpack.c.b16 %v1479, %v1478
      %v1492 = vpack.c.b16 %v1481, %v1480
      %v1493 = vpack.c.b16 %v1483, %v1482
      %v1494 = vpack.c.b16 %v1485, %v1484
      %v1495 = vpack.c.b16 %v1487, %v1486
      %1504 = vmatpush.bf16.msra.mxu0 %v1495
      %1505 = vmatpush.bf16.msra.mxu0 %v1494
      %1506 = vmatpush.bf16.msra.mxu0 %v1493
      %1507 = vmatpush.bf16.msra.mxu0 %v1492
      %1508 = vmatpush.bf16.msra.mxu0 %v1491
      %1509 = vmatpush.bf16.msra.mxu0 %v1490
      %1510 = vmatpush.bf16.msra.mxu0 %v1489
      %1511 = vmatpush.bf16.msra.mxu0 %v1488
      %1512 = vmatmul.bf16.gmra.mxu0 %v1429
      %v1513 = vpop.f32.mrf.mxu0
      %v1514 = vadd.f32 0.0, %v1513
      %v1515 = vpop.f32.mrf.mxu0
      %v1516 = vadd.f32 0.0, %v1515
      %1517 = vmatmul.bf16.gmra.mxu0 %v1430
      %v1518 = vpop.f32.mrf.mxu0
      %v1519 = vadd.f32 0.0, %v1518
      %v1520 = vpop.f32.mrf.mxu0
      %v1521 = vadd.f32 0.0, %v1520
      %1522 = vmatmul.bf16.gmra.mxu0 %v1431
      %v1523 = vpop.f32.mrf.mxu0
      %v1524 = vadd.f32 0.0, %v1523
      %v1525 = vpop.f32.mrf.mxu0
      %v1526 = vadd.f32 0.0, %v1525
      %1527 = vmatmul.bf16.gmra.mxu0 %v1432
      %v1528 = vpop.f32.mrf.mxu0
      %v1529 = vadd.f32 0.0, %v1528
      %v1530 = vpop.f32.mrf.mxu0
      %v1531 = vadd.f32 0.0, %v1530
      %1532 = vmatmul.bf16.gmra.mxu0 %v1433
      %v1533 = vpop.f32.mrf.mxu0
      %v1534 = vadd.f32 0.0, %v1533
      %v1535 = vpop.f32.mrf.mxu0
      %v1536 = vadd.f32 0.0, %v1535
      %1537 = vmatmul.bf16.gmra.mxu0 %v1434
      %v1538 = vpop.f32.mrf.mxu0
      %v1539 = vadd.f32 0.0, %v1538
      %v1540 = vpop.f32.mrf.mxu0
      %v1541 = vadd.f32 0.0, %v1540
      %1542 = vmatmul.bf16.gmra.mxu0 %v1435
      %v1543 = vpop.f32.mrf.mxu0
      %v1544 = vadd.f32 0.0, %v1543
      %v1545 = vpop.f32.mrf.mxu0
      %v1546 = vadd.f32 0.0, %v1545
      %1547 = vmatmul.bf16.gmra.mxu0 %v1436
      %v1548 = vpop.f32.mrf.mxu0
      %v1549 = vadd.f32 0.0, %v1548
      %v1550 = vpop.f32.mrf.mxu0
      %v1551 = vadd.f32 0.0, %v1550
      %1552 = vmatmul.bf16.gmra.mxu0 %v1437
      %v1553 = vpop.f32.mrf.mxu0
      %v1554 = vadd.f32 0.0, %v1553
      %v1555 = vpop.f32.mrf.mxu0
      %v1556 = vadd.f32 0.0, %v1555
      %1557 = vmatmul.bf16.gmra.mxu0 %v1438
      %v1558 = vpop.f32.mrf.mxu0
      %v1559 = vadd.f32 0.0, %v1558
      %v1560 = vpop.f32.mrf.mxu0
      %v1561 = vadd.f32 0.0, %v1560
      %1562 = vdwg.mxu0
      %v1563 = vadd.f32 %v1309, %v1514
      %v1564 = vadd.f32 %v1310, %v1516
      %v1565 = vadd.f32 %v1311, %v1519
      %v1566 = vadd.f32 %v1312, %v1521
      %v1567 = vadd.f32 %v1313, %v1524
      %v1568 = vadd.f32 %v1314, %v1526
      %v1569 = vadd.f32 %v1315, %v1529
      %v1570 = vadd.f32 %v1316, %v1531
      %v1571 = vadd.f32 %v1317, %v1534
      %v1572 = vadd.f32 %v1318, %v1536
      %v1573 = vadd.f32 %v1319, %v1539
      %v1574 = vadd.f32 %v1320, %v1541
      %v1575 = vadd.f32 %v1321, %v1544
      %v1576 = vadd.f32 %v1322, %v1546
      %v1577 = vadd.f32 %v1323, %v1549
      %v1578 = vadd.f32 %v1324, %v1551
      %v1579 = vadd.f32 %v1325, %v1554
      %v1580 = vadd.f32 %v1326, %v1556
      %v1581 = vadd.f32 %v1327, %v1559
      %v1582 = vadd.f32 %v1328, %v1561
      %v1583 = vpack.c.bf16 %v1370, %v1369
      %v1584 = vpack.c.bf16 %v1372, %v1371
      %v1585 = vpack.c.bf16 %v1374, %v1373
      %v1586 = vpack.c.bf16 %v1376, %v1375
      %v1587 = vpack.c.bf16 %v1378, %v1377
      %v1588 = vpack.c.bf16 %v1380, %v1379
      %v1589 = vpack.c.bf16 %v1382, %v1381
      %v1590 = vpack.c.bf16 %v1384, %v1383
      %v1591 = vpack.c.bf16 %v1386, %v1385
      %v1592 = vpack.c.bf16 %v1388, %v1387
      %s1593 = scalar_lea.vmem %s5, 256
      %v1594 = vld [vmem:[%s1593] sm:$0xf]
      %v1595 = vld [vmem:[%s1593 + $0x4] sm:$0xf]
      %v1596 = vld [vmem:[%s1593 + $0x8] sm:$0xf]
      %v1597 = vld [vmem:[%s1593 + $0xc] sm:$0xf]
      %v1598 = vld [vmem:[%s1593 + $0x10] sm:$0xf]
      %v1599 = vld [vmem:[%s1593 + $0x14] sm:$0xf]
      %v1600 = vld [vmem:[%s1593 + $0x18] sm:$0xf]
      %v1601 = vld [vmem:[%s1593 + $0x1c] sm:$0xf]
      %v1602 = vld [vmem:[%s1593 + $0x20] sm:$0xf]
      %v1603 = vld [vmem:[%s1593 + $0x24] sm:$0xf]
      %v1604 = vld [vmem:[%s1593 + $0x28] sm:$0xf]
      %v1605 = vld [vmem:[%s1593 + $0x2c] sm:$0xf]
      %v1606 = vld [vmem:[%s1593 + $0x30] sm:$0xf]
      %v1607 = vld [vmem:[%s1593 + $0x34] sm:$0xf]
      %v1608 = vld [vmem:[%s1593 + $0x38] sm:$0xf]
      %v1609 = vld [vmem:[%s1593 + $0x3c] sm:$0xf]
      %v1626 = vunpack.c.l.b16 %v1594
      %v1627 = vunpack.c.l.b16 %v1595
      %v1628 = vunpack.c.l.b16 %v1596
      %v1629 = vunpack.c.l.b16 %v1597
      %v1630 = vunpack.c.l.b16 %v1598
      %v1631 = vunpack.c.l.b16 %v1599
      %v1632 = vunpack.c.l.b16 %v1600
      %v1633 = vunpack.c.l.b16 %v1601
      %v1634 = vunpack.c.l.b16 %v1602
      %v1635 = vunpack.c.l.b16 %v1603
      %v1636 = vunpack.c.l.b16 %v1604
      %v1637 = vunpack.c.l.b16 %v1605
      %v1638 = vunpack.c.l.b16 %v1606
      %v1639 = vunpack.c.l.b16 %v1607
      %v1640 = vunpack.c.l.b16 %v1608
      %v1641 = vunpack.c.l.b16 %v1609
      %v1642 = vpack.c.b16 %v1627, %v1626
      %v1643 = vpack.c.b16 %v1629, %v1628
      %v1644 = vpack.c.b16 %v1631, %v1630
      %v1645 = vpack.c.b16 %v1633, %v1632
      %v1646 = vpack.c.b16 %v1635, %v1634
      %v1647 = vpack.c.b16 %v1637, %v1636
      %v1648 = vpack.c.b16 %v1639, %v1638
      %v1649 = vpack.c.b16 %v1641, %v1640
      %1658 = vmatpush.bf16.msra.mxu0 %v1649
      %1659 = vmatpush.bf16.msra.mxu0 %v1648
      %1660 = vmatpush.bf16.msra.mxu0 %v1647
      %1661 = vmatpush.bf16.msra.mxu0 %v1646
      %1662 = vmatpush.bf16.msra.mxu0 %v1645
      %1663 = vmatpush.bf16.msra.mxu0 %v1644
      %1664 = vmatpush.bf16.msra.mxu0 %v1643
      %1665 = vmatpush.bf16.msra.mxu0 %v1642
      %1666 = vmatmul.bf16.gmra.mxu0 %v1583
      %v1667 = vpop.f32.mrf.mxu0
      %v1668 = vadd.f32 0.0, %v1667
      %v1669 = vpop.f32.mrf.mxu0
      %v1670 = vadd.f32 0.0, %v1669
      %1671 = vmatmul.bf16.gmra.mxu0 %v1584
      %v1672 = vpop.f32.mrf.mxu0
      %v1673 = vadd.f32 0.0, %v1672
      %v1674 = vpop.f32.mrf.mxu0
      %v1675 = vadd.f32 0.0, %v1674
      %1676 = vmatmul.bf16.gmra.mxu0 %v1585
      %v1677 = vpop.f32.mrf.mxu0
      %v1678 = vadd.f32 0.0, %v1677
      %v1679 = vpop.f32.mrf.mxu0
      %v1680 = vadd.f32 0.0, %v1679
      %1681 = vmatmul.bf16.gmra.mxu0 %v1586
      %v1682 = vpop.f32.mrf.mxu0
      %v1683 = vadd.f32 0.0, %v1682
      %v1684 = vpop.f32.mrf.mxu0
      %v1685 = vadd.f32 0.0, %v1684
      %1686 = vmatmul.bf16.gmra.mxu0 %v1587
      %v1687 = vpop.f32.mrf.mxu0
      %v1688 = vadd.f32 0.0, %v1687
      %v1689 = vpop.f32.mrf.mxu0
      %v1690 = vadd.f32 0.0, %v1689
      %1691 = vmatmul.bf16.gmra.mxu0 %v1588
      %v1692 = vpop.f32.mrf.mxu0
      %v1693 = vadd.f32 0.0, %v1692
      %v1694 = vpop.f32.mrf.mxu0
      %v1695 = vadd.f32 0.0, %v1694
      %1696 = vmatmul.bf16.gmra.mxu0 %v1589
      %v1697 = vpop.f32.mrf.mxu0
      %v1698 = vadd.f32 0.0, %v1697
      %v1699 = vpop.f32.mrf.mxu0
      %v1700 = vadd.f32 0.0, %v1699
      %1701 = vmatmul.bf16.gmra.mxu0 %v1590
      %v1702 = vpop.f32.mrf.mxu0
      %v1703 = vadd.f32 0.0, %v1702
      %v1704 = vpop.f32.mrf.mxu0
      %v1705 = vadd.f32 0.0, %v1704
      %1706 = vmatmul.bf16.gmra.mxu0 %v1591
      %v1707 = vpop.f32.mrf.mxu0
      %v1708 = vadd.f32 0.0, %v1707
      %v1709 = vpop.f32.mrf.mxu0
      %v1710 = vadd.f32 0.0, %v1709
      %1711 = vmatmul.bf16.gmra.mxu0 %v1592
      %v1712 = vpop.f32.mrf.mxu0
      %v1713 = vadd.f32 0.0, %v1712
      %v1714 = vpop.f32.mrf.mxu0
      %v1715 = vadd.f32 0.0, %v1714
      %1716 = vdwg.mxu0
      %v1717 = vadd.f32 %v1563, %v1668
      %v1718 = vadd.f32 %v1564, %v1670
      %v1719 = vadd.f32 %v1565, %v1673
      %v1720 = vadd.f32 %v1566, %v1675
      %v1721 = vadd.f32 %v1567, %v1678
      %v1722 = vadd.f32 %v1568, %v1680
      %v1723 = vadd.f32 %v1569, %v1683
      %v1724 = vadd.f32 %v1570, %v1685
      %v1725 = vadd.f32 %v1571, %v1688
      %v1726 = vadd.f32 %v1572, %v1690
      %v1727 = vadd.f32 %v1573, %v1693
      %v1728 = vadd.f32 %v1574, %v1695
      %v1729 = vadd.f32 %v1575, %v1698
      %v1730 = vadd.f32 %v1576, %v1700
      %v1731 = vadd.f32 %v1577, %v1703
      %v1732 = vadd.f32 %v1578, %v1705
      %v1733 = vadd.f32 %v1579, %v1708
      %v1734 = vadd.f32 %v1580, %v1710
      %v1735 = vadd.f32 %v1581, %v1713
      %v1736 = vadd.f32 %v1582, %v1715
      %v1737 = vpack.c.bf16 %v1410, %v1409
      %v1738 = vpack.c.bf16 %v1412, %v1411
      %v1739 = vpack.c.bf16 %v1414, %v1413
      %v1740 = vpack.c.bf16 %v1416, %v1415
      %v1741 = vpack.c.bf16 %v1418, %v1417
      %v1742 = vpack.c.bf16 %v1420, %v1419
      %v1743 = vpack.c.bf16 %v1422, %v1421
      %v1744 = vpack.c.bf16 %v1424, %v1423
      %v1745 = vpack.c.bf16 %v1426, %v1425
      %v1746 = vpack.c.bf16 %v1428, %v1427
      %s1747 = scalar_lea.vmem %s5, 320
      %v1748 = vld [vmem:[%s1747] sm:$0xf]
      %v1749 = vld [vmem:[%s1747 + $0x4] sm:$0xf]
      %v1750 = vld [vmem:[%s1747 + $0x8] sm:$0xf]
      %v1751 = vld [vmem:[%s1747 + $0xc] sm:$0xf]
      %v1752 = vld [vmem:[%s1747 + $0x10] sm:$0xf]
      %v1753 = vld [vmem:[%s1747 + $0x14] sm:$0xf]
      %v1754 = vld [vmem:[%s1747 + $0x18] sm:$0xf]
      %v1755 = vld [vmem:[%s1747 + $0x1c] sm:$0xf]
      %v1756 = vld [vmem:[%s1747 + $0x20] sm:$0xf]
      %v1757 = vld [vmem:[%s1747 + $0x24] sm:$0xf]
      %v1758 = vld [vmem:[%s1747 + $0x28] sm:$0xf]
      %v1759 = vld [vmem:[%s1747 + $0x2c] sm:$0xf]
      %v1760 = vld [vmem:[%s1747 + $0x30] sm:$0xf]
      %v1761 = vld [vmem:[%s1747 + $0x34] sm:$0xf]
      %v1762 = vld [vmem:[%s1747 + $0x38] sm:$0xf]
      %v1763 = vld [vmem:[%s1747 + $0x3c] sm:$0xf]
      %v1780 = vunpack.c.l.b16 %v1748
      %v1781 = vunpack.c.l.b16 %v1749
      %v1782 = vunpack.c.l.b16 %v1750
      %v1783 = vunpack.c.l.b16 %v1751
      %v1784 = vunpack.c.l.b16 %v1752
      %v1785 = vunpack.c.l.b16 %v1753
      %v1786 = vunpack.c.l.b16 %v1754
      %v1787 = vunpack.c.l.b16 %v1755
      %v1788 = vunpack.c.l.b16 %v1756
      %v1789 = vunpack.c.l.b16 %v1757
      %v1790 = vunpack.c.l.b16 %v1758
      %v1791 = vunpack.c.l.b16 %v1759
      %v1792 = vunpack.c.l.b16 %v1760
      %v1793 = vunpack.c.l.b16 %v1761
      %v1794 = vunpack.c.l.b16 %v1762
      %v1795 = vunpack.c.l.b16 %v1763
      %v1796 = vpack.c.b16 %v1781, %v1780
      %v1797 = vpack.c.b16 %v1783, %v1782
      %v1798 = vpack.c.b16 %v1785, %v1784
      %v1799 = vpack.c.b16 %v1787, %v1786
      %v1800 = vpack.c.b16 %v1789, %v1788
      %v1801 = vpack.c.b16 %v1791, %v1790
      %v1802 = vpack.c.b16 %v1793, %v1792
      %v1803 = vpack.c.b16 %v1795, %v1794
      %1812 = vmatpush.bf16.msra.mxu0 %v1803
      %1813 = vmatpush.bf16.msra.mxu0 %v1802
      %1814 = vmatpush.bf16.msra.mxu0 %v1801
      %1815 = vmatpush.bf16.msra.mxu0 %v1800
      %1816 = vmatpush.bf16.msra.mxu0 %v1799
      %1817 = vmatpush.bf16.msra.mxu0 %v1798
      %1818 = vmatpush.bf16.msra.mxu0 %v1797
      %1819 = vmatpush.bf16.msra.mxu0 %v1796
      %1820 = vmatmul.bf16.gmra.mxu0 %v1737
      %v1821 = vpop.f32.mrf.mxu0
      %v1822 = vadd.f32 0.0, %v1821
      %v1823 = vpop.f32.mrf.mxu0
      %v1824 = vadd.f32 0.0, %v1823
      %1825 = vmatmul.bf16.gmra.mxu0 %v1738
      %v1826 = vpop.f32.mrf.mxu0
      %v1827 = vadd.f32 0.0, %v1826
      %v1828 = vpop.f32.mrf.mxu0
      %v1829 = vadd.f32 0.0, %v1828
      %1830 = vmatmul.bf16.gmra.mxu0 %v1739
      %v1831 = vpop.f32.mrf.mxu0
      %v1832 = vadd.f32 0.0, %v1831
      %v1833 = vpop.f32.mrf.mxu0
      %v1834 = vadd.f32 0.0, %v1833
      %1835 = vmatmul.bf16.gmra.mxu0 %v1740
      %v1836 = vpop.f32.mrf.mxu0
      %v1837 = vadd.f32 0.0, %v1836
      %v1838 = vpop.f32.mrf.mxu0
      %v1839 = vadd.f32 0.0, %v1838
      %1840 = vmatmul.bf16.gmra.mxu0 %v1741
      %v1841 = vpop.f32.mrf.mxu0
      %v1842 = vadd.f32 0.0, %v1841
      %v1843 = vpop.f32.mrf.mxu0
      %v1844 = vadd.f32 0.0, %v1843
      %1845 = vmatmul.bf16.gmra.mxu0 %v1742
      %v1846 = vpop.f32.mrf.mxu0
      %v1847 = vadd.f32 0.0, %v1846
      %v1848 = vpop.f32.mrf.mxu0
      %v1849 = vadd.f32 0.0, %v1848
      %1850 = vmatmul.bf16.gmra.mxu0 %v1743
      %v1851 = vpop.f32.mrf.mxu0
      %v1852 = vadd.f32 0.0, %v1851
      %v1853 = vpop.f32.mrf.mxu0
      %v1854 = vadd.f32 0.0, %v1853
      %1855 = vmatmul.bf16.gmra.mxu0 %v1744
      %v1856 = vpop.f32.mrf.mxu0
      %v1857 = vadd.f32 0.0, %v1856
      %v1858 = vpop.f32.mrf.mxu0
      %v1859 = vadd.f32 0.0, %v1858
      %1860 = vmatmul.bf16.gmra.mxu0 %v1745
      %v1861 = vpop.f32.mrf.mxu0
      %v1862 = vadd.f32 0.0, %v1861
      %v1863 = vpop.f32.mrf.mxu0
      %v1864 = vadd.f32 0.0, %v1863
      %1865 = vmatmul.bf16.gmra.mxu0 %v1746
      %v1866 = vpop.f32.mrf.mxu0
      %v1867 = vadd.f32 0.0, %v1866
      %v1868 = vpop.f32.mrf.mxu0
      %v1869 = vadd.f32 0.0, %v1868
      %1870 = vdwg.mxu0
      %v1871 = vadd.f32 %v1717, %v1822
      %v1872 = vadd.f32 %v1718, %v1824
      %v1873 = vadd.f32 %v1719, %v1827
      %v1874 = vadd.f32 %v1720, %v1829
      %v1875 = vadd.f32 %v1721, %v1832
      %v1876 = vadd.f32 %v1722, %v1834
      %v1877 = vadd.f32 %v1723, %v1837
      %v1878 = vadd.f32 %v1724, %v1839
      %v1879 = vadd.f32 %v1725, %v1842
      %v1880 = vadd.f32 %v1726, %v1844
      %v1881 = vadd.f32 %v1727, %v1847
      %v1882 = vadd.f32 %v1728, %v1849
      %v1883 = vadd.f32 %v1729, %v1852
      %v1884 = vadd.f32 %v1730, %v1854
      %v1885 = vadd.f32 %v1731, %v1857
      %v1886 = vadd.f32 %v1732, %v1859
      %v1887 = vadd.f32 %v1733, %v1862
      %v1888 = vadd.f32 %v1734, %v1864
      %v1889 = vadd.f32 %v1735, %v1867
      %v1890 = vadd.f32 %v1736, %v1869
      %v1891 = vld [vmem:[#allocation2 + $0x27] sm:$0xff]
      %v1892 = vld [vmem:[#allocation2 + $0x2f] sm:$0xff]
      %v1893 = vld [vmem:[#allocation2 + $0x37] sm:$0xff]
      %v1894 = vld [vmem:[#allocation2 + $0x3f] sm:$0xff]
      %v1895 = vld [vmem:[#allocation2 + $0x47] sm:$0xff]
      %v1896 = vld [vmem:[#allocation2 + $0x4f] sm:$0xff]
      %v1897 = vld [vmem:[#allocation2 + $0x57] sm:$0xff]
      %v1898 = vld [vmem:[#allocation2 + $0x5f] sm:$0xff]
      %v1899 = vld [vmem:[#allocation2 + $0x67] sm:$0xff]
      %v1900 = vld [vmem:[#allocation2 + $0x6f] sm:$0xff]
      %v1901 = vld [vmem:[#allocation2 + $0x77] sm:$0xff]
      %v1902 = vld [vmem:[#allocation2 + $0x7f] sm:$0xff]
      %v1903 = vld [vmem:[#allocation2 + $0x87] sm:$0xff]
      %v1904 = vld [vmem:[#allocation2 + $0x8f] sm:$0xff]
      %v1905 = vld [vmem:[#allocation2 + $0x97] sm:$0xff]
      %v1906 = vld [vmem:[#allocation2 + $0x9f] sm:$0xff]
      %v1907 = vld [vmem:[#allocation2 + $0xa7] sm:$0xff]
      %v1908 = vld [vmem:[#allocation2 + $0xaf] sm:$0xff]
      %v1909 = vld [vmem:[#allocation2 + $0xb7] sm:$0xff]
      %v1910 = vld [vmem:[#allocation2 + $0xbf] sm:$0xff]
      %v1911 = vmul.f32 %v1891, %v631
      %v1912 = vmul.f32 %v1892, %v636
      %v1913 = vmul.f32 %v1893, %v641
      %v1914 = vmul.f32 %v1894, %v646
      %v1915 = vmul.f32 %v1895, %v651
      %v1916 = vmul.f32 %v1896, %v656
      %v1917 = vmul.f32 %v1897, %v661
      %v1918 = vmul.f32 %v1898, %v666
      %v1919 = vmul.f32 %v1899, %v671
      %v1920 = vmul.f32 %v1900, %v676
      %v1921 = vmul.f32 %v1901, %v681
      %v1922 = vmul.f32 %v1902, %v686
      %v1923 = vmul.f32 %v1903, %v691
      %v1924 = vmul.f32 %v1904, %v696
      %v1925 = vmul.f32 %v1905, %v701
      %v1926 = vmul.f32 %v1906, %v706
      %v1927 = vmul.f32 %v1907, %v711
      %v1928 = vmul.f32 %v1908, %v716
      %v1929 = vmul.f32 %v1909, %v721
      %v1930 = vmul.f32 %v1910, %v726
      %v1931 = vld [vmem:[#allocation2 + $0x28] sm:$0xff]
      %v1932 = vld [vmem:[#allocation2 + $0x30] sm:$0xff]
      %v1933 = vld [vmem:[#allocation2 + $0x38] sm:$0xff]
      %v1934 = vld [vmem:[#allocation2 + $0x40] sm:$0xff]
      %v1935 = vld [vmem:[#allocation2 + $0x48] sm:$0xff]
      %v1936 = vld [vmem:[#allocation2 + $0x50] sm:$0xff]
      %v1937 = vld [vmem:[#allocation2 + $0x58] sm:$0xff]
      %v1938 = vld [vmem:[#allocation2 + $0x60] sm:$0xff]
      %v1939 = vld [vmem:[#allocation2 + $0x68] sm:$0xff]
      %v1940 = vld [vmem:[#allocation2 + $0x70] sm:$0xff]
      %v1941 = vld [vmem:[#allocation2 + $0x78] sm:$0xff]
      %v1942 = vld [vmem:[#allocation2 + $0x80] sm:$0xff]
      %v1943 = vld [vmem:[#allocation2 + $0x88] sm:$0xff]
      %v1944 = vld [vmem:[#allocation2 + $0x90] sm:$0xff]
      %v1945 = vld [vmem:[#allocation2 + $0x98] sm:$0xff]
      %v1946 = vld [vmem:[#allocation2 + $0xa0] sm:$0xff]
      %v1947 = vld [vmem:[#allocation2 + $0xa8] sm:$0xff]
      %v1948 = vld [vmem:[#allocation2 + $0xb0] sm:$0xff]
      %v1949 = vld [vmem:[#allocation2 + $0xb8] sm:$0xff]
      %v1950 = vld [vmem:[#allocation2 + $0xc0] sm:$0xff]
      %v1951 = vld [vmem:[#allocation2 + $0x29] sm:$0xff]
      %v1952 = vld [vmem:[#allocation2 + $0x31] sm:$0xff]
      %v1953 = vld [vmem:[#allocation2 + $0x39] sm:$0xff]
      %v1954 = vld [vmem:[#allocation2 + $0x41] sm:$0xff]
      %v1955 = vld [vmem:[#allocation2 + $0x49] sm:$0xff]
      %v1956 = vld [vmem:[#allocation2 + $0x51] sm:$0xff]
      %v1957 = vld [vmem:[#allocation2 + $0x59] sm:$0xff]
      %v1958 = vld [vmem:[#allocation2 + $0x61] sm:$0xff]
      %v1959 = vld [vmem:[#allocation2 + $0x69] sm:$0xff]
      %v1960 = vld [vmem:[#allocation2 + $0x71] sm:$0xff]
      %v1961 = vld [vmem:[#allocation2 + $0x79] sm:$0xff]
      %v1962 = vld [vmem:[#allocation2 + $0x81] sm:$0xff]
      %v1963 = vld [vmem:[#allocation2 + $0x89] sm:$0xff]
      %v1964 = vld [vmem:[#allocation2 + $0x91] sm:$0xff]
      %v1965 = vld [vmem:[#allocation2 + $0x99] sm:$0xff]
      %v1966 = vld [vmem:[#allocation2 + $0xa1] sm:$0xff]
      %v1967 = vld [vmem:[#allocation2 + $0xa9] sm:$0xff]
      %v1968 = vld [vmem:[#allocation2 + $0xb1] sm:$0xff]
      %v1969 = vld [vmem:[#allocation2 + $0xb9] sm:$0xff]
      %v1970 = vld [vmem:[#allocation2 + $0xc1] sm:$0xff]
      %v1971 = vmul.f32 %v1951, %v791
      %v1972 = vmul.f32 %v1952, %v796
      %v1973 = vmul.f32 %v1953, %v801
      %v1974 = vmul.f32 %v1954, %v806
      %v1975 = vmul.f32 %v1955, %v811
      %v1976 = vmul.f32 %v1956, %v816
      %v1977 = vmul.f32 %v1957, %v821
      %v1978 = vmul.f32 %v1958, %v826
      %v1979 = vmul.f32 %v1959, %v831
      %v1980 = vmul.f32 %v1960, %v836
      %v1981 = vmul.f32 %v1961, %v841
      %v1982 = vmul.f32 %v1962, %v846
      %v1983 = vmul.f32 %v1963, %v851
      %v1984 = vmul.f32 %v1964, %v856
      %v1985 = vmul.f32 %v1965, %v861
      %v1986 = vmul.f32 %v1966, %v866
      %v1987 = vmul.f32 %v1967, %v871
      %v1988 = vmul.f32 %v1968, %v876
      %v1989 = vmul.f32 %v1969, %v881
      %v1990 = vmul.f32 %v1970, %v886
      %v1991 = vpack.c.bf16 %v1912, %v1911
      %v1992 = vpack.c.bf16 %v1914, %v1913
      %v1993 = vpack.c.bf16 %v1916, %v1915
      %v1994 = vpack.c.bf16 %v1918, %v1917
      %v1995 = vpack.c.bf16 %v1920, %v1919
      %v1996 = vpack.c.bf16 %v1922, %v1921
      %v1997 = vpack.c.bf16 %v1924, %v1923
      %v1998 = vpack.c.bf16 %v1926, %v1925
      %v1999 = vpack.c.bf16 %v1928, %v1927
      %v2000 = vpack.c.bf16 %v1930, %v1929
      %s2001 = scalar_lea.vmem %s5, 384
      %v2002 = vld [vmem:[%s2001] sm:$0xf]
      %v2003 = vld [vmem:[%s2001 + $0x4] sm:$0xf]
      %v2004 = vld [vmem:[%s2001 + $0x8] sm:$0xf]
      %v2005 = vld [vmem:[%s2001 + $0xc] sm:$0xf]
      %v2006 = vld [vmem:[%s2001 + $0x10] sm:$0xf]
      %v2007 = vld [vmem:[%s2001 + $0x14] sm:$0xf]
      %v2008 = vld [vmem:[%s2001 + $0x18] sm:$0xf]
      %v2009 = vld [vmem:[%s2001 + $0x1c] sm:$0xf]
      %v2010 = vld [vmem:[%s2001 + $0x20] sm:$0xf]
      %v2011 = vld [vmem:[%s2001 + $0x24] sm:$0xf]
      %v2012 = vld [vmem:[%s2001 + $0x28] sm:$0xf]
      %v2013 = vld [vmem:[%s2001 + $0x2c] sm:$0xf]
      %v2014 = vld [vmem:[%s2001 + $0x30] sm:$0xf]
      %v2015 = vld [vmem:[%s2001 + $0x34] sm:$0xf]
      %v2016 = vld [vmem:[%s2001 + $0x38] sm:$0xf]
      %v2017 = vld [vmem:[%s2001 + $0x3c] sm:$0xf]
      %v2034 = vunpack.c.l.b16 %v2002
      %v2035 = vunpack.c.l.b16 %v2003
      %v2036 = vunpack.c.l.b16 %v2004
      %v2037 = vunpack.c.l.b16 %v2005
      %v2038 = vunpack.c.l.b16 %v2006
      %v2039 = vunpack.c.l.b16 %v2007
      %v2040 = vunpack.c.l.b16 %v2008
      %v2041 = vunpack.c.l.b16 %v2009
      %v2042 = vunpack.c.l.b16 %v2010
      %v2043 = vunpack.c.l.b16 %v2011
      %v2044 = vunpack.c.l.b16 %v2012
      %v2045 = vunpack.c.l.b16 %v2013
      %v2046 = vunpack.c.l.b16 %v2014
      %v2047 = vunpack.c.l.b16 %v2015
      %v2048 = vunpack.c.l.b16 %v2016
      %v2049 = vunpack.c.l.b16 %v2017
      %v2050 = vpack.c.b16 %v2035, %v2034
      %v2051 = vpack.c.b16 %v2037, %v2036
      %v2052 = vpack.c.b16 %v2039, %v2038
      %v2053 = vpack.c.b16 %v2041, %v2040
      %v2054 = vpack.c.b16 %v2043, %v2042
      %v2055 = vpack.c.b16 %v2045, %v2044
      %v2056 = vpack.c.b16 %v2047, %v2046
      %v2057 = vpack.c.b16 %v2049, %v2048
      %2066 = vmatpush.bf16.msra.mxu0 %v2057
      %2067 = vmatpush.bf16.msra.mxu0 %v2056
      %2068 = vmatpush.bf16.msra.mxu0 %v2055
      %2069 = vmatpush.bf16.msra.mxu0 %v2054
      %2070 = vmatpush.bf16.msra.mxu0 %v2053
      %2071 = vmatpush.bf16.msra.mxu0 %v2052
      %2072 = vmatpush.bf16.msra.mxu0 %v2051
      %2073 = vmatpush.bf16.msra.mxu0 %v2050
      %2074 = vmatmul.bf16.gmra.mxu0 %v1991
      %v2075 = vpop.f32.mrf.mxu0
      %v2076 = vadd.f32 0.0, %v2075
      %v2077 = vpop.f32.mrf.mxu0
      %v2078 = vadd.f32 0.0, %v2077
      %2079 = vmatmul.bf16.gmra.mxu0 %v1992
      %v2080 = vpop.f32.mrf.mxu0
      %v2081 = vadd.f32 0.0, %v2080
      %v2082 = vpop.f32.mrf.mxu0
      %v2083 = vadd.f32 0.0, %v2082
      %2084 = vmatmul.bf16.gmra.mxu0 %v1993
      %v2085 = vpop.f32.mrf.mxu0
      %v2086 = vadd.f32 0.0, %v2085
      %v2087 = vpop.f32.mrf.mxu0
      %v2088 = vadd.f32 0.0, %v2087
      %2089 = vmatmul.bf16.gmra.mxu0 %v1994
      %v2090 = vpop.f32.mrf.mxu0
      %v2091 = vadd.f32 0.0, %v2090
      %v2092 = vpop.f32.mrf.mxu0
      %v2093 = vadd.f32 0.0, %v2092
      %2094 = vmatmul.bf16.gmra.mxu0 %v1995
      %v2095 = vpop.f32.mrf.mxu0
      %v2096 = vadd.f32 0.0, %v2095
      %v2097 = vpop.f32.mrf.mxu0
      %v2098 = vadd.f32 0.0, %v2097
      %2099 = vmatmul.bf16.gmra.mxu0 %v1996
      %v2100 = vpop.f32.mrf.mxu0
      %v2101 = vadd.f32 0.0, %v2100
      %v2102 = vpop.f32.mrf.mxu0
      %v2103 = vadd.f32 0.0, %v2102
      %2104 = vmatmul.bf16.gmra.mxu0 %v1997
      %v2105 = vpop.f32.mrf.mxu0
      %v2106 = vadd.f32 0.0, %v2105
      %v2107 = vpop.f32.mrf.mxu0
      %v2108 = vadd.f32 0.0, %v2107
      %2109 = vmatmul.bf16.gmra.mxu0 %v1998
      %v2110 = vpop.f32.mrf.mxu0
      %v2111 = vadd.f32 0.0, %v2110
      %v2112 = vpop.f32.mrf.mxu0
      %v2113 = vadd.f32 0.0, %v2112
      %2114 = vmatmul.bf16.gmra.mxu0 %v1999
      %v2115 = vpop.f32.mrf.mxu0
      %v2116 = vadd.f32 0.0, %v2115
      %v2117 = vpop.f32.mrf.mxu0
      %v2118 = vadd.f32 0.0, %v2117
      %2119 = vmatmul.bf16.gmra.mxu0 %v2000
      %v2120 = vpop.f32.mrf.mxu0
      %v2121 = vadd.f32 0.0, %v2120
      %v2122 = vpop.f32.mrf.mxu0
      %v2123 = vadd.f32 0.0, %v2122
      %2124 = vdwg.mxu0
      %v2125 = vadd.f32 %v1871, %v2076
      %v2126 = vadd.f32 %v1872, %v2078
      %v2127 = vadd.f32 %v1873, %v2081
      %v2128 = vadd.f32 %v1874, %v2083
      %v2129 = vadd.f32 %v1875, %v2086
      %v2130 = vadd.f32 %v1876, %v2088
      %v2131 = vadd.f32 %v1877, %v2091
      %v2132 = vadd.f32 %v1878, %v2093
      %v2133 = vadd.f32 %v1879, %v2096
      %v2134 = vadd.f32 %v1880, %v2098
      %v2135 = vadd.f32 %v1881, %v2101
      %v2136 = vadd.f32 %v1882, %v2103
      %v2137 = vadd.f32 %v1883, %v2106
      %v2138 = vadd.f32 %v1884, %v2108
      %v2139 = vadd.f32 %v1885, %v2111
      %v2140 = vadd.f32 %v1886, %v2113
      %v2141 = vadd.f32 %v1887, %v2116
      %v2142 = vadd.f32 %v1888, %v2118
      %v2143 = vadd.f32 %v1889, %v2121
      %v2144 = vadd.f32 %v1890, %v2123
      %v2145 = vpack.c.bf16 %v1932, %v1931
      %v2146 = vpack.c.bf16 %v1934, %v1933
      %v2147 = vpack.c.bf16 %v1936, %v1935
      %v2148 = vpack.c.bf16 %v1938, %v1937
      %v2149 = vpack.c.bf16 %v1940, %v1939
      %v2150 = vpack.c.bf16 %v1942, %v1941
      %v2151 = vpack.c.bf16 %v1944, %v1943
      %v2152 = vpack.c.bf16 %v1946, %v1945
      %v2153 = vpack.c.bf16 %v1948, %v1947
      %v2154 = vpack.c.bf16 %v1950, %v1949
      %s2155 = scalar_lea.vmem %s5, 448
      %v2156 = vld [vmem:[%s2155] sm:$0xf]
      %v2157 = vld [vmem:[%s2155 + $0x4] sm:$0xf]
      %v2158 = vld [vmem:[%s2155 + $0x8] sm:$0xf]
      %v2159 = vld [vmem:[%s2155 + $0xc] sm:$0xf]
      %v2160 = vld [vmem:[%s2155 + $0x10] sm:$0xf]
      %v2161 = vld [vmem:[%s2155 + $0x14] sm:$0xf]
      %v2162 = vld [vmem:[%s2155 + $0x18] sm:$0xf]
      %v2163 = vld [vmem:[%s2155 + $0x1c] sm:$0xf]
      %v2164 = vld [vmem:[%s2155 + $0x20] sm:$0xf]
      %v2165 = vld [vmem:[%s2155 + $0x24] sm:$0xf]
      %v2166 = vld [vmem:[%s2155 + $0x28] sm:$0xf]
      %v2167 = vld [vmem:[%s2155 + $0x2c] sm:$0xf]
      %v2168 = vld [vmem:[%s2155 + $0x30] sm:$0xf]
      %v2169 = vld [vmem:[%s2155 + $0x34] sm:$0xf]
      %v2170 = vld [vmem:[%s2155 + $0x38] sm:$0xf]
      %v2171 = vld [vmem:[%s2155 + $0x3c] sm:$0xf]
      %v2188 = vunpack.c.l.b16 %v2156
      %v2189 = vunpack.c.l.b16 %v2157
      %v2190 = vunpack.c.l.b16 %v2158
      %v2191 = vunpack.c.l.b16 %v2159
      %v2192 = vunpack.c.l.b16 %v2160
      %v2193 = vunpack.c.l.b16 %v2161
      %v2194 = vunpack.c.l.b16 %v2162
      %v2195 = vunpack.c.l.b16 %v2163
      %v2196 = vunpack.c.l.b16 %v2164
      %v2197 = vunpack.c.l.b16 %v2165
      %v2198 = vunpack.c.l.b16 %v2166
      %v2199 = vunpack.c.l.b16 %v2167
      %v2200 = vunpack.c.l.b16 %v2168
      %v2201 = vunpack.c.l.b16 %v2169
      %v2202 = vunpack.c.l.b16 %v2170
      %v2203 = vunpack.c.l.b16 %v2171
      %v2204 = vpack.c.b16 %v2189, %v2188
      %v2205 = vpack.c.b16 %v2191, %v2190
      %v2206 = vpack.c.b16 %v2193, %v2192
      %v2207 = vpack.c.b16 %v2195, %v2194
      %v2208 = vpack.c.b16 %v2197, %v2196
      %v2209 = vpack.c.b16 %v2199, %v2198
      %v2210 = vpack.c.b16 %v2201, %v2200
      %v2211 = vpack.c.b16 %v2203, %v2202
      %2220 = vmatpush.bf16.msra.mxu0 %v2211
      %2221 = vmatpush.bf16.msra.mxu0 %v2210
      %2222 = vmatpush.bf16.msra.mxu0 %v2209
      %2223 = vmatpush.bf16.msra.mxu0 %v2208
      %2224 = vmatpush.bf16.msra.mxu0 %v2207
      %2225 = vmatpush.bf16.msra.mxu0 %v2206
      %2226 = vmatpush.bf16.msra.mxu0 %v2205
      %2227 = vmatpush.bf16.msra.mxu0 %v2204
      %2228 = vmatmul.bf16.gmra.mxu0 %v2145
      %v2229 = vpop.f32.mrf.mxu0
      %v2230 = vadd.f32 0.0, %v2229
      %v2231 = vpop.f32.mrf.mxu0
      %v2232 = vadd.f32 0.0, %v2231
      %2233 = vmatmul.bf16.gmra.mxu0 %v2146
      %v2234 = vpop.f32.mrf.mxu0
      %v2235 = vadd.f32 0.0, %v2234
      %v2236 = vpop.f32.mrf.mxu0
      %v2237 = vadd.f32 0.0, %v2236
      %2238 = vmatmul.bf16.gmra.mxu0 %v2147
      %v2239 = vpop.f32.mrf.mxu0
      %v2240 = vadd.f32 0.0, %v2239
      %v2241 = vpop.f32.mrf.mxu0
      %v2242 = vadd.f32 0.0, %v2241
      %2243 = vmatmul.bf16.gmra.mxu0 %v2148
      %v2244 = vpop.f32.mrf.mxu0
      %v2245 = vadd.f32 0.0, %v2244
      %v2246 = vpop.f32.mrf.mxu0
      %v2247 = vadd.f32 0.0, %v2246
      %2248 = vmatmul.bf16.gmra.mxu0 %v2149
      %v2249 = vpop.f32.mrf.mxu0
      %v2250 = vadd.f32 0.0, %v2249
      %v2251 = vpop.f32.mrf.mxu0
      %v2252 = vadd.f32 0.0, %v2251
      %2253 = vmatmul.bf16.gmra.mxu0 %v2150
      %v2254 = vpop.f32.mrf.mxu0
      %v2255 = vadd.f32 0.0, %v2254
      %v2256 = vpop.f32.mrf.mxu0
      %v2257 = vadd.f32 0.0, %v2256
      %2258 = vmatmul.bf16.gmra.mxu0 %v2151
      %v2259 = vpop.f32.mrf.mxu0
      %v2260 = vadd.f32 0.0, %v2259
      %v2261 = vpop.f32.mrf.mxu0
      %v2262 = vadd.f32 0.0, %v2261
      %2263 = vmatmul.bf16.gmra.mxu0 %v2152
      %v2264 = vpop.f32.mrf.mxu0
      %v2265 = vadd.f32 0.0, %v2264
      %v2266 = vpop.f32.mrf.mxu0
      %v2267 = vadd.f32 0.0, %v2266
      %2268 = vmatmul.bf16.gmra.mxu0 %v2153
      %v2269 = vpop.f32.mrf.mxu0
      %v2270 = vadd.f32 0.0, %v2269
      %v2271 = vpop.f32.mrf.mxu0
      %v2272 = vadd.f32 0.0, %v2271
      %2273 = vmatmul.bf16.gmra.mxu0 %v2154
      %v2274 = vpop.f32.mrf.mxu0
      %v2275 = vadd.f32 0.0, %v2274
      %v2276 = vpop.f32.mrf.mxu0
      %v2277 = vadd.f32 0.0, %v2276
      %2278 = vdwg.mxu0
      %v2279 = vadd.f32 %v2125, %v2230
      %v2280 = vadd.f32 %v2126, %v2232
      %v2281 = vadd.f32 %v2127, %v2235
      %v2282 = vadd.f32 %v2128, %v2237
      %v2283 = vadd.f32 %v2129, %v2240
      %v2284 = vadd.f32 %v2130, %v2242
      %v2285 = vadd.f32 %v2131, %v2245
      %v2286 = vadd.f32 %v2132, %v2247
      %v2287 = vadd.f32 %v2133, %v2250
      %v2288 = vadd.f32 %v2134, %v2252
      %v2289 = vadd.f32 %v2135, %v2255
      %v2290 = vadd.f32 %v2136, %v2257
      %v2291 = vadd.f32 %v2137, %v2260
      %v2292 = vadd.f32 %v2138, %v2262
      %v2293 = vadd.f32 %v2139, %v2265
      %v2294 = vadd.f32 %v2140, %v2267
      %v2295 = vadd.f32 %v2141, %v2270
      %v2296 = vadd.f32 %v2142, %v2272
      %v2297 = vadd.f32 %v2143, %v2275
      %v2298 = vadd.f32 %v2144, %v2277
      %v2299 = vpack.c.bf16 %v1972, %v1971
      %v2300 = vpack.c.bf16 %v1974, %v1973
      %v2301 = vpack.c.bf16 %v1976, %v1975
      %v2302 = vpack.c.bf16 %v1978, %v1977
      %v2303 = vpack.c.bf16 %v1980, %v1979
      %v2304 = vpack.c.bf16 %v1982, %v1981
      %v2305 = vpack.c.bf16 %v1984, %v1983
      %v2306 = vpack.c.bf16 %v1986, %v1985
      %v2307 = vpack.c.bf16 %v1988, %v1987
      %v2308 = vpack.c.bf16 %v1990, %v1989
      %s2309 = scalar_lea.vmem %s5, 512
      %v2310 = vld [vmem:[%s2309] sm:$0xf]
      %v2311 = vld [vmem:[%s2309 + $0x4] sm:$0xf]
      %v2312 = vld [vmem:[%s2309 + $0x8] sm:$0xf]
      %v2313 = vld [vmem:[%s2309 + $0xc] sm:$0xf]
      %v2314 = vld [vmem:[%s2309 + $0x10] sm:$0xf]
      %v2315 = vld [vmem:[%s2309 + $0x14] sm:$0xf]
      %v2316 = vld [vmem:[%s2309 + $0x18] sm:$0xf]
      %v2317 = vld [vmem:[%s2309 + $0x1c] sm:$0xf]
      %v2318 = vld [vmem:[%s2309 + $0x20] sm:$0xf]
      %v2319 = vld [vmem:[%s2309 + $0x24] sm:$0xf]
      %v2320 = vld [vmem:[%s2309 + $0x28] sm:$0xf]
      %v2321 = vld [vmem:[%s2309 + $0x2c] sm:$0xf]
      %v2322 = vld [vmem:[%s2309 + $0x30] sm:$0xf]
      %v2323 = vld [vmem:[%s2309 + $0x34] sm:$0xf]
      %v2324 = vld [vmem:[%s2309 + $0x38] sm:$0xf]
      %v2325 = vld [vmem:[%s2309 + $0x3c] sm:$0xf]
      %v2342 = vunpack.c.l.b16 %v2310
      %v2343 = vunpack.c.l.b16 %v2311
      %v2344 = vunpack.c.l.b16 %v2312
      %v2345 = vunpack.c.l.b16 %v2313
      %v2346 = vunpack.c.l.b16 %v2314
      %v2347 = vunpack.c.l.b16 %v2315
      %v2348 = vunpack.c.l.b16 %v2316
      %v2349 = vunpack.c.l.b16 %v2317
      %v2350 = vunpack.c.l.b16 %v2318
      %v2351 = vunpack.c.l.b16 %v2319
      %v2352 = vunpack.c.l.b16 %v2320
      %v2353 = vunpack.c.l.b16 %v2321
      %v2354 = vunpack.c.l.b16 %v2322
      %v2355 = vunpack.c.l.b16 %v2323
      %v2356 = vunpack.c.l.b16 %v2324
      %v2357 = vunpack.c.l.b16 %v2325
      %v2358 = vpack.c.b16 %v2343, %v2342
      %v2359 = vpack.c.b16 %v2345, %v2344
      %v2360 = vpack.c.b16 %v2347, %v2346
      %v2361 = vpack.c.b16 %v2349, %v2348
      %v2362 = vpack.c.b16 %v2351, %v2350
      %v2363 = vpack.c.b16 %v2353, %v2352
      %v2364 = vpack.c.b16 %v2355, %v2354
      %v2365 = vpack.c.b16 %v2357, %v2356
      %2374 = vmatpush.bf16.msra.mxu0 %v2365
      %2375 = vmatpush.bf16.msra.mxu0 %v2364
      %2376 = vmatpush.bf16.msra.mxu0 %v2363
      %2377 = vmatpush.bf16.msra.mxu0 %v2362
      %2378 = vmatpush.bf16.msra.mxu0 %v2361
      %2379 = vmatpush.bf16.msra.mxu0 %v2360
      %2380 = vmatpush.bf16.msra.mxu0 %v2359
      %2381 = vmatpush.bf16.msra.mxu0 %v2358
      %2382 = vmatmul.bf16.gmra.mxu0 %v2299
      %v2383 = vpop.f32.mrf.mxu0
      %v2384 = vadd.f32 0.0, %v2383
      %v2385 = vpop.f32.mrf.mxu0
      %v2386 = vadd.f32 0.0, %v2385
      %2387 = vmatmul.bf16.gmra.mxu0 %v2300
      %v2388 = vpop.f32.mrf.mxu0
      %v2389 = vadd.f32 0.0, %v2388
      %v2390 = vpop.f32.mrf.mxu0
      %v2391 = vadd.f32 0.0, %v2390
      %2392 = vmatmul.bf16.gmra.mxu0 %v2301
      %v2393 = vpop.f32.mrf.mxu0
      %v2394 = vadd.f32 0.0, %v2393
      %v2395 = vpop.f32.mrf.mxu0
      %v2396 = vadd.f32 0.0, %v2395
      %2397 = vmatmul.bf16.gmra.mxu0 %v2302
      %v2398 = vpop.f32.mrf.mxu0
      %v2399 = vadd.f32 0.0, %v2398
      %v2400 = vpop.f32.mrf.mxu0
      %v2401 = vadd.f32 0.0, %v2400
      %2402 = vmatmul.bf16.gmra.mxu0 %v2303
      %v2403 = vpop.f32.mrf.mxu0
      %v2404 = vadd.f32 0.0, %v2403
      %v2405 = vpop.f32.mrf.mxu0
      %v2406 = vadd.f32 0.0, %v2405
      %2407 = vmatmul.bf16.gmra.mxu0 %v2304
      %v2408 = vpop.f32.mrf.mxu0
      %v2409 = vadd.f32 0.0, %v2408
      %v2410 = vpop.f32.mrf.mxu0
      %v2411 = vadd.f32 0.0, %v2410
      %2412 = vmatmul.bf16.gmra.mxu0 %v2305
      %v2413 = vpop.f32.mrf.mxu0
      %v2414 = vadd.f32 0.0, %v2413
      %v2415 = vpop.f32.mrf.mxu0
      %v2416 = vadd.f32 0.0, %v2415
      %2417 = vmatmul.bf16.gmra.mxu0 %v2306
      %v2418 = vpop.f32.mrf.mxu0
      %v2419 = vadd.f32 0.0, %v2418
      %v2420 = vpop.f32.mrf.mxu0
      %v2421 = vadd.f32 0.0, %v2420
      %2422 = vmatmul.bf16.gmra.mxu0 %v2307
      %v2423 = vpop.f32.mrf.mxu0
      %v2424 = vadd.f32 0.0, %v2423
      %v2425 = vpop.f32.mrf.mxu0
      %v2426 = vadd.f32 0.0, %v2425
      %2427 = vmatmul.bf16.gmra.mxu0 %v2308
      %v2428 = vpop.f32.mrf.mxu0
      %v2429 = vadd.f32 0.0, %v2428
      %v2430 = vpop.f32.mrf.mxu0
      %v2431 = vadd.f32 0.0, %v2430
      %2432 = vdwg.mxu0
      %v2433 = vadd.f32 %v2279, %v2384
      %v2434 = vadd.f32 %v2280, %v2386
      %v2435 = vadd.f32 %v2281, %v2389
      %v2436 = vadd.f32 %v2282, %v2391
      %v2437 = vadd.f32 %v2283, %v2394
      %v2438 = vadd.f32 %v2284, %v2396
      %v2439 = vadd.f32 %v2285, %v2399
      %v2440 = vadd.f32 %v2286, %v2401
      %v2441 = vadd.f32 %v2287, %v2404
      %v2442 = vadd.f32 %v2288, %v2406
      %v2443 = vadd.f32 %v2289, %v2409
      %v2444 = vadd.f32 %v2290, %v2411
      %v2445 = vadd.f32 %v2291, %v2414
      %v2446 = vadd.f32 %v2292, %v2416
      %v2447 = vadd.f32 %v2293, %v2419
      %v2448 = vadd.f32 %v2294, %v2421
      %v2449 = vadd.f32 %v2295, %v2424
      %v2450 = vadd.f32 %v2296, %v2426
      %v2451 = vadd.f32 %v2297, %v2429
      %v2452 = vadd.f32 %v2298, %v2431
      %v2453 = vld [vmem:[%s6] sm:$0x1]
      %v2455 = vperm.slane %v2453, 0
      %v2457 = vadd.f32 %v2433, %v2455
      %v2458 = vadd.f32 %v2434, %v2455
      %v2459 = vadd.f32 %v2435, %v2455
      %v2460 = vadd.f32 %v2436, %v2455
      %v2461 = vadd.f32 %v2437, %v2455
      %v2462 = vadd.f32 %v2438, %v2455
      %v2463 = vadd.f32 %v2439, %v2455
      %v2464 = vadd.f32 %v2440, %v2455
      %v2465 = vadd.f32 %v2441, %v2455
      %v2466 = vadd.f32 %v2442, %v2455
      %v2467 = vadd.f32 %v2443, %v2455
      %v2468 = vadd.f32 %v2444, %v2455
      %v2469 = vadd.f32 %v2445, %v2455
      %v2470 = vadd.f32 %v2446, %v2455
      %v2471 = vadd.f32 %v2447, %v2455
      %v2472 = vadd.f32 %v2448, %v2455
      %v2473 = vadd.f32 %v2449, %v2455
      %v2474 = vadd.f32 %v2450, %v2455
      %v2475 = vadd.f32 %v2451, %v2455
      %v2476 = vadd.f32 %v2452, %v2455
      %vm2477 = vcmp.ge.f32.partialorder %v2457, 0.0
      %vm2478 = vcmp.ge.f32.partialorder %v2458, 0.0
      %vm2479 = vcmp.ge.f32.partialorder %v2459, 0.0
      %vm2480 = vcmp.ge.f32.partialorder %v2460, 0.0
      %vm2481 = vcmp.ge.f32.partialorder %v2461, 0.0
      %vm2482 = vcmp.ge.f32.partialorder %v2462, 0.0
      %vm2483 = vcmp.ge.f32.partialorder %v2463, 0.0
      %vm2484 = vcmp.ge.f32.partialorder %v2464, 0.0
      %vm2485 = vcmp.ge.f32.partialorder %v2465, 0.0
      %vm2486 = vcmp.ge.f32.partialorder %v2466, 0.0
      %vm2487 = vcmp.ge.f32.partialorder %v2467, 0.0
      %vm2488 = vcmp.ge.f32.partialorder %v2468, 0.0
      %vm2489 = vcmp.ge.f32.partialorder %v2469, 0.0
      %vm2490 = vcmp.ge.f32.partialorder %v2470, 0.0
      %vm2491 = vcmp.ge.f32.partialorder %v2471, 0.0
      %vm2492 = vcmp.ge.f32.partialorder %v2472, 0.0
      %vm2493 = vcmp.ge.f32.partialorder %v2473, 0.0
      %vm2494 = vcmp.ge.f32.partialorder %v2474, 0.0
      %vm2495 = vcmp.ge.f32.partialorder %v2475, 0.0
      %vm2496 = vcmp.ge.f32.partialorder %v2476, 0.0
      %v2497 = vmul.f32 %v2457, 0.1
      %v2498 = vmul.f32 %v2458, 0.1
      %v2499 = vmul.f32 %v2459, 0.1
      %v2500 = vmul.f32 %v2460, 0.1
      %v2501 = vmul.f32 %v2461, 0.1
      %v2502 = vmul.f32 %v2462, 0.1
      %v2503 = vmul.f32 %v2463, 0.1
      %v2504 = vmul.f32 %v2464, 0.1
      %v2505 = vmul.f32 %v2465, 0.1
      %v2506 = vmul.f32 %v2466, 0.1
      %v2507 = vmul.f32 %v2467, 0.1
      %v2508 = vmul.f32 %v2468, 0.1
      %v2509 = vmul.f32 %v2469, 0.1
      %v2510 = vmul.f32 %v2470, 0.1
      %v2511 = vmul.f32 %v2471, 0.1
      %v2512 = vmul.f32 %v2472, 0.1
      %v2513 = vmul.f32 %v2473, 0.1
      %v2514 = vmul.f32 %v2474, 0.1
      %v2515 = vmul.f32 %v2475, 0.1
      %v2516 = vmul.f32 %v2476, 0.1
      %v2517 = vsel %vm2477, %v2457, %v2497
      %v2518 = vsel %vm2478, %v2458, %v2498
      %v2519 = vsel %vm2479, %v2459, %v2499
      %v2520 = vsel %vm2480, %v2460, %v2500
      %v2521 = vsel %vm2481, %v2461, %v2501
      %v2522 = vsel %vm2482, %v2462, %v2502
      %v2523 = vsel %vm2483, %v2463, %v2503
      %v2524 = vsel %vm2484, %v2464, %v2504
      %v2525 = vsel %vm2485, %v2465, %v2505
      %v2526 = vsel %vm2486, %v2466, %v2506
      %v2527 = vsel %vm2487, %v2467, %v2507
      %v2528 = vsel %vm2488, %v2468, %v2508
      %v2529 = vsel %vm2489, %v2469, %v2509
      %v2530 = vsel %vm2490, %v2470, %v2510
      %v2531 = vsel %vm2491, %v2471, %v2511
      %v2532 = vsel %vm2492, %v2472, %v2512
      %v2533 = vsel %vm2493, %v2473, %v2513
      %v2534 = vsel %vm2494, %v2474, %v2514
      %v2535 = vsel %vm2495, %v2475, %v2515
      %v2536 = vsel %vm2496, %v2476, %v2516
      %2537 = vst [vmem:[#allocation3 + $0x8] sm:$0xff] %v2517
      %2538 = vst [vmem:[#allocation3 + $0x10] sm:$0xff] %v2518
      %2539 = vst [vmem:[#allocation3 + $0x18] sm:$0xff] %v2519
      %2540 = vst [vmem:[#allocation3 + $0x20] sm:$0xff] %v2520
      %2541 = vst [vmem:[#allocation3 + $0x28] sm:$0xff] %v2521
      %2542 = vst [vmem:[#allocation3 + $0x30] sm:$0xff] %v2522
      %2543 = vst [vmem:[#allocation3 + $0x38] sm:$0xff] %v2523
      %2544 = vst [vmem:[#allocation3 + $0x40] sm:$0xff] %v2524
      %2545 = vst [vmem:[#allocation3 + $0x48] sm:$0xff] %v2525
      %2546 = vst [vmem:[#allocation3 + $0x50] sm:$0xff] %v2526
      %2547 = vst [vmem:[#allocation3 + $0x58] sm:$0xff] %v2527
      %2548 = vst [vmem:[#allocation3 + $0x60] sm:$0xff] %v2528
      %2549 = vst [vmem:[#allocation3 + $0x68] sm:$0xff] %v2529
      %2550 = vst [vmem:[#allocation3 + $0x70] sm:$0xff] %v2530
      %2551 = vst [vmem:[#allocation3 + $0x78] sm:$0xff] %v2531
      %2552 = vst [vmem:[#allocation3 + $0x80] sm:$0xff] %v2532
      %2553 = vst [vmem:[#allocation3 + $0x88] sm:$0xff] %v2533
      %2554 = vst [vmem:[#allocation3 + $0x90] sm:$0xff] %v2534
      %2555 = vst [vmem:[#allocation3 + $0x98] sm:$0xff] %v2535
      %2556 = vst [vmem:[#allocation3 + $0xa0] sm:$0xff] %v2536
      %p2557 = scmp.eq.s32.totalorder %s25, 0
      // Predicated region
      $region57: #{spa_block_nchw.1} parent=55 // pred_check
        %p2558 = pneg %p2557
      $region58: #{spa_block_nchw.1} parent=55 // pred_check_branch
        %2560 = sbr.rel (%p2558) target = $region60
      $region59: #{spa_block_nchw.1} parent=55 // pred_region
        %2561 = vst [vmem:[#allocation3 + $0x8] sm:$0xff] 0.0
        %2562 = vst [vmem:[#allocation3 + $0x10] sm:$0xff] 0.0
      $region60: #{spa_block_nchw.1} parent=55 // pred_fallthru
        _
      %p2563 = scmp.eq.s32.totalorder %s25, 1
      // Predicated region
      $region61: #{spa_block_nchw.1} parent=55 // pred_check
        %p2564 = pneg %p2563
      $region62: #{spa_block_nchw.1} parent=55 // pred_check_branch
        %2566 = sbr.rel (%p2564) target = $region64
      $region63: #{spa_block_nchw.1} parent=55 // pred_region
        %2567 = vst [vmem:[#allocation3 + $0x98] sm:$0xff] 0.0
        %2568 = vst [vmem:[#allocation3 + $0xa0] sm:$0xff] 0.0
      $region64: #{spa_block_nchw.1} parent=55 // pred_fallthru
        _
      %v2569 = vld [vmem:[#allocation3 + $0x7] sm:$0xff]
      %v2570 = vld [vmem:[#allocation3 + $0xf] sm:$0xff]
      %v2571 = vld [vmem:[#allocation3 + $0x17] sm:$0xff]
      %v2572 = vld [vmem:[#allocation3 + $0x1f] sm:$0xff]
      %v2573 = vld [vmem:[#allocation3 + $0x27] sm:$0xff]
      %v2574 = vld [vmem:[#allocation3 + $0x2f] sm:$0xff]
      %v2575 = vld [vmem:[#allocation3 + $0x37] sm:$0xff]
      %v2576 = vld [vmem:[#allocation3 + $0x3f] sm:$0xff]
      %v2577 = vld [vmem:[#allocation3 + $0x47] sm:$0xff]
      %v2578 = vld [vmem:[#allocation3 + $0x4f] sm:$0xff]
      %v2579 = vld [vmem:[#allocation3 + $0x57] sm:$0xff]
      %v2580 = vld [vmem:[#allocation3 + $0x5f] sm:$0xff]
      %v2581 = vld [vmem:[#allocation3 + $0x67] sm:$0xff]
      %v2582 = vld [vmem:[#allocation3 + $0x6f] sm:$0xff]
      %v2583 = vld [vmem:[#allocation3 + $0x77] sm:$0xff]
      %v2584 = vld [vmem:[#allocation3 + $0x7f] sm:$0xff]
      %v2585 = vmul.f32 %v2569, %v631
      %v2586 = vmul.f32 %v2570, %v636
      %v2587 = vmul.f32 %v2571, %v641
      %v2588 = vmul.f32 %v2572, %v646
      %v2589 = vmul.f32 %v2573, %v651
      %v2590 = vmul.f32 %v2574, %v656
      %v2591 = vmul.f32 %v2575, %v661
      %v2592 = vmul.f32 %v2576, %v666
      %v2593 = vmul.f32 %v2577, %v671
      %v2594 = vmul.f32 %v2578, %v676
      %v2595 = vmul.f32 %v2579, %v681
      %v2596 = vmul.f32 %v2580, %v686
      %v2597 = vmul.f32 %v2581, %v691
      %v2598 = vmul.f32 %v2582, %v696
      %v2599 = vmul.f32 %v2583, %v701
      %v2600 = vmul.f32 %v2584, %v706
      %v2601 = vld [vmem:[#allocation3 + $0x8] sm:$0xff]
      %v2602 = vld [vmem:[#allocation3 + $0x10] sm:$0xff]
      %v2603 = vld [vmem:[#allocation3 + $0x18] sm:$0xff]
      %v2604 = vld [vmem:[#allocation3 + $0x20] sm:$0xff]
      %v2605 = vld [vmem:[#allocation3 + $0x28] sm:$0xff]
      %v2606 = vld [vmem:[#allocation3 + $0x30] sm:$0xff]
      %v2607 = vld [vmem:[#allocation3 + $0x38] sm:$0xff]
      %v2608 = vld [vmem:[#allocation3 + $0x40] sm:$0xff]
      %v2609 = vld [vmem:[#allocation3 + $0x48] sm:$0xff]
      %v2610 = vld [vmem:[#allocation3 + $0x50] sm:$0xff]
      %v2611 = vld [vmem:[#allocation3 + $0x58] sm:$0xff]
      %v2612 = vld [vmem:[#allocation3 + $0x60] sm:$0xff]
      %v2613 = vld [vmem:[#allocation3 + $0x68] sm:$0xff]
      %v2614 = vld [vmem:[#allocation3 + $0x70] sm:$0xff]
      %v2615 = vld [vmem:[#allocation3 + $0x78] sm:$0xff]
      %v2616 = vld [vmem:[#allocation3 + $0x80] sm:$0xff]
      %v2617 = vld [vmem:[#allocation3 + $0x9] sm:$0xff]
      %v2618 = vld [vmem:[#allocation3 + $0x11] sm:$0xff]
      %v2619 = vld [vmem:[#allocation3 + $0x19] sm:$0xff]
      %v2620 = vld [vmem:[#allocation3 + $0x21] sm:$0xff]
      %v2621 = vld [vmem:[#allocation3 + $0x29] sm:$0xff]
      %v2622 = vld [vmem:[#allocation3 + $0x31] sm:$0xff]
      %v2623 = vld [vmem:[#allocation3 + $0x39] sm:$0xff]
      %v2624 = vld [vmem:[#allocation3 + $0x41] sm:$0xff]
      %v2625 = vld [vmem:[#allocation3 + $0x49] sm:$0xff]
      %v2626 = vld [vmem:[#allocation3 + $0x51] sm:$0xff]
      %v2627 = vld [vmem:[#allocation3 + $0x59] sm:$0xff]
      %v2628 = vld [vmem:[#allocation3 + $0x61] sm:$0xff]
      %v2629 = vld [vmem:[#allocation3 + $0x69] sm:$0xff]
      %v2630 = vld [vmem:[#allocation3 + $0x71] sm:$0xff]
      %v2631 = vld [vmem:[#allocation3 + $0x79] sm:$0xff]
      %v2632 = vld [vmem:[#allocation3 + $0x81] sm:$0xff]
      %v2633 = vmul.f32 %v2617, %v791
      %v2634 = vmul.f32 %v2618, %v796
      %v2635 = vmul.f32 %v2619, %v801
      %v2636 = vmul.f32 %v2620, %v806
      %v2637 = vmul.f32 %v2621, %v811
      %v2638 = vmul.f32 %v2622, %v816
      %v2639 = vmul.f32 %v2623, %v821
      %v2640 = vmul.f32 %v2624, %v826
      %v2641 = vmul.f32 %v2625, %v831
      %v2642 = vmul.f32 %v2626, %v836
      %v2643 = vmul.f32 %v2627, %v841
      %v2644 = vmul.f32 %v2628, %v846
      %v2645 = vmul.f32 %v2629, %v851
      %v2646 = vmul.f32 %v2630, %v856
      %v2647 = vmul.f32 %v2631, %v861
      %v2648 = vmul.f32 %v2632, %v866
      %v2649 = vpack.c.bf16 %v2586, %v2585
      %v2650 = vpack.c.bf16 %v2588, %v2587
      %v2651 = vpack.c.bf16 %v2590, %v2589
      %v2652 = vpack.c.bf16 %v2592, %v2591
      %v2653 = vpack.c.bf16 %v2594, %v2593
      %v2654 = vpack.c.bf16 %v2596, %v2595
      %v2655 = vpack.c.bf16 %v2598, %v2597
      %v2656 = vpack.c.bf16 %v2600, %v2599
      %v2657 = vld [vmem:[%s7] sm:$0xf]
      %v2658 = vld [vmem:[%s7 + $0x4] sm:$0xf]
      %v2659 = vld [vmem:[%s7 + $0x8] sm:$0xf]
      %v2660 = vld [vmem:[%s7 + $0xc] sm:$0xf]
      %v2661 = vld [vmem:[%s7 + $0x10] sm:$0xf]
      %v2662 = vld [vmem:[%s7 + $0x14] sm:$0xf]
      %v2663 = vld [vmem:[%s7 + $0x18] sm:$0xf]
      %v2664 = vld [vmem:[%s7 + $0x1c] sm:$0xf]
      %v2665 = vld [vmem:[%s7 + $0x20] sm:$0xf]
      %v2666 = vld [vmem:[%s7 + $0x24] sm:$0xf]
      %v2667 = vld [vmem:[%s7 + $0x28] sm:$0xf]
      %v2668 = vld [vmem:[%s7 + $0x2c] sm:$0xf]
      %v2669 = vld [vmem:[%s7 + $0x30] sm:$0xf]
      %v2670 = vld [vmem:[%s7 + $0x34] sm:$0xf]
      %v2671 = vld [vmem:[%s7 + $0x38] sm:$0xf]
      %v2672 = vld [vmem:[%s7 + $0x3c] sm:$0xf]
      %v2673 = vpack.c.bf16 %v2602, %v2601
      %v2674 = vpack.c.bf16 %v2604, %v2603
      %v2675 = vpack.c.bf16 %v2606, %v2605
      %v2676 = vpack.c.bf16 %v2608, %v2607
      %v2677 = vpack.c.bf16 %v2610, %v2609
      %v2678 = vpack.c.bf16 %v2612, %v2611
      %v2679 = vpack.c.bf16 %v2614, %v2613
      %v2680 = vpack.c.bf16 %v2616, %v2615
      %s2681 = scalar_lea.vmem %s7, 64
      %v2682 = vld [vmem:[%s2681] sm:$0xf]
      %v2683 = vld [vmem:[%s2681 + $0x4] sm:$0xf]
      %v2684 = vld [vmem:[%s2681 + $0x8] sm:$0xf]
      %v2685 = vld [vmem:[%s2681 + $0xc] sm:$0xf]
      %v2686 = vld [vmem:[%s2681 + $0x10] sm:$0xf]
      %v2687 = vld [vmem:[%s2681 + $0x14] sm:$0xf]
      %v2688 = vld [vmem:[%s2681 + $0x18] sm:$0xf]
      %v2689 = vld [vmem:[%s2681 + $0x1c] sm:$0xf]
      %v2690 = vld [vmem:[%s2681 + $0x20] sm:$0xf]
      %v2691 = vld [vmem:[%s2681 + $0x24] sm:$0xf]
      %v2692 = vld [vmem:[%s2681 + $0x28] sm:$0xf]
      %v2693 = vld [vmem:[%s2681 + $0x2c] sm:$0xf]
      %v2694 = vld [vmem:[%s2681 + $0x30] sm:$0xf]
      %v2695 = vld [vmem:[%s2681 + $0x34] sm:$0xf]
      %v2696 = vld [vmem:[%s2681 + $0x38] sm:$0xf]
      %v2697 = vld [vmem:[%s2681 + $0x3c] sm:$0xf]
      %v2714 = vunpack.c.l.b16 %v2682
      %v2715 = vunpack.c.l.b16 %v2683
      %v2716 = vunpack.c.l.b16 %v2684
      %v2717 = vunpack.c.l.b16 %v2685
      %v2718 = vunpack.c.l.b16 %v2686
      %v2719 = vunpack.c.l.b16 %v2687
      %v2720 = vunpack.c.l.b16 %v2688
      %v2721 = vunpack.c.l.b16 %v2689
      %v2722 = vunpack.c.l.b16 %v2690
      %v2723 = vunpack.c.l.b16 %v2691
      %v2724 = vunpack.c.l.b16 %v2692
      %v2725 = vunpack.c.l.b16 %v2693
      %v2726 = vunpack.c.l.b16 %v2694
      %v2727 = vunpack.c.l.b16 %v2695
      %v2728 = vunpack.c.l.b16 %v2696
      %v2729 = vunpack.c.l.b16 %v2697
      %v2730 = vpack.c.b16 %v2715, %v2714
      %v2731 = vpack.c.b16 %v2717, %v2716
      %v2732 = vpack.c.b16 %v2719, %v2718
      %v2733 = vpack.c.b16 %v2721, %v2720
      %v2734 = vpack.c.b16 %v2723, %v2722
      %v2735 = vpack.c.b16 %v2725, %v2724
      %v2736 = vpack.c.b16 %v2727, %v2726
      %v2737 = vpack.c.b16 %v2729, %v2728
      %2746 = vmatpush.bf16.msra.mxu0 %v2737
      %2747 = vmatpush.bf16.msra.mxu0 %v2736
      %2748 = vmatpush.bf16.msra.mxu0 %v2735
      %2749 = vmatpush.bf16.msra.mxu0 %v2734
      %2750 = vmatpush.bf16.msra.mxu0 %v2733
      %2751 = vmatpush.bf16.msra.mxu0 %v2732
      %2752 = vmatpush.bf16.msra.mxu0 %v2731
      %2753 = vmatpush.bf16.msra.mxu0 %v2730
      %2754 = vmatmul.bf16.gmra.mxu0 %v2673
      %v2755 = vpop.f32.mrf.mxu0
      %v2756 = vadd.f32 0.0, %v2755
      %v2757 = vpop.f32.mrf.mxu0
      %v2758 = vadd.f32 0.0, %v2757
      %2759 = vmatmul.bf16.gmra.mxu0 %v2674
      %v2760 = vpop.f32.mrf.mxu0
      %v2761 = vadd.f32 0.0, %v2760
      %v2762 = vpop.f32.mrf.mxu0
      %v2763 = vadd.f32 0.0, %v2762
      %2764 = vmatmul.bf16.gmra.mxu0 %v2675
      %v2765 = vpop.f32.mrf.mxu0
      %v2766 = vadd.f32 0.0, %v2765
      %v2767 = vpop.f32.mrf.mxu0
      %v2768 = vadd.f32 0.0, %v2767
      %2769 = vmatmul.bf16.gmra.mxu0 %v2676
      %v2770 = vpop.f32.mrf.mxu0
      %v2771 = vadd.f32 0.0, %v2770
      %v2772 = vpop.f32.mrf.mxu0
      %v2773 = vadd.f32 0.0, %v2772
      %2774 = vmatmul.bf16.gmra.mxu0 %v2677
      %v2775 = vpop.f32.mrf.mxu0
      %v2776 = vadd.f32 0.0, %v2775
      %v2777 = vpop.f32.mrf.mxu0
      %v2778 = vadd.f32 0.0, %v2777
      %2779 = vmatmul.bf16.gmra.mxu0 %v2678
      %v2780 = vpop.f32.mrf.mxu0
      %v2781 = vadd.f32 0.0, %v2780
      %v2782 = vpop.f32.mrf.mxu0
      %v2783 = vadd.f32 0.0, %v2782
      %2784 = vmatmul.bf16.gmra.mxu0 %v2679
      %v2785 = vpop.f32.mrf.mxu0
      %v2786 = vadd.f32 0.0, %v2785
      %v2787 = vpop.f32.mrf.mxu0
      %v2788 = vadd.f32 0.0, %v2787
      %2789 = vmatmul.bf16.gmra.mxu0 %v2680
      %v2790 = vpop.f32.mrf.mxu0
      %v2791 = vadd.f32 0.0, %v2790
      %v2792 = vpop.f32.mrf.mxu0
      %v2793 = vadd.f32 0.0, %v2792
      %2794 = vdwg.mxu0
      %v2811 = vunpack.c.l.b16 %v2657
      %v2812 = vunpack.c.l.b16 %v2658
      %v2813 = vunpack.c.l.b16 %v2659
      %v2814 = vunpack.c.l.b16 %v2660
      %v2815 = vunpack.c.l.b16 %v2661
      %v2816 = vunpack.c.l.b16 %v2662
      %v2817 = vunpack.c.l.b16 %v2663
      %v2818 = vunpack.c.l.b16 %v2664
      %v2819 = vunpack.c.l.b16 %v2665
      %v2820 = vunpack.c.l.b16 %v2666
      %v2821 = vunpack.c.l.b16 %v2667
      %v2822 = vunpack.c.l.b16 %v2668
      %v2823 = vunpack.c.l.b16 %v2669
      %v2824 = vunpack.c.l.b16 %v2670
      %v2825 = vunpack.c.l.b16 %v2671
      %v2826 = vunpack.c.l.b16 %v2672
      %v2827 = vpack.c.b16 %v2812, %v2811
      %v2828 = vpack.c.b16 %v2814, %v2813
      %v2829 = vpack.c.b16 %v2816, %v2815
      %v2830 = vpack.c.b16 %v2818, %v2817
      %v2831 = vpack.c.b16 %v2820, %v2819
      %v2832 = vpack.c.b16 %v2822, %v2821
      %v2833 = vpack.c.b16 %v2824, %v2823
      %v2834 = vpack.c.b16 %v2826, %v2825
      %2843 = vmatpush.bf16.msra.mxu0 %v2834
      %2844 = vmatpush.bf16.msra.mxu0 %v2833
      %2845 = vmatpush.bf16.msra.mxu0 %v2832
      %2846 = vmatpush.bf16.msra.mxu0 %v2831
      %2847 = vmatpush.bf16.msra.mxu0 %v2830
      %2848 = vmatpush.bf16.msra.mxu0 %v2829
      %2849 = vmatpush.bf16.msra.mxu0 %v2828
      %2850 = vmatpush.bf16.msra.mxu0 %v2827
      %2851 = vmatmul.bf16.gmra.mxu0 %v2649
      %v2852 = vpop.f32.mrf.mxu0
      %v2853 = vadd.f32 %v2756, %v2852
      %v2854 = vpop.f32.mrf.mxu0
      %v2855 = vadd.f32 %v2758, %v2854
      %2856 = vmatmul.bf16.gmra.mxu0 %v2650
      %v2857 = vpop.f32.mrf.mxu0
      %v2858 = vadd.f32 %v2761, %v2857
      %v2859 = vpop.f32.mrf.mxu0
      %v2860 = vadd.f32 %v2763, %v2859
      %2861 = vmatmul.bf16.gmra.mxu0 %v2651
      %v2862 = vpop.f32.mrf.mxu0
      %v2863 = vadd.f32 %v2766, %v2862
      %v2864 = vpop.f32.mrf.mxu0
      %v2865 = vadd.f32 %v2768, %v2864
      %2866 = vmatmul.bf16.gmra.mxu0 %v2652
      %v2867 = vpop.f32.mrf.mxu0
      %v2868 = vadd.f32 %v2771, %v2867
      %v2869 = vpop.f32.mrf.mxu0
      %v2870 = vadd.f32 %v2773, %v2869
      %2871 = vmatmul.bf16.gmra.mxu0 %v2653
      %v2872 = vpop.f32.mrf.mxu0
      %v2873 = vadd.f32 %v2776, %v2872
      %v2874 = vpop.f32.mrf.mxu0
      %v2875 = vadd.f32 %v2778, %v2874
      %2876 = vmatmul.bf16.gmra.mxu0 %v2654
      %v2877 = vpop.f32.mrf.mxu0
      %v2878 = vadd.f32 %v2781, %v2877
      %v2879 = vpop.f32.mrf.mxu0
      %v2880 = vadd.f32 %v2783, %v2879
      %2881 = vmatmul.bf16.gmra.mxu0 %v2655
      %v2882 = vpop.f32.mrf.mxu0
      %v2883 = vadd.f32 %v2786, %v2882
      %v2884 = vpop.f32.mrf.mxu0
      %v2885 = vadd.f32 %v2788, %v2884
      %2886 = vmatmul.bf16.gmra.mxu0 %v2656
      %v2887 = vpop.f32.mrf.mxu0
      %v2888 = vadd.f32 %v2791, %v2887
      %v2889 = vpop.f32.mrf.mxu0
      %v2890 = vadd.f32 %v2793, %v2889
      %2891 = vdwg.mxu0
      %v2892 = vpack.c.bf16 %v2634, %v2633
      %v2893 = vpack.c.bf16 %v2636, %v2635
      %v2894 = vpack.c.bf16 %v2638, %v2637
      %v2895 = vpack.c.bf16 %v2640, %v2639
      %v2896 = vpack.c.bf16 %v2642, %v2641
      %v2897 = vpack.c.bf16 %v2644, %v2643
      %v2898 = vpack.c.bf16 %v2646, %v2645
      %v2899 = vpack.c.bf16 %v2648, %v2647
      %s2900 = scalar_lea.vmem %s7, 128
      %v2901 = vld [vmem:[%s2900] sm:$0xf]
      %v2902 = vld [vmem:[%s2900 + $0x4] sm:$0xf]
      %v2903 = vld [vmem:[%s2900 + $0x8] sm:$0xf]
      %v2904 = vld [vmem:[%s2900 + $0xc] sm:$0xf]
      %v2905 = vld [vmem:[%s2900 + $0x10] sm:$0xf]
      %v2906 = vld [vmem:[%s2900 + $0x14] sm:$0xf]
      %v2907 = vld [vmem:[%s2900 + $0x18] sm:$0xf]
      %v2908 = vld [vmem:[%s2900 + $0x1c] sm:$0xf]
      %v2909 = vld [vmem:[%s2900 + $0x20] sm:$0xf]
      %v2910 = vld [vmem:[%s2900 + $0x24] sm:$0xf]
      %v2911 = vld [vmem:[%s2900 + $0x28] sm:$0xf]
      %v2912 = vld [vmem:[%s2900 + $0x2c] sm:$0xf]
      %v2913 = vld [vmem:[%s2900 + $0x30] sm:$0xf]
      %v2914 = vld [vmem:[%s2900 + $0x34] sm:$0xf]
      %v2915 = vld [vmem:[%s2900 + $0x38] sm:$0xf]
      %v2916 = vld [vmem:[%s2900 + $0x3c] sm:$0xf]
      %v2933 = vunpack.c.l.b16 %v2901
      %v2934 = vunpack.c.l.b16 %v2902
      %v2935 = vunpack.c.l.b16 %v2903
      %v2936 = vunpack.c.l.b16 %v2904
      %v2937 = vunpack.c.l.b16 %v2905
      %v2938 = vunpack.c.l.b16 %v2906
      %v2939 = vunpack.c.l.b16 %v2907
      %v2940 = vunpack.c.l.b16 %v2908
      %v2941 = vunpack.c.l.b16 %v2909
      %v2942 = vunpack.c.l.b16 %v2910
      %v2943 = vunpack.c.l.b16 %v2911
      %v2944 = vunpack.c.l.b16 %v2912
      %v2945 = vunpack.c.l.b16 %v2913
      %v2946 = vunpack.c.l.b16 %v2914
      %v2947 = vunpack.c.l.b16 %v2915
      %v2948 = vunpack.c.l.b16 %v2916
      %v2949 = vpack.c.b16 %v2934, %v2933
      %v2950 = vpack.c.b16 %v2936, %v2935
      %v2951 = vpack.c.b16 %v2938, %v2937
      %v2952 = vpack.c.b16 %v2940, %v2939
      %v2953 = vpack.c.b16 %v2942, %v2941
      %v2954 = vpack.c.b16 %v2944, %v2943
      %v2955 = vpack.c.b16 %v2946, %v2945
      %v2956 = vpack.c.b16 %v2948, %v2947
      %2965 = vmatpush.bf16.msra.mxu0 %v2956
      %2966 = vmatpush.bf16.msra.mxu0 %v2955
      %2967 = vmatpush.bf16.msra.mxu0 %v2954
      %2968 = vmatpush.bf16.msra.mxu0 %v2953
      %2969 = vmatpush.bf16.msra.mxu0 %v2952
      %2970 = vmatpush.bf16.msra.mxu0 %v2951
      %2971 = vmatpush.bf16.msra.mxu0 %v2950
      %2972 = vmatpush.bf16.msra.mxu0 %v2949
      %2973 = vmatmul.bf16.gmra.mxu0 %v2892
      %v2974 = vpop.f32.mrf.mxu0
      %v2975 = vadd.f32 0.0, %v2974
      %v2976 = vpop.f32.mrf.mxu0
      %v2977 = vadd.f32 0.0, %v2976
      %2978 = vmatmul.bf16.gmra.mxu0 %v2893
      %v2979 = vpop.f32.mrf.mxu0
      %v2980 = vadd.f32 0.0, %v2979
      %v2981 = vpop.f32.mrf.mxu0
      %v2982 = vadd.f32 0.0, %v2981
      %2983 = vmatmul.bf16.gmra.mxu0 %v2894
      %v2984 = vpop.f32.mrf.mxu0
      %v2985 = vadd.f32 0.0, %v2984
      %v2986 = vpop.f32.mrf.mxu0
      %v2987 = vadd.f32 0.0, %v2986
      %2988 = vmatmul.bf16.gmra.mxu0 %v2895
      %v2989 = vpop.f32.mrf.mxu0
      %v2990 = vadd.f32 0.0, %v2989
      %v2991 = vpop.f32.mrf.mxu0
      %v2992 = vadd.f32 0.0, %v2991
      %2993 = vmatmul.bf16.gmra.mxu0 %v2896
      %v2994 = vpop.f32.mrf.mxu0
      %v2995 = vadd.f32 0.0, %v2994
      %v2996 = vpop.f32.mrf.mxu0
      %v2997 = vadd.f32 0.0, %v2996
      %2998 = vmatmul.bf16.gmra.mxu0 %v2897
      %v2999 = vpop.f32.mrf.mxu0
      %v3000 = vadd.f32 0.0, %v2999
      %v3001 = vpop.f32.mrf.mxu0
      %v3002 = vadd.f32 0.0, %v3001
      %3003 = vmatmul.bf16.gmra.mxu0 %v2898
      %v3004 = vpop.f32.mrf.mxu0
      %v3005 = vadd.f32 0.0, %v3004
      %v3006 = vpop.f32.mrf.mxu0
      %v3007 = vadd.f32 0.0, %v3006
      %3008 = vmatmul.bf16.gmra.mxu0 %v2899
      %v3009 = vpop.f32.mrf.mxu0
      %v3010 = vadd.f32 0.0, %v3009
      %v3011 = vpop.f32.mrf.mxu0
      %v3012 = vadd.f32 0.0, %v3011
      %3013 = vdwg.mxu0
      %v3014 = vadd.f32 %v2853, %v2975
      %v3015 = vadd.f32 %v2855, %v2977
      %v3016 = vadd.f32 %v2858, %v2980
      %v3017 = vadd.f32 %v2860, %v2982
      %v3018 = vadd.f32 %v2863, %v2985
      %v3019 = vadd.f32 %v2865, %v2987
      %v3020 = vadd.f32 %v2868, %v2990
      %v3021 = vadd.f32 %v2870, %v2992
      %v3022 = vadd.f32 %v2873, %v2995
      %v3023 = vadd.f32 %v2875, %v2997
      %v3024 = vadd.f32 %v2878, %v3000
      %v3025 = vadd.f32 %v2880, %v3002
      %v3026 = vadd.f32 %v2883, %v3005
      %v3027 = vadd.f32 %v2885, %v3007
      %v3028 = vadd.f32 %v2888, %v3010
      %v3029 = vadd.f32 %v2890, %v3012
      %v3030 = vld [vmem:[#allocation3 + $0x17] sm:$0xff]
      %v3031 = vld [vmem:[#allocation3 + $0x1f] sm:$0xff]
      %v3032 = vld [vmem:[#allocation3 + $0x27] sm:$0xff]
      %v3033 = vld [vmem:[#allocation3 + $0x2f] sm:$0xff]
      %v3034 = vld [vmem:[#allocation3 + $0x37] sm:$0xff]
      %v3035 = vld [vmem:[#allocation3 + $0x3f] sm:$0xff]
      %v3036 = vld [vmem:[#allocation3 + $0x47] sm:$0xff]
      %v3037 = vld [vmem:[#allocation3 + $0x4f] sm:$0xff]
      %v3038 = vld [vmem:[#allocation3 + $0x57] sm:$0xff]
      %v3039 = vld [vmem:[#allocation3 + $0x5f] sm:$0xff]
      %v3040 = vld [vmem:[#allocation3 + $0x67] sm:$0xff]
      %v3041 = vld [vmem:[#allocation3 + $0x6f] sm:$0xff]
      %v3042 = vld [vmem:[#allocation3 + $0x77] sm:$0xff]
      %v3043 = vld [vmem:[#allocation3 + $0x7f] sm:$0xff]
      %v3044 = vld [vmem:[#allocation3 + $0x87] sm:$0xff]
      %v3045 = vld [vmem:[#allocation3 + $0x8f] sm:$0xff]
      %v3046 = vmul.f32 %v3030, %v631
      %v3047 = vmul.f32 %v3031, %v636
      %v3048 = vmul.f32 %v3032, %v641
      %v3049 = vmul.f32 %v3033, %v646
      %v3050 = vmul.f32 %v3034, %v651
      %v3051 = vmul.f32 %v3035, %v656
      %v3052 = vmul.f32 %v3036, %v661
      %v3053 = vmul.f32 %v3037, %v666
      %v3054 = vmul.f32 %v3038, %v671
      %v3055 = vmul.f32 %v3039, %v676
      %v3056 = vmul.f32 %v3040, %v681
      %v3057 = vmul.f32 %v3041, %v686
      %v3058 = vmul.f32 %v3042, %v691
      %v3059 = vmul.f32 %v3043, %v696
      %v3060 = vmul.f32 %v3044, %v701
      %v3061 = vmul.f32 %v3045, %v706
      %v3062 = vld [vmem:[#allocation3 + $0x18] sm:$0xff]
      %v3063 = vld [vmem:[#allocation3 + $0x20] sm:$0xff]
      %v3064 = vld [vmem:[#allocation3 + $0x28] sm:$0xff]
      %v3065 = vld [vmem:[#allocation3 + $0x30] sm:$0xff]
      %v3066 = vld [vmem:[#allocation3 + $0x38] sm:$0xff]
      %v3067 = vld [vmem:[#allocation3 + $0x40] sm:$0xff]
      %v3068 = vld [vmem:[#allocation3 + $0x48] sm:$0xff]
      %v3069 = vld [vmem:[#allocation3 + $0x50] sm:$0xff]
      %v3070 = vld [vmem:[#allocation3 + $0x58] sm:$0xff]
      %v3071 = vld [vmem:[#allocation3 + $0x60] sm:$0xff]
      %v3072 = vld [vmem:[#allocation3 + $0x68] sm:$0xff]
      %v3073 = vld [vmem:[#allocation3 + $0x70] sm:$0xff]
      %v3074 = vld [vmem:[#allocation3 + $0x78] sm:$0xff]
      %v3075 = vld [vmem:[#allocation3 + $0x80] sm:$0xff]
      %v3076 = vld [vmem:[#allocation3 + $0x88] sm:$0xff]
      %v3077 = vld [vmem:[#allocation3 + $0x90] sm:$0xff]
      %v3078 = vld [vmem:[#allocation3 + $0x19] sm:$0xff]
      %v3079 = vld [vmem:[#allocation3 + $0x21] sm:$0xff]
      %v3080 = vld [vmem:[#allocation3 + $0x29] sm:$0xff]
      %v3081 = vld [vmem:[#allocation3 + $0x31] sm:$0xff]
      %v3082 = vld [vmem:[#allocation3 + $0x39] sm:$0xff]
      %v3083 = vld [vmem:[#allocation3 + $0x41] sm:$0xff]
      %v3084 = vld [vmem:[#allocation3 + $0x49] sm:$0xff]
      %v3085 = vld [vmem:[#allocation3 + $0x51] sm:$0xff]
      %v3086 = vld [vmem:[#allocation3 + $0x59] sm:$0xff]
      %v3087 = vld [vmem:[#allocation3 + $0x61] sm:$0xff]
      %v3088 = vld [vmem:[#allocation3 + $0x69] sm:$0xff]
      %v3089 = vld [vmem:[#allocation3 + $0x71] sm:$0xff]
      %v3090 = vld [vmem:[#allocation3 + $0x79] sm:$0xff]
      %v3091 = vld [vmem:[#allocation3 + $0x81] sm:$0xff]
      %v3092 = vld [vmem:[#allocation3 + $0x89] sm:$0xff]
      %v3093 = vld [vmem:[#allocation3 + $0x91] sm:$0xff]
      %v3094 = vmul.f32 %v3078, %v791
      %v3095 = vmul.f32 %v3079, %v796
      %v3096 = vmul.f32 %v3080, %v801
      %v3097 = vmul.f32 %v3081, %v806
      %v3098 = vmul.f32 %v3082, %v811
      %v3099 = vmul.f32 %v3083, %v816
      %v3100 = vmul.f32 %v3084, %v821
      %v3101 = vmul.f32 %v3085, %v826
      %v3102 = vmul.f32 %v3086, %v831
      %v3103 = vmul.f32 %v3087, %v836
      %v3104 = vmul.f32 %v3088, %v841
      %v3105 = vmul.f32 %v3089, %v846
      %v3106 = vmul.f32 %v3090, %v851
      %v3107 = vmul.f32 %v3091, %v856
      %v3108 = vmul.f32 %v3092, %v861
      %v3109 = vmul.f32 %v3093, %v866
      %v3110 = vpack.c.bf16 %v3047, %v3046
      %v3111 = vpack.c.bf16 %v3049, %v3048
      %v3112 = vpack.c.bf16 %v3051, %v3050
      %v3113 = vpack.c.bf16 %v3053, %v3052
      %v3114 = vpack.c.bf16 %v3055, %v3054
      %v3115 = vpack.c.bf16 %v3057, %v3056
      %v3116 = vpack.c.bf16 %v3059, %v3058
      %v3117 = vpack.c.bf16 %v3061, %v3060
      %s3118 = scalar_lea.vmem %s7, 192
      %v3119 = vld [vmem:[%s3118] sm:$0xf]
      %v3120 = vld [vmem:[%s3118 + $0x4] sm:$0xf]
      %v3121 = vld [vmem:[%s3118 + $0x8] sm:$0xf]
      %v3122 = vld [vmem:[%s3118 + $0xc] sm:$0xf]
      %v3123 = vld [vmem:[%s3118 + $0x10] sm:$0xf]
      %v3124 = vld [vmem:[%s3118 + $0x14] sm:$0xf]
      %v3125 = vld [vmem:[%s3118 + $0x18] sm:$0xf]
      %v3126 = vld [vmem:[%s3118 + $0x1c] sm:$0xf]
      %v3127 = vld [vmem:[%s3118 + $0x20] sm:$0xf]
      %v3128 = vld [vmem:[%s3118 + $0x24] sm:$0xf]
      %v3129 = vld [vmem:[%s3118 + $0x28] sm:$0xf]
      %v3130 = vld [vmem:[%s3118 + $0x2c] sm:$0xf]
      %v3131 = vld [vmem:[%s3118 + $0x30] sm:$0xf]
      %v3132 = vld [vmem:[%s3118 + $0x34] sm:$0xf]
      %v3133 = vld [vmem:[%s3118 + $0x38] sm:$0xf]
      %v3134 = vld [vmem:[%s3118 + $0x3c] sm:$0xf]
      %v3151 = vunpack.c.l.b16 %v3119
      %v3152 = vunpack.c.l.b16 %v3120
      %v3153 = vunpack.c.l.b16 %v3121
      %v3154 = vunpack.c.l.b16 %v3122
      %v3155 = vunpack.c.l.b16 %v3123
      %v3156 = vunpack.c.l.b16 %v3124
      %v3157 = vunpack.c.l.b16 %v3125
      %v3158 = vunpack.c.l.b16 %v3126
      %v3159 = vunpack.c.l.b16 %v3127
      %v3160 = vunpack.c.l.b16 %v3128
      %v3161 = vunpack.c.l.b16 %v3129
      %v3162 = vunpack.c.l.b16 %v3130
      %v3163 = vunpack.c.l.b16 %v3131
      %v3164 = vunpack.c.l.b16 %v3132
      %v3165 = vunpack.c.l.b16 %v3133
      %v3166 = vunpack.c.l.b16 %v3134
      %v3167 = vpack.c.b16 %v3152, %v3151
      %v3168 = vpack.c.b16 %v3154, %v3153
      %v3169 = vpack.c.b16 %v3156, %v3155
      %v3170 = vpack.c.b16 %v3158, %v3157
      %v3171 = vpack.c.b16 %v3160, %v3159
      %v3172 = vpack.c.b16 %v3162, %v3161
      %v3173 = vpack.c.b16 %v3164, %v3163
      %v3174 = vpack.c.b16 %v3166, %v3165
      %3183 = vmatpush.bf16.msra.mxu0 %v3174
      %3184 = vmatpush.bf16.msra.mxu0 %v3173
      %3185 = vmatpush.bf16.msra.mxu0 %v3172
      %3186 = vmatpush.bf16.msra.mxu0 %v3171
      %3187 = vmatpush.bf16.msra.mxu0 %v3170
      %3188 = vmatpush.bf16.msra.mxu0 %v3169
      %3189 = vmatpush.bf16.msra.mxu0 %v3168
      %3190 = vmatpush.bf16.msra.mxu0 %v3167
      %3191 = vmatmul.bf16.gmra.mxu0 %v3110
      %v3192 = vpop.f32.mrf.mxu0
      %v3193 = vadd.f32 0.0, %v3192
      %v3194 = vpop.f32.mrf.mxu0
      %v3195 = vadd.f32 0.0, %v3194
      %3196 = vmatmul.bf16.gmra.mxu0 %v3111
      %v3197 = vpop.f32.mrf.mxu0
      %v3198 = vadd.f32 0.0, %v3197
      %v3199 = vpop.f32.mrf.mxu0
      %v3200 = vadd.f32 0.0, %v3199
      %3201 = vmatmul.bf16.gmra.mxu0 %v3112
      %v3202 = vpop.f32.mrf.mxu0
      %v3203 = vadd.f32 0.0, %v3202
      %v3204 = vpop.f32.mrf.mxu0
      %v3205 = vadd.f32 0.0, %v3204
      %3206 = vmatmul.bf16.gmra.mxu0 %v3113
      %v3207 = vpop.f32.mrf.mxu0
      %v3208 = vadd.f32 0.0, %v3207
      %v3209 = vpop.f32.mrf.mxu0
      %v3210 = vadd.f32 0.0, %v3209
      %3211 = vmatmul.bf16.gmra.mxu0 %v3114
      %v3212 = vpop.f32.mrf.mxu0
      %v3213 = vadd.f32 0.0, %v3212
      %v3214 = vpop.f32.mrf.mxu0
      %v3215 = vadd.f32 0.0, %v3214
      %3216 = vmatmul.bf16.gmra.mxu0 %v3115
      %v3217 = vpop.f32.mrf.mxu0
      %v3218 = vadd.f32 0.0, %v3217
      %v3219 = vpop.f32.mrf.mxu0
      %v3220 = vadd.f32 0.0, %v3219
      %3221 = vmatmul.bf16.gmra.mxu0 %v3116
      %v3222 = vpop.f32.mrf.mxu0
      %v3223 = vadd.f32 0.0, %v3222
      %v3224 = vpop.f32.mrf.mxu0
      %v3225 = vadd.f32 0.0, %v3224
      %3226 = vmatmul.bf16.gmra.mxu0 %v3117
      %v3227 = vpop.f32.mrf.mxu0
      %v3228 = vadd.f32 0.0, %v3227
      %v3229 = vpop.f32.mrf.mxu0
      %v3230 = vadd.f32 0.0, %v3229
      %3231 = vdwg.mxu0
      %v3232 = vadd.f32 %v3014, %v3193
      %v3233 = vadd.f32 %v3015, %v3195
      %v3234 = vadd.f32 %v3016, %v3198
      %v3235 = vadd.f32 %v3017, %v3200
      %v3236 = vadd.f32 %v3018, %v3203
      %v3237 = vadd.f32 %v3019, %v3205
      %v3238 = vadd.f32 %v3020, %v3208
      %v3239 = vadd.f32 %v3021, %v3210
      %v3240 = vadd.f32 %v3022, %v3213
      %v3241 = vadd.f32 %v3023, %v3215
      %v3242 = vadd.f32 %v3024, %v3218
      %v3243 = vadd.f32 %v3025, %v3220
      %v3244 = vadd.f32 %v3026, %v3223
      %v3245 = vadd.f32 %v3027, %v3225
      %v3246 = vadd.f32 %v3028, %v3228
      %v3247 = vadd.f32 %v3029, %v3230
      %v3248 = vpack.c.bf16 %v3063, %v3062
      %v3249 = vpack.c.bf16 %v3065, %v3064
      %v3250 = vpack.c.bf16 %v3067, %v3066
      %v3251 = vpack.c.bf16 %v3069, %v3068
      %v3252 = vpack.c.bf16 %v3071, %v3070
      %v3253 = vpack.c.bf16 %v3073, %v3072
      %v3254 = vpack.c.bf16 %v3075, %v3074
      %v3255 = vpack.c.bf16 %v3077, %v3076
      %s3256 = scalar_lea.vmem %s7, 256
      %v3257 = vld [vmem:[%s3256] sm:$0xf]
      %v3258 = vld [vmem:[%s3256 + $0x4] sm:$0xf]
      %v3259 = vld [vmem:[%s3256 + $0x8] sm:$0xf]
      %v3260 = vld [vmem:[%s3256 + $0xc] sm:$0xf]
      %v3261 = vld [vmem:[%s3256 + $0x10] sm:$0xf]
      %v3262 = vld [vmem:[%s3256 + $0x14] sm:$0xf]
      %v3263 = vld [vmem:[%s3256 + $0x18] sm:$0xf]
      %v3264 = vld [vmem:[%s3256 + $0x1c] sm:$0xf]
      %v3265 = vld [vmem:[%s3256 + $0x20] sm:$0xf]
      %v3266 = vld [vmem:[%s3256 + $0x24] sm:$0xf]
      %v3267 = vld [vmem:[%s3256 + $0x28] sm:$0xf]
      %v3268 = vld [vmem:[%s3256 + $0x2c] sm:$0xf]
      %v3269 = vld [vmem:[%s3256 + $0x30] sm:$0xf]
      %v3270 = vld [vmem:[%s3256 + $0x34] sm:$0xf]
      %v3271 = vld [vmem:[%s3256 + $0x38] sm:$0xf]
      %v3272 = vld [vmem:[%s3256 + $0x3c] sm:$0xf]
      %v3289 = vunpack.c.l.b16 %v3257
      %v3290 = vunpack.c.l.b16 %v3258
      %v3291 = vunpack.c.l.b16 %v3259
      %v3292 = vunpack.c.l.b16 %v3260
      %v3293 = vunpack.c.l.b16 %v3261
      %v3294 = vunpack.c.l.b16 %v3262
      %v3295 = vunpack.c.l.b16 %v3263
      %v3296 = vunpack.c.l.b16 %v3264
      %v3297 = vunpack.c.l.b16 %v3265
      %v3298 = vunpack.c.l.b16 %v3266
      %v3299 = vunpack.c.l.b16 %v3267
      %v3300 = vunpack.c.l.b16 %v3268
      %v3301 = vunpack.c.l.b16 %v3269
      %v3302 = vunpack.c.l.b16 %v3270
      %v3303 = vunpack.c.l.b16 %v3271
      %v3304 = vunpack.c.l.b16 %v3272
      %v3305 = vpack.c.b16 %v3290, %v3289
      %v3306 = vpack.c.b16 %v3292, %v3291
      %v3307 = vpack.c.b16 %v3294, %v3293
      %v3308 = vpack.c.b16 %v3296, %v3295
      %v3309 = vpack.c.b16 %v3298, %v3297
      %v3310 = vpack.c.b16 %v3300, %v3299
      %v3311 = vpack.c.b16 %v3302, %v3301
      %v3312 = vpack.c.b16 %v3304, %v3303
      %3321 = vmatpush.bf16.msra.mxu0 %v3312
      %3322 = vmatpush.bf16.msra.mxu0 %v3311
      %3323 = vmatpush.bf16.msra.mxu0 %v3310
      %3324 = vmatpush.bf16.msra.mxu0 %v3309
      %3325 = vmatpush.bf16.msra.mxu0 %v3308
      %3326 = vmatpush.bf16.msra.mxu0 %v3307
      %3327 = vmatpush.bf16.msra.mxu0 %v3306
      %3328 = vmatpush.bf16.msra.mxu0 %v3305
      %3329 = vmatmul.bf16.gmra.mxu0 %v3248
      %v3330 = vpop.f32.mrf.mxu0
      %v3331 = vadd.f32 0.0, %v3330
      %v3332 = vpop.f32.mrf.mxu0
      %v3333 = vadd.f32 0.0, %v3332
      %3334 = vmatmul.bf16.gmra.mxu0 %v3249
      %v3335 = vpop.f32.mrf.mxu0
      %v3336 = vadd.f32 0.0, %v3335
      %v3337 = vpop.f32.mrf.mxu0
      %v3338 = vadd.f32 0.0, %v3337
      %3339 = vmatmul.bf16.gmra.mxu0 %v3250
      %v3340 = vpop.f32.mrf.mxu0
      %v3341 = vadd.f32 0.0, %v3340
      %v3342 = vpop.f32.mrf.mxu0
      %v3343 = vadd.f32 0.0, %v3342
      %3344 = vmatmul.bf16.gmra.mxu0 %v3251
      %v3345 = vpop.f32.mrf.mxu0
      %v3346 = vadd.f32 0.0, %v3345
      %v3347 = vpop.f32.mrf.mxu0
      %v3348 = vadd.f32 0.0, %v3347
      %3349 = vmatmul.bf16.gmra.mxu0 %v3252
      %v3350 = vpop.f32.mrf.mxu0
      %v3351 = vadd.f32 0.0, %v3350
      %v3352 = vpop.f32.mrf.mxu0
      %v3353 = vadd.f32 0.0, %v3352
      %3354 = vmatmul.bf16.gmra.mxu0 %v3253
      %v3355 = vpop.f32.mrf.mxu0
      %v3356 = vadd.f32 0.0, %v3355
      %v3357 = vpop.f32.mrf.mxu0
      %v3358 = vadd.f32 0.0, %v3357
      %3359 = vmatmul.bf16.gmra.mxu0 %v3254
      %v3360 = vpop.f32.mrf.mxu0
      %v3361 = vadd.f32 0.0, %v3360
      %v3362 = vpop.f32.mrf.mxu0
      %v3363 = vadd.f32 0.0, %v3362
      %3364 = vmatmul.bf16.gmra.mxu0 %v3255
      %v3365 = vpop.f32.mrf.mxu0
      %v3366 = vadd.f32 0.0, %v3365
      %v3367 = vpop.f32.mrf.mxu0
      %v3368 = vadd.f32 0.0, %v3367
      %3369 = vdwg.mxu0
      %v3370 = vadd.f32 %v3232, %v3331
      %v3371 = vadd.f32 %v3233, %v3333
      %v3372 = vadd.f32 %v3234, %v3336
      %v3373 = vadd.f32 %v3235, %v3338
      %v3374 = vadd.f32 %v3236, %v3341
      %v3375 = vadd.f32 %v3237, %v3343
      %v3376 = vadd.f32 %v3238, %v3346
      %v3377 = vadd.f32 %v3239, %v3348
      %v3378 = vadd.f32 %v3240, %v3351
      %v3379 = vadd.f32 %v3241, %v3353
      %v3380 = vadd.f32 %v3242, %v3356
      %v3381 = vadd.f32 %v3243, %v3358
      %v3382 = vadd.f32 %v3244, %v3361
      %v3383 = vadd.f32 %v3245, %v3363
      %v3384 = vadd.f32 %v3246, %v3366
      %v3385 = vadd.f32 %v3247, %v3368
      %v3386 = vpack.c.bf16 %v3095, %v3094
      %v3387 = vpack.c.bf16 %v3097, %v3096
      %v3388 = vpack.c.bf16 %v3099, %v3098
      %v3389 = vpack.c.bf16 %v3101, %v3100
      %v3390 = vpack.c.bf16 %v3103, %v3102
      %v3391 = vpack.c.bf16 %v3105, %v3104
      %v3392 = vpack.c.bf16 %v3107, %v3106
      %v3393 = vpack.c.bf16 %v3109, %v3108
      %s3394 = scalar_lea.vmem %s7, 320
      %v3395 = vld [vmem:[%s3394] sm:$0xf]
      %v3396 = vld [vmem:[%s3394 + $0x4] sm:$0xf]
      %v3397 = vld [vmem:[%s3394 + $0x8] sm:$0xf]
      %v3398 = vld [vmem:[%s3394 + $0xc] sm:$0xf]
      %v3399 = vld [vmem:[%s3394 + $0x10] sm:$0xf]
      %v3400 = vld [vmem:[%s3394 + $0x14] sm:$0xf]
      %v3401 = vld [vmem:[%s3394 + $0x18] sm:$0xf]
      %v3402 = vld [vmem:[%s3394 + $0x1c] sm:$0xf]
      %v3403 = vld [vmem:[%s3394 + $0x20] sm:$0xf]
      %v3404 = vld [vmem:[%s3394 + $0x24] sm:$0xf]
      %v3405 = vld [vmem:[%s3394 + $0x28] sm:$0xf]
      %v3406 = vld [vmem:[%s3394 + $0x2c] sm:$0xf]
      %v3407 = vld [vmem:[%s3394 + $0x30] sm:$0xf]
      %v3408 = vld [vmem:[%s3394 + $0x34] sm:$0xf]
      %v3409 = vld [vmem:[%s3394 + $0x38] sm:$0xf]
      %v3410 = vld [vmem:[%s3394 + $0x3c] sm:$0xf]
      %v3427 = vunpack.c.l.b16 %v3395
      %v3428 = vunpack.c.l.b16 %v3396
      %v3429 = vunpack.c.l.b16 %v3397
      %v3430 = vunpack.c.l.b16 %v3398
      %v3431 = vunpack.c.l.b16 %v3399
      %v3432 = vunpack.c.l.b16 %v3400
      %v3433 = vunpack.c.l.b16 %v3401
      %v3434 = vunpack.c.l.b16 %v3402
      %v3435 = vunpack.c.l.b16 %v3403
      %v3436 = vunpack.c.l.b16 %v3404
      %v3437 = vunpack.c.l.b16 %v3405
      %v3438 = vunpack.c.l.b16 %v3406
      %v3439 = vunpack.c.l.b16 %v3407
      %v3440 = vunpack.c.l.b16 %v3408
      %v3441 = vunpack.c.l.b16 %v3409
      %v3442 = vunpack.c.l.b16 %v3410
      %v3443 = vpack.c.b16 %v3428, %v3427
      %v3444 = vpack.c.b16 %v3430, %v3429
      %v3445 = vpack.c.b16 %v3432, %v3431
      %v3446 = vpack.c.b16 %v3434, %v3433
      %v3447 = vpack.c.b16 %v3436, %v3435
      %v3448 = vpack.c.b16 %v3438, %v3437
      %v3449 = vpack.c.b16 %v3440, %v3439
      %v3450 = vpack.c.b16 %v3442, %v3441
      %3459 = vmatpush.bf16.msra.mxu0 %v3450
      %3460 = vmatpush.bf16.msra.mxu0 %v3449
      %3461 = vmatpush.bf16.msra.mxu0 %v3448
      %3462 = vmatpush.bf16.msra.mxu0 %v3447
      %3463 = vmatpush.bf16.msra.mxu0 %v3446
      %3464 = vmatpush.bf16.msra.mxu0 %v3445
      %3465 = vmatpush.bf16.msra.mxu0 %v3444
      %3466 = vmatpush.bf16.msra.mxu0 %v3443
      %3467 = vmatmul.bf16.gmra.mxu0 %v3386
      %v3468 = vpop.f32.mrf.mxu0
      %v3469 = vadd.f32 0.0, %v3468
      %v3470 = vpop.f32.mrf.mxu0
      %v3471 = vadd.f32 0.0, %v3470
      %3472 = vmatmul.bf16.gmra.mxu0 %v3387
      %v3473 = vpop.f32.mrf.mxu0
      %v3474 = vadd.f32 0.0, %v3473
      %v3475 = vpop.f32.mrf.mxu0
      %v3476 = vadd.f32 0.0, %v3475
      %3477 = vmatmul.bf16.gmra.mxu0 %v3388
      %v3478 = vpop.f32.mrf.mxu0
      %v3479 = vadd.f32 0.0, %v3478
      %v3480 = vpop.f32.mrf.mxu0
      %v3481 = vadd.f32 0.0, %v3480
      %3482 = vmatmul.bf16.gmra.mxu0 %v3389
      %v3483 = vpop.f32.mrf.mxu0
      %v3484 = vadd.f32 0.0, %v3483
      %v3485 = vpop.f32.mrf.mxu0
      %v3486 = vadd.f32 0.0, %v3485
      %3487 = vmatmul.bf16.gmra.mxu0 %v3390
      %v3488 = vpop.f32.mrf.mxu0
      %v3489 = vadd.f32 0.0, %v3488
      %v3490 = vpop.f32.mrf.mxu0
      %v3491 = vadd.f32 0.0, %v3490
      %3492 = vmatmul.bf16.gmra.mxu0 %v3391
      %v3493 = vpop.f32.mrf.mxu0
      %v3494 = vadd.f32 0.0, %v3493
      %v3495 = vpop.f32.mrf.mxu0
      %v3496 = vadd.f32 0.0, %v3495
      %3497 = vmatmul.bf16.gmra.mxu0 %v3392
      %v3498 = vpop.f32.mrf.mxu0
      %v3499 = vadd.f32 0.0, %v3498
      %v3500 = vpop.f32.mrf.mxu0
      %v3501 = vadd.f32 0.0, %v3500
      %3502 = vmatmul.bf16.gmra.mxu0 %v3393
      %v3503 = vpop.f32.mrf.mxu0
      %v3504 = vadd.f32 0.0, %v3503
      %v3505 = vpop.f32.mrf.mxu0
      %v3506 = vadd.f32 0.0, %v3505
      %3507 = vdwg.mxu0
      %v3508 = vadd.f32 %v3370, %v3469
      %v3509 = vadd.f32 %v3371, %v3471
      %v3510 = vadd.f32 %v3372, %v3474
      %v3511 = vadd.f32 %v3373, %v3476
      %v3512 = vadd.f32 %v3374, %v3479
      %v3513 = vadd.f32 %v3375, %v3481
      %v3514 = vadd.f32 %v3376, %v3484
      %v3515 = vadd.f32 %v3377, %v3486
      %v3516 = vadd.f32 %v3378, %v3489
      %v3517 = vadd.f32 %v3379, %v3491
      %v3518 = vadd.f32 %v3380, %v3494
      %v3519 = vadd.f32 %v3381, %v3496
      %v3520 = vadd.f32 %v3382, %v3499
      %v3521 = vadd.f32 %v3383, %v3501
      %v3522 = vadd.f32 %v3384, %v3504
      %v3523 = vadd.f32 %v3385, %v3506
      %v3524 = vld [vmem:[#allocation3 + $0x27] sm:$0xff]
      %v3525 = vld [vmem:[#allocation3 + $0x2f] sm:$0xff]
      %v3526 = vld [vmem:[#allocation3 + $0x37] sm:$0xff]
      %v3527 = vld [vmem:[#allocation3 + $0x3f] sm:$0xff]
      %v3528 = vld [vmem:[#allocation3 + $0x47] sm:$0xff]
      %v3529 = vld [vmem:[#allocation3 + $0x4f] sm:$0xff]
      %v3530 = vld [vmem:[#allocation3 + $0x57] sm:$0xff]
      %v3531 = vld [vmem:[#allocation3 + $0x5f] sm:$0xff]
      %v3532 = vld [vmem:[#allocation3 + $0x67] sm:$0xff]
      %v3533 = vld [vmem:[#allocation3 + $0x6f] sm:$0xff]
      %v3534 = vld [vmem:[#allocation3 + $0x77] sm:$0xff]
      %v3535 = vld [vmem:[#allocation3 + $0x7f] sm:$0xff]
      %v3536 = vld [vmem:[#allocation3 + $0x87] sm:$0xff]
      %v3537 = vld [vmem:[#allocation3 + $0x8f] sm:$0xff]
      %v3538 = vld [vmem:[#allocation3 + $0x97] sm:$0xff]
      %v3539 = vld [vmem:[#allocation3 + $0x9f] sm:$0xff]
      %v3540 = vmul.f32 %v3524, %v631
      %v3541 = vmul.f32 %v3525, %v636
      %v3542 = vmul.f32 %v3526, %v641
      %v3543 = vmul.f32 %v3527, %v646
      %v3544 = vmul.f32 %v3528, %v651
      %v3545 = vmul.f32 %v3529, %v656
      %v3546 = vmul.f32 %v3530, %v661
      %v3547 = vmul.f32 %v3531, %v666
      %v3548 = vmul.f32 %v3532, %v671
      %v3549 = vmul.f32 %v3533, %v676
      %v3550 = vmul.f32 %v3534, %v681
      %v3551 = vmul.f32 %v3535, %v686
      %v3552 = vmul.f32 %v3536, %v691
      %v3553 = vmul.f32 %v3537, %v696
      %v3554 = vmul.f32 %v3538, %v701
      %v3555 = vmul.f32 %v3539, %v706
      %v3556 = vld [vmem:[#allocation3 + $0x28] sm:$0xff]
      %v3557 = vld [vmem:[#allocation3 + $0x30] sm:$0xff]
      %v3558 = vld [vmem:[#allocation3 + $0x38] sm:$0xff]
      %v3559 = vld [vmem:[#allocation3 + $0x40] sm:$0xff]
      %v3560 = vld [vmem:[#allocation3 + $0x48] sm:$0xff]
      %v3561 = vld [vmem:[#allocation3 + $0x50] sm:$0xff]
      %v3562 = vld [vmem:[#allocation3 + $0x58] sm:$0xff]
      %v3563 = vld [vmem:[#allocation3 + $0x60] sm:$0xff]
      %v3564 = vld [vmem:[#allocation3 + $0x68] sm:$0xff]
      %v3565 = vld [vmem:[#allocation3 + $0x70] sm:$0xff]
      %v3566 = vld [vmem:[#allocation3 + $0x78] sm:$0xff]
      %v3567 = vld [vmem:[#allocation3 + $0x80] sm:$0xff]
      %v3568 = vld [vmem:[#allocation3 + $0x88] sm:$0xff]
      %v3569 = vld [vmem:[#allocation3 + $0x90] sm:$0xff]
      %v3570 = vld [vmem:[#allocation3 + $0x98] sm:$0xff]
      %v3571 = vld [vmem:[#allocation3 + $0xa0] sm:$0xff]
      %v3572 = vld [vmem:[#allocation3 + $0x29] sm:$0xff]
      %v3573 = vld [vmem:[#allocation3 + $0x31] sm:$0xff]
      %v3574 = vld [vmem:[#allocation3 + $0x39] sm:$0xff]
      %v3575 = vld [vmem:[#allocation3 + $0x41] sm:$0xff]
      %v3576 = vld [vmem:[#allocation3 + $0x49] sm:$0xff]
      %v3577 = vld [vmem:[#allocation3 + $0x51] sm:$0xff]
      %v3578 = vld [vmem:[#allocation3 + $0x59] sm:$0xff]
      %v3579 = vld [vmem:[#allocation3 + $0x61] sm:$0xff]
      %v3580 = vld [vmem:[#allocation3 + $0x69] sm:$0xff]
      %v3581 = vld [vmem:[#allocation3 + $0x71] sm:$0xff]
      %v3582 = vld [vmem:[#allocation3 + $0x79] sm:$0xff]
      %v3583 = vld [vmem:[#allocation3 + $0x81] sm:$0xff]
      %v3584 = vld [vmem:[#allocation3 + $0x89] sm:$0xff]
      %v3585 = vld [vmem:[#allocation3 + $0x91] sm:$0xff]
      %v3586 = vld [vmem:[#allocation3 + $0x99] sm:$0xff]
      %v3587 = vld [vmem:[#allocation3 + $0xa1] sm:$0xff]
      %v3588 = vmul.f32 %v3572, %v791
      %v3589 = vmul.f32 %v3573, %v796
      %v3590 = vmul.f32 %v3574, %v801
      %v3591 = vmul.f32 %v3575, %v806
      %v3592 = vmul.f32 %v3576, %v811
      %v3593 = vmul.f32 %v3577, %v816
      %v3594 = vmul.f32 %v3578, %v821
      %v3595 = vmul.f32 %v3579, %v826
      %v3596 = vmul.f32 %v3580, %v831
      %v3597 = vmul.f32 %v3581, %v836
      %v3598 = vmul.f32 %v3582, %v841
      %v3599 = vmul.f32 %v3583, %v846
      %v3600 = vmul.f32 %v3584, %v851
      %v3601 = vmul.f32 %v3585, %v856
      %v3602 = vmul.f32 %v3586, %v861
      %v3603 = vmul.f32 %v3587, %v866
      %v3604 = vpack.c.bf16 %v3541, %v3540
      %v3605 = vpack.c.bf16 %v3543, %v3542
      %v3606 = vpack.c.bf16 %v3545, %v3544
      %v3607 = vpack.c.bf16 %v3547, %v3546
      %v3608 = vpack.c.bf16 %v3549, %v3548
      %v3609 = vpack.c.bf16 %v3551, %v3550
      %v3610 = vpack.c.bf16 %v3553, %v3552
      %v3611 = vpack.c.bf16 %v3555, %v3554
      %s3612 = scalar_lea.vmem %s7, 384
      %v3613 = vld [vmem:[%s3612] sm:$0xf]
      %v3614 = vld [vmem:[%s3612 + $0x4] sm:$0xf]
      %v3615 = vld [vmem:[%s3612 + $0x8] sm:$0xf]
      %v3616 = vld [vmem:[%s3612 + $0xc] sm:$0xf]
      %v3617 = vld [vmem:[%s3612 + $0x10] sm:$0xf]
      %v3618 = vld [vmem:[%s3612 + $0x14] sm:$0xf]
      %v3619 = vld [vmem:[%s3612 + $0x18] sm:$0xf]
      %v3620 = vld [vmem:[%s3612 + $0x1c] sm:$0xf]
      %v3621 = vld [vmem:[%s3612 + $0x20] sm:$0xf]
      %v3622 = vld [vmem:[%s3612 + $0x24] sm:$0xf]
      %v3623 = vld [vmem:[%s3612 + $0x28] sm:$0xf]
      %v3624 = vld [vmem:[%s3612 + $0x2c] sm:$0xf]
      %v3625 = vld [vmem:[%s3612 + $0x30] sm:$0xf]
      %v3626 = vld [vmem:[%s3612 + $0x34] sm:$0xf]
      %v3627 = vld [vmem:[%s3612 + $0x38] sm:$0xf]
      %v3628 = vld [vmem:[%s3612 + $0x3c] sm:$0xf]
      %v3645 = vunpack.c.l.b16 %v3613
      %v3646 = vunpack.c.l.b16 %v3614
      %v3647 = vunpack.c.l.b16 %v3615
      %v3648 = vunpack.c.l.b16 %v3616
      %v3649 = vunpack.c.l.b16 %v3617
      %v3650 = vunpack.c.l.b16 %v3618
      %v3651 = vunpack.c.l.b16 %v3619
      %v3652 = vunpack.c.l.b16 %v3620
      %v3653 = vunpack.c.l.b16 %v3621
      %v3654 = vunpack.c.l.b16 %v3622
      %v3655 = vunpack.c.l.b16 %v3623
      %v3656 = vunpack.c.l.b16 %v3624
      %v3657 = vunpack.c.l.b16 %v3625
      %v3658 = vunpack.c.l.b16 %v3626
      %v3659 = vunpack.c.l.b16 %v3627
      %v3660 = vunpack.c.l.b16 %v3628
      %v3661 = vpack.c.b16 %v3646, %v3645
      %v3662 = vpack.c.b16 %v3648, %v3647
      %v3663 = vpack.c.b16 %v3650, %v3649
      %v3664 = vpack.c.b16 %v3652, %v3651
      %v3665 = vpack.c.b16 %v3654, %v3653
      %v3666 = vpack.c.b16 %v3656, %v3655
      %v3667 = vpack.c.b16 %v3658, %v3657
      %v3668 = vpack.c.b16 %v3660, %v3659
      %3677 = vmatpush.bf16.msra.mxu0 %v3668
      %3678 = vmatpush.bf16.msra.mxu0 %v3667
      %3679 = vmatpush.bf16.msra.mxu0 %v3666
      %3680 = vmatpush.bf16.msra.mxu0 %v3665
      %3681 = vmatpush.bf16.msra.mxu0 %v3664
      %3682 = vmatpush.bf16.msra.mxu0 %v3663
      %3683 = vmatpush.bf16.msra.mxu0 %v3662
      %3684 = vmatpush.bf16.msra.mxu0 %v3661
      %3685 = vmatmul.bf16.gmra.mxu0 %v3604
      %v3686 = vpop.f32.mrf.mxu0
      %v3687 = vadd.f32 0.0, %v3686
      %v3688 = vpop.f32.mrf.mxu0
      %v3689 = vadd.f32 0.0, %v3688
      %3690 = vmatmul.bf16.gmra.mxu0 %v3605
      %v3691 = vpop.f32.mrf.mxu0
      %v3692 = vadd.f32 0.0, %v3691
      %v3693 = vpop.f32.mrf.mxu0
      %v3694 = vadd.f32 0.0, %v3693
      %3695 = vmatmul.bf16.gmra.mxu0 %v3606
      %v3696 = vpop.f32.mrf.mxu0
      %v3697 = vadd.f32 0.0, %v3696
      %v3698 = vpop.f32.mrf.mxu0
      %v3699 = vadd.f32 0.0, %v3698
      %3700 = vmatmul.bf16.gmra.mxu0 %v3607
      %v3701 = vpop.f32.mrf.mxu0
      %v3702 = vadd.f32 0.0, %v3701
      %v3703 = vpop.f32.mrf.mxu0
      %v3704 = vadd.f32 0.0, %v3703
      %3705 = vmatmul.bf16.gmra.mxu0 %v3608
      %v3706 = vpop.f32.mrf.mxu0
      %v3707 = vadd.f32 0.0, %v3706
      %v3708 = vpop.f32.mrf.mxu0
      %v3709 = vadd.f32 0.0, %v3708
      %3710 = vmatmul.bf16.gmra.mxu0 %v3609
      %v3711 = vpop.f32.mrf.mxu0
      %v3712 = vadd.f32 0.0, %v3711
      %v3713 = vpop.f32.mrf.mxu0
      %v3714 = vadd.f32 0.0, %v3713
      %3715 = vmatmul.bf16.gmra.mxu0 %v3610
      %v3716 = vpop.f32.mrf.mxu0
      %v3717 = vadd.f32 0.0, %v3716
      %v3718 = vpop.f32.mrf.mxu0
      %v3719 = vadd.f32 0.0, %v3718
      %3720 = vmatmul.bf16.gmra.mxu0 %v3611
      %v3721 = vpop.f32.mrf.mxu0
      %v3722 = vadd.f32 0.0, %v3721
      %v3723 = vpop.f32.mrf.mxu0
      %v3724 = vadd.f32 0.0, %v3723
      %3725 = vdwg.mxu0
      %v3726 = vadd.f32 %v3508, %v3687
      %v3727 = vadd.f32 %v3509, %v3689
      %v3728 = vadd.f32 %v3510, %v3692
      %v3729 = vadd.f32 %v3511, %v3694
      %v3730 = vadd.f32 %v3512, %v3697
      %v3731 = vadd.f32 %v3513, %v3699
      %v3732 = vadd.f32 %v3514, %v3702
      %v3733 = vadd.f32 %v3515, %v3704
      %v3734 = vadd.f32 %v3516, %v3707
      %v3735 = vadd.f32 %v3517, %v3709
      %v3736 = vadd.f32 %v3518, %v3712
      %v3737 = vadd.f32 %v3519, %v3714
      %v3738 = vadd.f32 %v3520, %v3717
      %v3739 = vadd.f32 %v3521, %v3719
      %v3740 = vadd.f32 %v3522, %v3722
      %v3741 = vadd.f32 %v3523, %v3724
      %v3742 = vpack.c.bf16 %v3557, %v3556
      %v3743 = vpack.c.bf16 %v3559, %v3558
      %v3744 = vpack.c.bf16 %v3561, %v3560
      %v3745 = vpack.c.bf16 %v3563, %v3562
      %v3746 = vpack.c.bf16 %v3565, %v3564
      %v3747 = vpack.c.bf16 %v3567, %v3566
      %v3748 = vpack.c.bf16 %v3569, %v3568
      %v3749 = vpack.c.bf16 %v3571, %v3570
      %s3750 = scalar_lea.vmem %s7, 448
      %v3751 = vld [vmem:[%s3750] sm:$0xf]
      %v3752 = vld [vmem:[%s3750 + $0x4] sm:$0xf]
      %v3753 = vld [vmem:[%s3750 + $0x8] sm:$0xf]
      %v3754 = vld [vmem:[%s3750 + $0xc] sm:$0xf]
      %v3755 = vld [vmem:[%s3750 + $0x10] sm:$0xf]
      %v3756 = vld [vmem:[%s3750 + $0x14] sm:$0xf]
      %v3757 = vld [vmem:[%s3750 + $0x18] sm:$0xf]
      %v3758 = vld [vmem:[%s3750 + $0x1c] sm:$0xf]
      %v3759 = vld [vmem:[%s3750 + $0x20] sm:$0xf]
      %v3760 = vld [vmem:[%s3750 + $0x24] sm:$0xf]
      %v3761 = vld [vmem:[%s3750 + $0x28] sm:$0xf]
      %v3762 = vld [vmem:[%s3750 + $0x2c] sm:$0xf]
      %v3763 = vld [vmem:[%s3750 + $0x30] sm:$0xf]
      %v3764 = vld [vmem:[%s3750 + $0x34] sm:$0xf]
      %v3765 = vld [vmem:[%s3750 + $0x38] sm:$0xf]
      %v3766 = vld [vmem:[%s3750 + $0x3c] sm:$0xf]
      %v3783 = vunpack.c.l.b16 %v3751
      %v3784 = vunpack.c.l.b16 %v3752
      %v3785 = vunpack.c.l.b16 %v3753
      %v3786 = vunpack.c.l.b16 %v3754
      %v3787 = vunpack.c.l.b16 %v3755
      %v3788 = vunpack.c.l.b16 %v3756
      %v3789 = vunpack.c.l.b16 %v3757
      %v3790 = vunpack.c.l.b16 %v3758
      %v3791 = vunpack.c.l.b16 %v3759
      %v3792 = vunpack.c.l.b16 %v3760
      %v3793 = vunpack.c.l.b16 %v3761
      %v3794 = vunpack.c.l.b16 %v3762
      %v3795 = vunpack.c.l.b16 %v3763
      %v3796 = vunpack.c.l.b16 %v3764
      %v3797 = vunpack.c.l.b16 %v3765
      %v3798 = vunpack.c.l.b16 %v3766
      %v3799 = vpack.c.b16 %v3784, %v3783
      %v3800 = vpack.c.b16 %v3786, %v3785
      %v3801 = vpack.c.b16 %v3788, %v3787
      %v3802 = vpack.c.b16 %v3790, %v3789
      %v3803 = vpack.c.b16 %v3792, %v3791
      %v3804 = vpack.c.b16 %v3794, %v3793
      %v3805 = vpack.c.b16 %v3796, %v3795
      %v3806 = vpack.c.b16 %v3798, %v3797
      %3815 = vmatpush.bf16.msra.mxu0 %v3806
      %3816 = vmatpush.bf16.msra.mxu0 %v3805
      %3817 = vmatpush.bf16.msra.mxu0 %v3804
      %3818 = vmatpush.bf16.msra.mxu0 %v3803
      %3819 = vmatpush.bf16.msra.mxu0 %v3802
      %3820 = vmatpush.bf16.msra.mxu0 %v3801
      %3821 = vmatpush.bf16.msra.mxu0 %v3800
      %3822 = vmatpush.bf16.msra.mxu0 %v3799
      %3823 = vmatmul.bf16.gmra.mxu0 %v3742
      %v3824 = vpop.f32.mrf.mxu0
      %v3825 = vadd.f32 0.0, %v3824
      %v3826 = vpop.f32.mrf.mxu0
      %v3827 = vadd.f32 0.0, %v3826
      %3828 = vmatmul.bf16.gmra.mxu0 %v3743
      %v3829 = vpop.f32.mrf.mxu0
      %v3830 = vadd.f32 0.0, %v3829
      %v3831 = vpop.f32.mrf.mxu0
      %v3832 = vadd.f32 0.0, %v3831
      %3833 = vmatmul.bf16.gmra.mxu0 %v3744
      %v3834 = vpop.f32.mrf.mxu0
      %v3835 = vadd.f32 0.0, %v3834
      %v3836 = vpop.f32.mrf.mxu0
      %v3837 = vadd.f32 0.0, %v3836
      %3838 = vmatmul.bf16.gmra.mxu0 %v3745
      %v3839 = vpop.f32.mrf.mxu0
      %v3840 = vadd.f32 0.0, %v3839
      %v3841 = vpop.f32.mrf.mxu0
      %v3842 = vadd.f32 0.0, %v3841
      %3843 = vmatmul.bf16.gmra.mxu0 %v3746
      %v3844 = vpop.f32.mrf.mxu0
      %v3845 = vadd.f32 0.0, %v3844
      %v3846 = vpop.f32.mrf.mxu0
      %v3847 = vadd.f32 0.0, %v3846
      %3848 = vmatmul.bf16.gmra.mxu0 %v3747
      %v3849 = vpop.f32.mrf.mxu0
      %v3850 = vadd.f32 0.0, %v3849
      %v3851 = vpop.f32.mrf.mxu0
      %v3852 = vadd.f32 0.0, %v3851
      %3853 = vmatmul.bf16.gmra.mxu0 %v3748
      %v3854 = vpop.f32.mrf.mxu0
      %v3855 = vadd.f32 0.0, %v3854
      %v3856 = vpop.f32.mrf.mxu0
      %v3857 = vadd.f32 0.0, %v3856
      %3858 = vmatmul.bf16.gmra.mxu0 %v3749
      %v3859 = vpop.f32.mrf.mxu0
      %v3860 = vadd.f32 0.0, %v3859
      %v3861 = vpop.f32.mrf.mxu0
      %v3862 = vadd.f32 0.0, %v3861
      %3863 = vdwg.mxu0
      %v3864 = vadd.f32 %v3726, %v3825
      %v3865 = vadd.f32 %v3727, %v3827
      %v3866 = vadd.f32 %v3728, %v3830
      %v3867 = vadd.f32 %v3729, %v3832
      %v3868 = vadd.f32 %v3730, %v3835
      %v3869 = vadd.f32 %v3731, %v3837
      %v3870 = vadd.f32 %v3732, %v3840
      %v3871 = vadd.f32 %v3733, %v3842
      %v3872 = vadd.f32 %v3734, %v3845
      %v3873 = vadd.f32 %v3735, %v3847
      %v3874 = vadd.f32 %v3736, %v3850
      %v3875 = vadd.f32 %v3737, %v3852
      %v3876 = vadd.f32 %v3738, %v3855
      %v3877 = vadd.f32 %v3739, %v3857
      %v3878 = vadd.f32 %v3740, %v3860
      %v3879 = vadd.f32 %v3741, %v3862
      %v3880 = vpack.c.bf16 %v3589, %v3588
      %v3881 = vpack.c.bf16 %v3591, %v3590
      %v3882 = vpack.c.bf16 %v3593, %v3592
      %v3883 = vpack.c.bf16 %v3595, %v3594
      %v3884 = vpack.c.bf16 %v3597, %v3596
      %v3885 = vpack.c.bf16 %v3599, %v3598
      %v3886 = vpack.c.bf16 %v3601, %v3600
      %v3887 = vpack.c.bf16 %v3603, %v3602
      %s3888 = scalar_lea.vmem %s7, 512
      %v3889 = vld [vmem:[%s3888] sm:$0xf]
      %v3890 = vld [vmem:[%s3888 + $0x4] sm:$0xf]
      %v3891 = vld [vmem:[%s3888 + $0x8] sm:$0xf]
      %v3892 = vld [vmem:[%s3888 + $0xc] sm:$0xf]
      %v3893 = vld [vmem:[%s3888 + $0x10] sm:$0xf]
      %v3894 = vld [vmem:[%s3888 + $0x14] sm:$0xf]
      %v3895 = vld [vmem:[%s3888 + $0x18] sm:$0xf]
      %v3896 = vld [vmem:[%s3888 + $0x1c] sm:$0xf]
      %v3897 = vld [vmem:[%s3888 + $0x20] sm:$0xf]
      %v3898 = vld [vmem:[%s3888 + $0x24] sm:$0xf]
      %v3899 = vld [vmem:[%s3888 + $0x28] sm:$0xf]
      %v3900 = vld [vmem:[%s3888 + $0x2c] sm:$0xf]
      %v3901 = vld [vmem:[%s3888 + $0x30] sm:$0xf]
      %v3902 = vld [vmem:[%s3888 + $0x34] sm:$0xf]
      %v3903 = vld [vmem:[%s3888 + $0x38] sm:$0xf]
      %v3904 = vld [vmem:[%s3888 + $0x3c] sm:$0xf]
      %v3921 = vunpack.c.l.b16 %v3889
      %v3922 = vunpack.c.l.b16 %v3890
      %v3923 = vunpack.c.l.b16 %v3891
      %v3924 = vunpack.c.l.b16 %v3892
      %v3925 = vunpack.c.l.b16 %v3893
      %v3926 = vunpack.c.l.b16 %v3894
      %v3927 = vunpack.c.l.b16 %v3895
      %v3928 = vunpack.c.l.b16 %v3896
      %v3929 = vunpack.c.l.b16 %v3897
      %v3930 = vunpack.c.l.b16 %v3898
      %v3931 = vunpack.c.l.b16 %v3899
      %v3932 = vunpack.c.l.b16 %v3900
      %v3933 = vunpack.c.l.b16 %v3901
      %v3934 = vunpack.c.l.b16 %v3902
      %v3935 = vunpack.c.l.b16 %v3903
      %v3936 = vunpack.c.l.b16 %v3904
      %v3937 = vpack.c.b16 %v3922, %v3921
      %v3938 = vpack.c.b16 %v3924, %v3923
      %v3939 = vpack.c.b16 %v3926, %v3925
      %v3940 = vpack.c.b16 %v3928, %v3927
      %v3941 = vpack.c.b16 %v3930, %v3929
      %v3942 = vpack.c.b16 %v3932, %v3931
      %v3943 = vpack.c.b16 %v3934, %v3933
      %v3944 = vpack.c.b16 %v3936, %v3935
      %3953 = vmatpush.bf16.msra.mxu0 %v3944
      %3954 = vmatpush.bf16.msra.mxu0 %v3943
      %3955 = vmatpush.bf16.msra.mxu0 %v3942
      %3956 = vmatpush.bf16.msra.mxu0 %v3941
      %3957 = vmatpush.bf16.msra.mxu0 %v3940
      %3958 = vmatpush.bf16.msra.mxu0 %v3939
      %3959 = vmatpush.bf16.msra.mxu0 %v3938
      %3960 = vmatpush.bf16.msra.mxu0 %v3937
      %3961 = vmatmul.bf16.gmra.mxu0 %v3880
      %v3962 = vpop.f32.mrf.mxu0
      %v3963 = vadd.f32 0.0, %v3962
      %v3964 = vpop.f32.mrf.mxu0
      %v3965 = vadd.f32 0.0, %v3964
      %3966 = vmatmul.bf16.gmra.mxu0 %v3881
      %v3967 = vpop.f32.mrf.mxu0
      %v3968 = vadd.f32 0.0, %v3967
      %v3969 = vpop.f32.mrf.mxu0
      %v3970 = vadd.f32 0.0, %v3969
      %3971 = vmatmul.bf16.gmra.mxu0 %v3882
      %v3972 = vpop.f32.mrf.mxu0
      %v3973 = vadd.f32 0.0, %v3972
      %v3974 = vpop.f32.mrf.mxu0
      %v3975 = vadd.f32 0.0, %v3974
      %3976 = vmatmul.bf16.gmra.mxu0 %v3883
      %v3977 = vpop.f32.mrf.mxu0
      %v3978 = vadd.f32 0.0, %v3977
      %v3979 = vpop.f32.mrf.mxu0
      %v3980 = vadd.f32 0.0, %v3979
      %3981 = vmatmul.bf16.gmra.mxu0 %v3884
      %v3982 = vpop.f32.mrf.mxu0
      %v3983 = vadd.f32 0.0, %v3982
      %v3984 = vpop.f32.mrf.mxu0
      %v3985 = vadd.f32 0.0, %v3984
      %3986 = vmatmul.bf16.gmra.mxu0 %v3885
      %v3987 = vpop.f32.mrf.mxu0
      %v3988 = vadd.f32 0.0, %v3987
      %v3989 = vpop.f32.mrf.mxu0
      %v3990 = vadd.f32 0.0, %v3989
      %3991 = vmatmul.bf16.gmra.mxu0 %v3886
      %v3992 = vpop.f32.mrf.mxu0
      %v3993 = vadd.f32 0.0, %v3992
      %v3994 = vpop.f32.mrf.mxu0
      %v3995 = vadd.f32 0.0, %v3994
      %3996 = vmatmul.bf16.gmra.mxu0 %v3887
      %v3997 = vpop.f32.mrf.mxu0
      %v3998 = vadd.f32 0.0, %v3997
      %v3999 = vpop.f32.mrf.mxu0
      %v4000 = vadd.f32 0.0, %v3999
      %4001 = vdwg.mxu0
      %v4002 = vadd.f32 %v3864, %v3963
      %v4003 = vadd.f32 %v3865, %v3965
      %v4004 = vadd.f32 %v3866, %v3968
      %v4005 = vadd.f32 %v3867, %v3970
      %v4006 = vadd.f32 %v3868, %v3973
      %v4007 = vadd.f32 %v3869, %v3975
      %v4008 = vadd.f32 %v3870, %v3978
      %v4009 = vadd.f32 %v3871, %v3980
      %v4010 = vadd.f32 %v3872, %v3983
      %v4011 = vadd.f32 %v3873, %v3985
      %v4012 = vadd.f32 %v3874, %v3988
      %v4013 = vadd.f32 %v3875, %v3990
      %v4014 = vadd.f32 %v3876, %v3993
      %v4015 = vadd.f32 %v3877, %v3995
      %v4016 = vadd.f32 %v3878, %v3998
      %v4017 = vadd.f32 %v3879, %v4000
      %v4018 = vld [vmem:[%s8] sm:$0x1]
      %v4020 = vperm.slane %v4018, 0
      %v4022 = vadd.f32 %v4002, %v4020
      %v4023 = vadd.f32 %v4003, %v4020
      %v4024 = vadd.f32 %v4004, %v4020
      %v4025 = vadd.f32 %v4005, %v4020
      %v4026 = vadd.f32 %v4006, %v4020
      %v4027 = vadd.f32 %v4007, %v4020
      %v4028 = vadd.f32 %v4008, %v4020
      %v4029 = vadd.f32 %v4009, %v4020
      %v4030 = vadd.f32 %v4010, %v4020
      %v4031 = vadd.f32 %v4011, %v4020
      %v4032 = vadd.f32 %v4012, %v4020
      %v4033 = vadd.f32 %v4013, %v4020
      %v4034 = vadd.f32 %v4014, %v4020
      %v4035 = vadd.f32 %v4015, %v4020
      %v4036 = vadd.f32 %v4016, %v4020
      %v4037 = vadd.f32 %v4017, %v4020
      %vm4038 = vcmp.ge.f32.partialorder %v4022, 0.0
      %vm4039 = vcmp.ge.f32.partialorder %v4023, 0.0
      %vm4040 = vcmp.ge.f32.partialorder %v4024, 0.0
      %vm4041 = vcmp.ge.f32.partialorder %v4025, 0.0
      %vm4042 = vcmp.ge.f32.partialorder %v4026, 0.0
      %vm4043 = vcmp.ge.f32.partialorder %v4027, 0.0
      %vm4044 = vcmp.ge.f32.partialorder %v4028, 0.0
      %vm4045 = vcmp.ge.f32.partialorder %v4029, 0.0
      %vm4046 = vcmp.ge.f32.partialorder %v4030, 0.0
      %vm4047 = vcmp.ge.f32.partialorder %v4031, 0.0
      %vm4048 = vcmp.ge.f32.partialorder %v4032, 0.0
      %vm4049 = vcmp.ge.f32.partialorder %v4033, 0.0
      %vm4050 = vcmp.ge.f32.partialorder %v4034, 0.0
      %vm4051 = vcmp.ge.f32.partialorder %v4035, 0.0
      %vm4052 = vcmp.ge.f32.partialorder %v4036, 0.0
      %vm4053 = vcmp.ge.f32.partialorder %v4037, 0.0
      %v4054 = vmul.f32 %v4022, 0.1
      %v4055 = vmul.f32 %v4023, 0.1
      %v4056 = vmul.f32 %v4024, 0.1
      %v4057 = vmul.f32 %v4025, 0.1
      %v4058 = vmul.f32 %v4026, 0.1
      %v4059 = vmul.f32 %v4027, 0.1
      %v4060 = vmul.f32 %v4028, 0.1
      %v4061 = vmul.f32 %v4029, 0.1
      %v4062 = vmul.f32 %v4030, 0.1
      %v4063 = vmul.f32 %v4031, 0.1
      %v4064 = vmul.f32 %v4032, 0.1
      %v4065 = vmul.f32 %v4033, 0.1
      %v4066 = vmul.f32 %v4034, 0.1
      %v4067 = vmul.f32 %v4035, 0.1
      %v4068 = vmul.f32 %v4036, 0.1
      %v4069 = vmul.f32 %v4037, 0.1
      %v4070 = vsel %vm4038, %v4022, %v4054
      %v4071 = vsel %vm4039, %v4023, %v4055
      %v4072 = vsel %vm4040, %v4024, %v4056
      %v4073 = vsel %vm4041, %v4025, %v4057
      %v4074 = vsel %vm4042, %v4026, %v4058
      %v4075 = vsel %vm4043, %v4027, %v4059
      %v4076 = vsel %vm4044, %v4028, %v4060
      %v4077 = vsel %vm4045, %v4029, %v4061
      %v4078 = vsel %vm4046, %v4030, %v4062
      %v4079 = vsel %vm4047, %v4031, %v4063
      %v4080 = vsel %vm4048, %v4032, %v4064
      %v4081 = vsel %vm4049, %v4033, %v4065
      %v4082 = vsel %vm4050, %v4034, %v4066
      %v4083 = vsel %vm4051, %v4035, %v4067
      %v4084 = vsel %vm4052, %v4036, %v4068
      %v4085 = vsel %vm4053, %v4037, %v4069
      %v4086 = vld [vmem:[%s452] sm:$0xff]
      %v4087 = vld [vmem:[%s452 + $0x8] sm:$0xff]
      %v4088 = vld [vmem:[%s452 + $0x10] sm:$0xff]
      %v4089 = vld [vmem:[%s452 + $0x18] sm:$0xff]
      %v4090 = vld [vmem:[%s452 + $0x20] sm:$0xff]
      %v4091 = vld [vmem:[%s452 + $0x28] sm:$0xff]
      %v4092 = vld [vmem:[%s452 + $0x30] sm:$0xff]
      %v4093 = vld [vmem:[%s452 + $0x38] sm:$0xff]
      %v4094 = vld [vmem:[%s452 + $0x40] sm:$0xff]
      %v4095 = vld [vmem:[%s452 + $0x48] sm:$0xff]
      %v4096 = vld [vmem:[%s452 + $0x50] sm:$0xff]
      %v4097 = vld [vmem:[%s452 + $0x58] sm:$0xff]
      %v4098 = vld [vmem:[%s452 + $0x60] sm:$0xff]
      %v4099 = vld [vmem:[%s452 + $0x68] sm:$0xff]
      %v4100 = vld [vmem:[%s452 + $0x70] sm:$0xff]
      %v4101 = vld [vmem:[%s452 + $0x78] sm:$0xff]
      %v4102 = vadd.f32 %v4086, %v4070
      %v4103 = vadd.f32 %v4087, %v4071
      %v4104 = vadd.f32 %v4088, %v4072
      %v4105 = vadd.f32 %v4089, %v4073
      %v4106 = vadd.f32 %v4090, %v4074
      %v4107 = vadd.f32 %v4091, %v4075
      %v4108 = vadd.f32 %v4092, %v4076
      %v4109 = vadd.f32 %v4093, %v4077
      %v4110 = vadd.f32 %v4094, %v4078
      %v4111 = vadd.f32 %v4095, %v4079
      %v4112 = vadd.f32 %v4096, %v4080
      %v4113 = vadd.f32 %v4097, %v4081
      %v4114 = vadd.f32 %v4098, %v4082
      %v4115 = vadd.f32 %v4099, %v4083
      %v4116 = vadd.f32 %v4100, %v4084
      %v4117 = vadd.f32 %v4101, %v4085
      %4118 = vst [vmem:[%s498] sm:$0xff] %v4102
      %4119 = vst [vmem:[%s498 + $0x8] sm:$0xff] %v4103
      %4120 = vst [vmem:[%s498 + $0x10] sm:$0xff] %v4104
      %4121 = vst [vmem:[%s498 + $0x18] sm:$0xff] %v4105
      %4122 = vst [vmem:[%s498 + $0x20] sm:$0xff] %v4106
      %4123 = vst [vmem:[%s498 + $0x28] sm:$0xff] %v4107
      %4124 = vst [vmem:[%s498 + $0x30] sm:$0xff] %v4108
      %4125 = vst [vmem:[%s498 + $0x38] sm:$0xff] %v4109
      %4126 = vst [vmem:[%s498 + $0x40] sm:$0xff] %v4110
      %4127 = vst [vmem:[%s498 + $0x48] sm:$0xff] %v4111
      %4128 = vst [vmem:[%s498 + $0x50] sm:$0xff] %v4112
      %4129 = vst [vmem:[%s498 + $0x58] sm:$0xff] %v4113
      %4130 = vst [vmem:[%s498 + $0x60] sm:$0xff] %v4114
      %4131 = vst [vmem:[%s498 + $0x68] sm:$0xff] %v4115
      %4132 = vst [vmem:[%s498 + $0x70] sm:$0xff] %v4116
      %4133 = vst [vmem:[%s498 + $0x78] sm:$0xff] %v4117
      %s4134 = smul.u32 16, %s25
      %p4135 = scmp.lt.s32.totalorder %s24, 1
      %s4136 = scalar_select %p4135, %s24, 1
      %p4137 = scmp.lt.s32.totalorder %s4134, 31
      %s4138 = scalar_select %p4137, %s4134, 31
      %s4139 = smul.addr %s4136, 32
      %s4140 = sadd.s32 %s4138, %s4139
      %s4141 = smul.addr %s4140, 8
      %s4142 = scalar_lea.vmem %s9, %s4141
      // Predicated region
      $region65: #{spa_block_nchw.1} parent=55 // pred_check
        %p4143 = pneg %p278
      $region66: #{spa_block_nchw.1} parent=55 // pred_check_branch
        %4145 = sbr.rel (%p4143) target = $region68
      $region67: #{spa_block_nchw.1} parent=55 // pred_region
        %s4146 = smul.u32 16, %s25
      $region68: #{spa_block_nchw.1} parent=55 // pred_fallthru
        _
    $region56: #{spa_block_nchw.1} parent=5 // pred_fallthru
      _
    %p4147 = scmp.le.s32.totalorder 2, %s15
    // Predicated region
    $region69: #{spa_block_nchw.1} parent=5 // pred_check
      %p4148 = pneg %p4147
    $region70: #{spa_block_nchw.1} parent=5 // pred_check_branch
      %4150 = sbr.rel (%p4148) target = $region72
    $region71: #{spa_block_nchw.1} parent=5 // pred_region
      %s4151 = ssub.s32 %s15, 2
      // Predicated region
      $region73: #{spa_block_nchw.1} parent=71 // pred_check
        %p4152 = pneg %p284
      $region74: #{spa_block_nchw.1} parent=71 // pred_check_branch
        %4154 = sbr.rel (%p4152) target = $region76
      $region75: #{spa_block_nchw.1} parent=71 // pred_region
        %s4155 = smul.u32 16, %s27
        %p4156 = scmp.lt.s32.totalorder %s26, 1
        %s4157 = scalar_select %p4156, %s26, 1
        %p4158 = scmp.lt.s32.totalorder %s4155, 31
        %s4159 = scalar_select %p4158, %s4155, 31
        %s4160 = smul.addr %s4157, 32
        %s4161 = sadd.s32 %s4159, %s4160
        %s4162 = smul.addr %s4161, 8
        %s4163 = scalar_lea.vmem %s9, %s4162
      $region76: #{spa_block_nchw.1} parent=71 // pred_fallthru
        _
    $region72: #{spa_block_nchw.1} parent=5 // pred_fallthru
      _
  $region6: #{spa_block_nchw.1} parent=0 // loop_footer
    %s19 = sadd.s32 1, %s15
  $region7: #{spa_block_nchw.1} parent=0 // loop_footer_branch
    %14 = sbr.rel target = $region3
  $region8: #{spa_block_nchw.1} parent=0 // loop_exit
    _

</llo_original>
